<compile_context>
chip_gen: v7x
topology: tpu7x:2x2x1
jax: 0.10.0
libtpu: 0.0.40
codegen_flags: <defaults>
</compile_context>

<pallas_src>
import functools

import jax
import jax.numpy as jnp
import numpy as np
from jax.experimental import pallas as pl
from jax.experimental.pallas import tpu as pltpu


_SQRT1_2 = 0.7071067811865476


def _gelu_erf(x):
    """Exact (erf-based) GELU matching torch.nn.GELU()'s default.

    erf uses the Abramowitz & Stegun 7.1.26 polynomial (max abs err ~1.5e-7); the divide goes to
    the EUP via pl.reciprocal(approx=True) so the whole activation stays off the VALU hot path.
    """
    z = x * _SQRT1_2
    az = jnp.abs(z)
    t = pl.reciprocal(1.0 + 0.3275911 * az, approx=True)
    poly = t * (0.254829592
                + t * (-0.284496736
                       + t * (1.421413741
                              + t * (-1.453152027 + t * 1.061405429))))
    erf_abs = 1.0 - poly * jnp.exp(-az * az)
    erf_z = jnp.where(z >= 0.0, erf_abs, -erf_abs)
    return 0.5 * x * (1.0 + erf_z)


# -----------------------------------------------------------------------------
# Pallas kernel: one batch image of SDE_module.forward (eval mode), layout [C, HW]
# -----------------------------------------------------------------------------
def _sde_kernel(x_ref, d_ref, masks_ref, w_ref, k_ref, b_ref, o_ref, *, width):
    HW = x_ref.shape[2]

    def dot(i, v):
        # bf16 operands on the MXU, f32 accumulation.
        return jnp.dot(w_ref[i], v.astype(jnp.bfloat16),
                       preferred_element_type=jnp.float32)

    def bias(i):                       # [C, 1] column, broadcasts along lanes
        return b_ref[:, i:i + 1]

    def dwconv3x3(v, kidx):
        """Depthwise 3x3, padding=1, on a row-major flattened [C, H*W] map.

        The 8 neighbour taps are in-register lane rotations (XLU slot); per-tap lane masks
        (precomputed host-side) zero the row / column wrap-around, so no halo scratch is needed.
        """
        k9 = k_ref[kidx]                              # [C, 9] taps, (kh, kw) row-major
        acc = k9[:, 4:5] * v                          # centre tap, no shift / mask
        tap = 0
        for dh in (-1, 0, 1):
            for dw in (-1, 0, 1):
                if dh == 0 and dw == 0:
                    tap += 1
                    continue
                off = dh * width + dw                 # out[p] needs v[p + off]
                nb = pltpu.roll(v, shift=(-off) % HW, axis=1) * masks_ref[tap:tap + 1, :]
                acc = acc + k9[:, tap:tap + 1] * nb
                tap += 1
        return acc

    # Ordered to keep the peak number of live [C, HW] intermediates small (less vreg spill).
    # ---- branch 1: conv5a (+BN, ReLU) -> depthwise conv51 (+BN, ReLU) ----
    f1 = jnp.maximum(dot(1, x_ref[0]) + bias(2), 0.0)
    sa = jnp.maximum(dwconv3x3(f1, 1) + bias(4), 0.0)
    # ---- branch 2: conv5c (+BN, ReLU) -> depthwise conv52 (+BN, ReLU) ----
    f2 = jnp.maximum(dot(2, x_ref[0]) + bias(3), 0.0)
    sc = jnp.maximum(dwconv3x3(f2, 2) + bias(5), 0.0)
    s = sa + sc

    # ---- reencoder gate: 1x1 conv (+bias) -> GELU -> depthwise 3x3 (+bias) -> sigmoid ----
    t = _gelu_erf(dot(0, d_ref[0]) + bias(0))
    gate = jax.nn.sigmoid(dwconv3x3(t, 0) + bias(1))

    feat_sum = s * gate
    heads = dot(3, feat_sum) + bias(6)                # all conv8 (Dropout2d = id in eval)
    # ---- final 1x1 conv + residual ----
    o_ref[0] = (dot(4, heads) + bias(7) + x_ref[0]).astype(o_ref.dtype)


# -----------------------------------------------------------------------------
# Host-side weight preparation (BN folding, block-diagonal assembly, packing).
# Call ONCE per parameter set and reuse the packed arrays (hoisted off the hot path).
# -----------------------------------------------------------------------------
def _fold_bn_1x1(w, bn, eps=1e-5):
    """Fold eval-mode BN into a bias-free 1x1 conv. w: [Cout, Cin] -> (w', b')."""
    scale = bn["g"] / jnp.sqrt(bn["v"] + eps)
    return w * scale[:, None], bn["b"] - bn["m"] * scale


def _fold_bn_dw(k, bn, eps=1e-5):
    """Fold eval-mode BN into a bias-free depthwise 3x3. k: [c,1,3,3] -> ([c,9], [c])."""
    scale = bn["g"] / jnp.sqrt(bn["v"] + eps)
    kf = (k[:, 0] * scale[:, None, None]).reshape(k.shape[0], 9)
    return kf, bn["b"] - bn["m"] * scale


def _block_diag(blocks):
    n = len(blocks)
    ic = blocks[0].shape[0]
    out = jnp.zeros((n * ic, n * ic), jnp.float32)
    for i, blk in enumerate(blocks):
        out = out.at[i * ic:(i + 1) * ic, i * ic:(i + 1) * ic].set(blk)
    return out


def prepare_sde_params(params):
    C = params["w_re1"].shape[0]
    # The PyTorch forward computes feat9 with self.att8, so head 9 reuses head 8's weights.
    heads9 = list(params["heads"][:8]) + [params["heads"][7]]

    w5a, b5a, w5c, b5c = [], [], [], []
    k51, b51, k52, b52 = [], [], [], []
    w8, b8 = [], []
    for hp in heads9:
        w, b = _fold_bn_1x1(hp["w5a"], hp["bn5a"]); w5a.append(w); b5a.append(b)
        w, b = _fold_bn_1x1(hp["w5c"], hp["bn5c"]); w5c.append(w); b5c.append(b)
        k, b = _fold_bn_dw(hp["k51"], hp["bn51"]); k51.append(k); b51.append(b)
        k, b = _fold_bn_dw(hp["k52"], hp["bn52"]); k52.append(k); b52.append(b)
        w8.append(hp["w8"]); b8.append(hp["b8"])

    wmats = jnp.stack([
        params["w_re1"],          # reencoder 1x1
        _block_diag(w5a),         # all conv5a (BN folded)
        _block_diag(w5c),         # all conv5c (BN folded)
        _block_diag(w8),          # all conv8
        params["w_final"],        # final_conv
    ]).astype(jnp.bfloat16)                                     # [5, C, C] bf16 (MXU operands)
    dwk = jnp.stack([
        params["k_re_dw"][:, 0].reshape(C, 9),                  # reencoder depthwise 3x3
        jnp.concatenate(k51, axis=0),                           # all conv51 (BN folded)
        jnp.concatenate(k52, axis=0),                           # all conv52 (BN folded)
    ])                                                          # [3, C, 9] f32
    biases = jnp.stack([
        params["b_re1"], params["b_re_dw"],
        jnp.concatenate(b5a), jnp.concatenate(b5c),
        jnp.concatenate(b51), jnp.concatenate(b52),
        jnp.concatenate(b8), params["b_final"],
    ], axis=1)                                                  # [C, 8] f32
    return {"wmats": wmats, "dwk": dwk, "biases": biases}


def _make_tap_masks(H, W):
    """Per-tap [9, H*W] lane masks: 1 where the (dh, dw) neighbour stays inside the image."""
    HW = H * W
    col = np.arange(HW) % W
    row = np.arange(HW) // W
    ones = np.ones(HW, bool)
    hm = {-1: col >= 1, 0: ones, 1: col <= W - 2}
    vm = {-1: row >= 1, 0: ones, 1: row <= H - 2}
    masks = [vm[dh] & hm[dw] for dh in (-1, 0, 1) for dw in (-1, 0, 1)]
    return jnp.asarray(np.stack(masks).astype(np.float32))      # [9, HW]


# -----------------------------------------------------------------------------
# Wrapper
# -----------------------------------------------------------------------------
def sde_module_forward(x, d_prior, packed):
    """SDE_module.forward (eval mode). x, d_prior: [B, C, H, W] float32, C % 9 == 0."""
    B, C, H, W = x.shape
    HW = H * W
    assert C % 9 == 0, "in_channels must be divisible by 9"
    assert HW % 128 == 0, "H*W must be a multiple of 128 for the lane-dense layout"

    # Keep NCHW; just flatten H*W onto the lane axis (free reshape, no transposes).
    x2 = x.reshape(B, C, HW)
    d2 = d_prior.reshape(B, C, HW)
    masks = _make_tap_masks(H, W)   # numpy-built -> trace-time constant, no per-call device work

    kernel = functools.partial(_sde_kernel, width=W)
    out = pl.pallas_call(
        kernel,
        grid=(B,),
        in_specs=[
            pl.BlockSpec((1, C, HW), lambda b: (b, 0, 0)),     # x
            pl.BlockSpec((1, C, HW), lambda b: (b, 0, 0)),     # d_prior
            pl.BlockSpec((9, HW), lambda b: (0, 0)),           # per-tap lane masks
            pl.BlockSpec((5, C, C), lambda b: (0, 0, 0)),      # 1x1 conv weights (bf16, stacked)
            pl.BlockSpec((3, C, 9), lambda b: (0, 0, 0)),      # depthwise 3x3 taps (stacked)
            pl.BlockSpec((C, 8), lambda b: (0, 0)),            # biases (stacked columns)
        ],
        out_specs=pl.BlockSpec((1, C, HW), lambda b: (b, 0, 0)),
        out_shape=jax.ShapeDtypeStruct((B, C, HW), jnp.float32),
        compiler_params=pltpu.CompilerParams(dimension_semantics=("parallel",)),
    )(x2, d2, masks, packed["wmats"], packed["dwk"], packed["biases"])

    return out.reshape(B, C, H, W)


# -----------------------------------------------------------------------------
# Pure-JAX reference (mirrors the PyTorch forward; eval-mode BN, Dropout2d = identity)
# -----------------------------------------------------------------------------
def _reference_forward(x, d_prior, params, eps=1e-5):
    def conv1x1(v, w, b=None):
        y = jnp.einsum("oc,bchw->bohw", w, v)
        if b is not None:
            y = y + b[None, :, None, None]
        return y

    def bn(v, p):
        return (p["g"][None, :, None, None] * (v - p["m"][None, :, None, None])
                / jnp.sqrt(p["v"][None, :, None, None] + eps)
                + p["b"][None, :, None, None])

    def dwconv(v, k, b=None):
        y = jax.lax.conv_general_dilated(
            v, k, window_strides=(1, 1), padding=((1, 1), (1, 1)),
            dimension_numbers=("NCHW", "OIHW", "NCHW"),
            feature_group_count=v.shape[1])
        if b is not None:
            y = y + b[None, :, None, None]
        return y

    def danet_head(v, enc, hp):
        feat1 = jax.nn.relu(bn(conv1x1(v, hp["w5a"]), hp["bn5a"]))
        sa = jax.nn.relu(bn(dwconv(feat1, hp["k51"]), hp["bn51"]))
        feat2 = jax.nn.relu(bn(conv1x1(v, hp["w5c"]), hp["bn5c"]))
        sc = jax.nn.relu(bn(dwconv(feat2, hp["k52"]), hp["bn52"]))
        feat_sum = (sa + sc) * jax.nn.sigmoid(enc)
        return conv1x1(feat_sum, hp["w8"], hp["b8"])   # Dropout2d inactive in eval

    t = jax.nn.gelu(conv1x1(d_prior, params["w_re1"], params["b_re1"]),
                    approximate=False)
    enc = dwconv(t, params["k_re_dw"], params["b_re_dw"])

    ic = x.shape[1] // 9
    heads9 = list(params["heads"][:8]) + [params["heads"][7]]   # feat9 uses att8
    feats = []
    for i, hp in enumerate(heads9):
        sl = slice(i * ic, (i + 1) * ic)
        feats.append(danet_head(x[:, sl], enc[:, sl], hp))
    feat = jnp.concatenate(feats, axis=1)
    out = conv1x1(feat, params["w_final"], params["b_final"])
    return out + x


# -----------------------------------------------------------------------------
if __name__ == "__main__":
    B, H, W = 2, 16, 16
    ic = 8                 # inter_channels = in_channels // 9
    C = 9 * ic             # in_channels (== out_channels, required by the residual `+ x`)

    key = jax.random.PRNGKey(0)
    keys = iter(jax.random.split(key, 256))

    def nk():
        return next(keys)

    def nrm(shape, scale=0.1):
        return scale * jax.random.normal(nk(), shape, jnp.float32)

    def make_bn(n):
        return {"g": 1.0 + nrm((n,)), "b": nrm((n,)), "m": nrm((n,)),
                "v": 0.5 + jnp.abs(jax.random.normal(nk(), (n,), jnp.float32))}

    def make_head():
        return {
            "w5a": nrm((ic, ic)), "bn5a": make_bn(ic),
            "w5c": nrm((ic, ic)), "bn5c": make_bn(ic),
            "k51": nrm((ic, 1, 3, 3)), "bn51": make_bn(ic),
            "k52": nrm((ic, 1, 3, 3)), "bn52": make_bn(ic),
            "w8": nrm((ic, ic)), "b8": nrm((ic,)),
        }

    params = {
        "w_re1": nrm((C, C)), "b_re1": nrm((C,)),
        "k_re_dw": nrm((C, 1, 3, 3)), "b_re_dw": nrm((C,)),
        "w_final": nrm((C, C)), "b_final": nrm((C,)),
        # att1..att8 (att9 exists in the module but the forward reuses att8 for slice 9)
        "heads": [make_head() for _ in range(8)],
    }

    x = jax.random.normal(nk(), (B, C, H, W), jnp.float32)
    d_prior = jax.random.normal(nk(), (B, C, H, W), jnp.float32)

    packed = prepare_sde_params(params)          # hoisted out of the per-call hot path
    out = jax.jit(sde_module_forward)(x, d_prior, packed)
    out = jax.block_until_ready(out)

    ref = _reference_forward(x, d_prior, params)
    ref = jax.block_until_ready(ref)

    np.testing.assert_allclose(np.asarray(out), np.asarray(ref), rtol=2e-3, atol=2e-3)
    assert out.shape == (B, C, H, W)
    print("KERNEL_OK")
</pallas_src>

<mosaic_0001>
module attributes {stable_mosaic.version = 11 : i64} {
  func.func @_sde_kernel(%arg0: i32, %arg1: memref<1x72x256xf32, #tpu.memory_space<vmem>>, %arg2: memref<1x72x256xf32, #tpu.memory_space<vmem>>, %arg3: memref<9x256xf32, #tpu.memory_space<vmem>>, %arg4: memref<5x72x72xbf16, #tpu.memory_space<vmem>>, %arg5: memref<3x72x9xf32, #tpu.memory_space<vmem>>, %arg6: memref<72x8xf32, #tpu.memory_space<vmem>>, %arg7: memref<1x72x256xf32, #tpu.memory_space<vmem>>) attributes {dimension_semantics = [#tpu.dimension_semantics<parallel>], iteration_bounds = array<i64: 2>, scalar_prefetch = 0 : i64, scratch_operands = 0 : i64, tpu.core_type = #tpu.core_type<tc>, window_params = [{transform_indices = @transform_0, window_bounds = array<i64: 1, 72, 256>}, {transform_indices = @transform_1, window_bounds = array<i64: 1, 72, 256>}, {pipeline_mode = #tpu.pipeline_mode<synchronous>, transform_indices = @transform_2, window_bounds = array<i64: 9, 256>}, {pipeline_mode = #tpu.pipeline_mode<synchronous>, transform_indices = @transform_3, window_bounds = array<i64: 5, 72, 72>}, {pipeline_mode = #tpu.pipeline_mode<synchronous>, transform_indices = @transform_4, window_bounds = array<i64: 3, 72, 9>}, {pipeline_mode = #tpu.pipeline_mode<synchronous>, transform_indices = @transform_5, window_bounds = array<i64: 72, 8>}, {transform_indices = @transform_6, window_bounds = array<i64: 1, 72, 256>}]} {
    %c0 = arith.constant 0 : index
    %c0_0 = arith.constant 0 : index
    %c0_1 = arith.constant 0 : index
    %0 = vector.load %arg1[%c0, %c0_0, %c0_1] : memref<1x72x256xf32, #tpu.memory_space<vmem>>, vector<1x72x256xf32>
    %1 = vector.shape_cast %0 : vector<1x72x256xf32> to vector<72x256xf32>
    %c1 = arith.constant 1 : index
    %c0_2 = arith.constant 0 : index
    %c0_3 = arith.constant 0 : index
    %2 = vector.load %arg4[%c1, %c0_2, %c0_3] : memref<5x72x72xbf16, #tpu.memory_space<vmem>>, vector<1x72x72xbf16>
    %3 = vector.shape_cast %2 : vector<1x72x72xbf16> to vector<72x72xbf16>
    %4 = arith.truncf %1 : vector<72x256xf32> to vector<72x256xbf16>
    %cst = arith.constant dense<0.000000e+00> : vector<72x256xf32>
    %5 = tpu.matmul %3, %4, %cst {dimension_numbers = #tpu.dot_dimension_numbers<[1], [0], [0], [1], [0, 0, 1, 1], [], []>} : vector<72x72xbf16>, vector<72x256xbf16>, vector<72x256xf32> -> vector<72x256xf32>
    %c0_4 = arith.constant 0 : index
    %c2 = arith.constant 2 : index
    %6 = vector.load %arg6[%c0_4, %c2] : memref<72x8xf32, #tpu.memory_space<vmem>>, vector<72x1xf32>
    %7 = vector.broadcast %6 : vector<72x1xf32> to vector<72x256xf32>
    %8 = arith.addf %5, %7 : vector<72x256xf32>
    %cst_5 = arith.constant 0.000000e+00 : f32
    %9 = vector.broadcast %cst_5 : f32 to vector<72x256xf32>
    %10 = arith.maximumf %8, %9 : vector<72x256xf32>
    %c1_6 = arith.constant 1 : index
    %c0_7 = arith.constant 0 : index
    %c0_8 = arith.constant 0 : index
    %11 = vector.load %arg5[%c1_6, %c0_7, %c0_8] : memref<3x72x9xf32, #tpu.memory_space<vmem>>, vector<1x72x9xf32>
    %12 = vector.shape_cast %11 : vector<1x72x9xf32> to vector<72x9xf32>
    %13 = vector.extract_strided_slice %12 {offsets = [0, 4], sizes = [72, 1], strides = [1, 1]} : vector<72x9xf32> to vector<72x1xf32>
    %14 = vector.broadcast %13 : vector<72x1xf32> to vector<72x256xf32>
    %15 = arith.mulf %14, %10 : vector<72x256xf32>
    %c17_i32 = arith.constant 17 : i32
    %16 = tpu.dynamic_rotate %10 by %c17_i32 dim 1 : vector<72x256xf32>, i32 -> vector<72x256xf32>
    %c0_9 = arith.constant 0 : index
    %c0_10 = arith.constant 0 : index
    %17 = vector.load %arg3[%c0_9, %c0_10] : memref<9x256xf32, #tpu.memory_space<vmem>>, vector<1x256xf32>
    %18 = vector.broadcast %17 : vector<1x256xf32> to vector<72x256xf32>
    %19 = arith.mulf %16, %18 : vector<72x256xf32>
    %20 = vector.extract_strided_slice %12 {offsets = [0, 0], sizes = [72, 1], strides = [1, 1]} : vector<72x9xf32> to vector<72x1xf32>
    %21 = vector.broadcast %20 : vector<72x1xf32> to vector<72x256xf32>
    %22 = arith.mulf %21, %19 : vector<72x256xf32>
    %23 = arith.addf %15, %22 : vector<72x256xf32>
    %c16_i32 = arith.constant 16 : i32
    %24 = tpu.dynamic_rotate %10 by %c16_i32 dim 1 : vector<72x256xf32>, i32 -> vector<72x256xf32>
    %c1_11 = arith.constant 1 : index
    %c0_12 = arith.constant 0 : index
    %25 = vector.load %arg3[%c1_11, %c0_12] : memref<9x256xf32, #tpu.memory_space<vmem>>, vector<1x256xf32>
    %26 = vector.broadcast %25 : vector<1x256xf32> to vector<72x256xf32>
    %27 = arith.mulf %24, %26 : vector<72x256xf32>
    %28 = vector.extract_strided_slice %12 {offsets = [0, 1], sizes = [72, 1], strides = [1, 1]} : vector<72x9xf32> to vector<72x1xf32>
    %29 = vector.broadcast %28 : vector<72x1xf32> to vector<72x256xf32>
    %30 = arith.mulf %29, %27 : vector<72x256xf32>
    %31 = arith.addf %23, %30 : vector<72x256xf32>
    %c15_i32 = arith.constant 15 : i32
    %32 = tpu.dynamic_rotate %10 by %c15_i32 dim 1 : vector<72x256xf32>, i32 -> vector<72x256xf32>
    %c2_13 = arith.constant 2 : index
    %c0_14 = arith.constant 0 : index
    %33 = vector.load %arg3[%c2_13, %c0_14] : memref<9x256xf32, #tpu.memory_space<vmem>>, vector<1x256xf32>
    %34 = vector.broadcast %33 : vector<1x256xf32> to vector<72x256xf32>
    %35 = arith.mulf %32, %34 : vector<72x256xf32>
    %36 = vector.extract_strided_slice %12 {offsets = [0, 2], sizes = [72, 1], strides = [1, 1]} : vector<72x9xf32> to vector<72x1xf32>
    %37 = vector.broadcast %36 : vector<72x1xf32> to vector<72x256xf32>
    %38 = arith.mulf %37, %35 : vector<72x256xf32>
    %39 = arith.addf %31, %38 : vector<72x256xf32>
    %c1_i32 = arith.constant 1 : i32
    %40 = tpu.dynamic_rotate %10 by %c1_i32 dim 1 : vector<72x256xf32>, i32 -> vector<72x256xf32>
    %c3 = arith.constant 3 : index
    %c0_15 = arith.constant 0 : index
    %41 = vector.load %arg3[%c3, %c0_15] : memref<9x256xf32, #tpu.memory_space<vmem>>, vector<1x256xf32>
    %42 = vector.broadcast %41 : vector<1x256xf32> to vector<72x256xf32>
    %43 = arith.mulf %40, %42 : vector<72x256xf32>
    %44 = vector.extract_strided_slice %12 {offsets = [0, 3], sizes = [72, 1], strides = [1, 1]} : vector<72x9xf32> to vector<72x1xf32>
    %45 = vector.broadcast %44 : vector<72x1xf32> to vector<72x256xf32>
    %46 = arith.mulf %45, %43 : vector<72x256xf32>
    %47 = arith.addf %39, %46 : vector<72x256xf32>
    %c255_i32 = arith.constant 255 : i32
    %48 = tpu.dynamic_rotate %10 by %c255_i32 dim 1 : vector<72x256xf32>, i32 -> vector<72x256xf32>
    %c5 = arith.constant 5 : index
    %c0_16 = arith.constant 0 : index
    %49 = vector.load %arg3[%c5, %c0_16] : memref<9x256xf32, #tpu.memory_space<vmem>>, vector<1x256xf32>
    %50 = vector.broadcast %49 : vector<1x256xf32> to vector<72x256xf32>
    %51 = arith.mulf %48, %50 : vector<72x256xf32>
    %52 = vector.extract_strided_slice %12 {offsets = [0, 5], sizes = [72, 1], strides = [1, 1]} : vector<72x9xf32> to vector<72x1xf32>
    %53 = vector.broadcast %52 : vector<72x1xf32> to vector<72x256xf32>
    %54 = arith.mulf %53, %51 : vector<72x256xf32>
    %55 = arith.addf %47, %54 : vector<72x256xf32>
    %c241_i32 = arith.constant 241 : i32
    %56 = tpu.dynamic_rotate %10 by %c241_i32 dim 1 : vector<72x256xf32>, i32 -> vector<72x256xf32>
    %c6 = arith.constant 6 : index
    %c0_17 = arith.constant 0 : index
    %57 = vector.load %arg3[%c6, %c0_17] : memref<9x256xf32, #tpu.memory_space<vmem>>, vector<1x256xf32>
    %58 = vector.broadcast %57 : vector<1x256xf32> to vector<72x256xf32>
    %59 = arith.mulf %56, %58 : vector<72x256xf32>
    %60 = vector.extract_strided_slice %12 {offsets = [0, 6], sizes = [72, 1], strides = [1, 1]} : vector<72x9xf32> to vector<72x1xf32>
    %61 = vector.broadcast %60 : vector<72x1xf32> to vector<72x256xf32>
    %62 = arith.mulf %61, %59 : vector<72x256xf32>
    %63 = arith.addf %55, %62 : vector<72x256xf32>
    %c240_i32 = arith.constant 240 : i32
    %64 = tpu.dynamic_rotate %10 by %c240_i32 dim 1 : vector<72x256xf32>, i32 -> vector<72x256xf32>
    %c7 = arith.constant 7 : index
    %c0_18 = arith.constant 0 : index
    %65 = vector.load %arg3[%c7, %c0_18] : memref<9x256xf32, #tpu.memory_space<vmem>>, vector<1x256xf32>
    %66 = vector.broadcast %65 : vector<1x256xf32> to vector<72x256xf32>
    %67 = arith.mulf %64, %66 : vector<72x256xf32>
    %68 = vector.extract_strided_slice %12 {offsets = [0, 7], sizes = [72, 1], strides = [1, 1]} : vector<72x9xf32> to vector<72x1xf32>
    %69 = vector.broadcast %68 : vector<72x1xf32> to vector<72x256xf32>
    %70 = arith.mulf %69, %67 : vector<72x256xf32>
    %71 = arith.addf %63, %70 : vector<72x256xf32>
    %c239_i32 = arith.constant 239 : i32
    %72 = tpu.dynamic_rotate %10 by %c239_i32 dim 1 : vector<72x256xf32>, i32 -> vector<72x256xf32>
    %c8 = arith.constant 8 : index
    %c0_19 = arith.constant 0 : index
    %73 = vector.load %arg3[%c8, %c0_19] : memref<9x256xf32, #tpu.memory_space<vmem>>, vector<1x256xf32>
    %74 = vector.broadcast %73 : vector<1x256xf32> to vector<72x256xf32>
    %75 = arith.mulf %72, %74 : vector<72x256xf32>
    %76 = vector.extract_strided_slice %12 {offsets = [0, 8], sizes = [72, 1], strides = [1, 1]} : vector<72x9xf32> to vector<72x1xf32>
    %77 = vector.broadcast %76 : vector<72x1xf32> to vector<72x256xf32>
    %78 = arith.mulf %77, %75 : vector<72x256xf32>
    %79 = arith.addf %71, %78 : vector<72x256xf32>
    %c0_20 = arith.constant 0 : index
    %c4 = arith.constant 4 : index
    %80 = vector.load %arg6[%c0_20, %c4] : memref<72x8xf32, #tpu.memory_space<vmem>>, vector<72x1xf32>
    %81 = vector.broadcast %80 : vector<72x1xf32> to vector<72x256xf32>
    %82 = arith.addf %79, %81 : vector<72x256xf32>
    %cst_21 = arith.constant 0.000000e+00 : f32
    %83 = vector.broadcast %cst_21 : f32 to vector<72x256xf32>
    %84 = arith.maximumf %82, %83 : vector<72x256xf32>
    %c0_22 = arith.constant 0 : index
    %c0_23 = arith.constant 0 : index
    %c0_24 = arith.constant 0 : index
    %85 = vector.load %arg1[%c0_22, %c0_23, %c0_24] : memref<1x72x256xf32, #tpu.memory_space<vmem>>, vector<1x72x256xf32>
    %86 = vector.shape_cast %85 : vector<1x72x256xf32> to vector<72x256xf32>
    %c2_25 = arith.constant 2 : index
    %c0_26 = arith.constant 0 : index
    %c0_27 = arith.constant 0 : index
    %87 = vector.load %arg4[%c2_25, %c0_26, %c0_27] : memref<5x72x72xbf16, #tpu.memory_space<vmem>>, vector<1x72x72xbf16>
    %88 = vector.shape_cast %87 : vector<1x72x72xbf16> to vector<72x72xbf16>
    %89 = arith.truncf %86 : vector<72x256xf32> to vector<72x256xbf16>
    %cst_28 = arith.constant dense<0.000000e+00> : vector<72x256xf32>
    %90 = tpu.matmul %88, %89, %cst_28 {dimension_numbers = #tpu.dot_dimension_numbers<[1], [0], [0], [1], [0, 0, 1, 1], [], []>} : vector<72x72xbf16>, vector<72x256xbf16>, vector<72x256xf32> -> vector<72x256xf32>
    %c0_29 = arith.constant 0 : index
    %c3_30 = arith.constant 3 : index
    %91 = vector.load %arg6[%c0_29, %c3_30] : memref<72x8xf32, #tpu.memory_space<vmem>>, vector<72x1xf32>
    %92 = vector.broadcast %91 : vector<72x1xf32> to vector<72x256xf32>
    %93 = arith.addf %90, %92 : vector<72x256xf32>
    %cst_31 = arith.constant 0.000000e+00 : f32
    %94 = vector.broadcast %cst_31 : f32 to vector<72x256xf32>
    %95 = arith.maximumf %93, %94 : vector<72x256xf32>
    %c2_32 = arith.constant 2 : index
    %c0_33 = arith.constant 0 : index
    %c0_34 = arith.constant 0 : index
    %96 = vector.load %arg5[%c2_32, %c0_33, %c0_34] : memref<3x72x9xf32, #tpu.memory_space<vmem>>, vector<1x72x9xf32>
    %97 = vector.shape_cast %96 : vector<1x72x9xf32> to vector<72x9xf32>
    %98 = vector.extract_strided_slice %97 {offsets = [0, 4], sizes = [72, 1], strides = [1, 1]} : vector<72x9xf32> to vector<72x1xf32>
    %99 = vector.broadcast %98 : vector<72x1xf32> to vector<72x256xf32>
    %100 = arith.mulf %99, %95 : vector<72x256xf32>
    %c17_i32_35 = arith.constant 17 : i32
    %101 = tpu.dynamic_rotate %95 by %c17_i32_35 dim 1 : vector<72x256xf32>, i32 -> vector<72x256xf32>
    %c0_36 = arith.constant 0 : index
    %c0_37 = arith.constant 0 : index
    %102 = vector.load %arg3[%c0_36, %c0_37] : memref<9x256xf32, #tpu.memory_space<vmem>>, vector<1x256xf32>
    %103 = vector.broadcast %102 : vector<1x256xf32> to vector<72x256xf32>
    %104 = arith.mulf %101, %103 : vector<72x256xf32>
    %105 = vector.extract_strided_slice %97 {offsets = [0, 0], sizes = [72, 1], strides = [1, 1]} : vector<72x9xf32> to vector<72x1xf32>
    %106 = vector.broadcast %105 : vector<72x1xf32> to vector<72x256xf32>
    %107 = arith.mulf %106, %104 : vector<72x256xf32>
    %108 = arith.addf %100, %107 : vector<72x256xf32>
    %c16_i32_38 = arith.constant 16 : i32
    %109 = tpu.dynamic_rotate %95 by %c16_i32_38 dim 1 : vector<72x256xf32>, i32 -> vector<72x256xf32>
    %c1_39 = arith.constant 1 : index
    %c0_40 = arith.constant 0 : index
    %110 = vector.load %arg3[%c1_39, %c0_40] : memref<9x256xf32, #tpu.memory_space<vmem>>, vector<1x256xf32>
    %111 = vector.broadcast %110 : vector<1x256xf32> to vector<72x256xf32>
    %112 = arith.mulf %109, %111 : vector<72x256xf32>
    %113 = vector.extract_strided_slice %97 {offsets = [0, 1], sizes = [72, 1], strides = [1, 1]} : vector<72x9xf32> to vector<72x1xf32>
    %114 = vector.broadcast %113 : vector<72x1xf32> to vector<72x256xf32>
    %115 = arith.mulf %114, %112 : vector<72x256xf32>
    %116 = arith.addf %108, %115 : vector<72x256xf32>
    %c15_i32_41 = arith.constant 15 : i32
    %117 = tpu.dynamic_rotate %95 by %c15_i32_41 dim 1 : vector<72x256xf32>, i32 -> vector<72x256xf32>
    %c2_42 = arith.constant 2 : index
    %c0_43 = arith.constant 0 : index
    %118 = vector.load %arg3[%c2_42, %c0_43] : memref<9x256xf32, #tpu.memory_space<vmem>>, vector<1x256xf32>
    %119 = vector.broadcast %118 : vector<1x256xf32> to vector<72x256xf32>
    %120 = arith.mulf %117, %119 : vector<72x256xf32>
    %121 = vector.extract_strided_slice %97 {offsets = [0, 2], sizes = [72, 1], strides = [1, 1]} : vector<72x9xf32> to vector<72x1xf32>
    %122 = vector.broadcast %121 : vector<72x1xf32> to vector<72x256xf32>
    %123 = arith.mulf %122, %120 : vector<72x256xf32>
    %124 = arith.addf %116, %123 : vector<72x256xf32>
    %c1_i32_44 = arith.constant 1 : i32
    %125 = tpu.dynamic_rotate %95 by %c1_i32_44 dim 1 : vector<72x256xf32>, i32 -> vector<72x256xf32>
    %c3_45 = arith.constant 3 : index
    %c0_46 = arith.constant 0 : index
    %126 = vector.load %arg3[%c3_45, %c0_46] : memref<9x256xf32, #tpu.memory_space<vmem>>, vector<1x256xf32>
    %127 = vector.broadcast %126 : vector<1x256xf32> to vector<72x256xf32>
    %128 = arith.mulf %125, %127 : vector<72x256xf32>
    %129 = vector.extract_strided_slice %97 {offsets = [0, 3], sizes = [72, 1], strides = [1, 1]} : vector<72x9xf32> to vector<72x1xf32>
    %130 = vector.broadcast %129 : vector<72x1xf32> to vector<72x256xf32>
    %131 = arith.mulf %130, %128 : vector<72x256xf32>
    %132 = arith.addf %124, %131 : vector<72x256xf32>
    %c255_i32_47 = arith.constant 255 : i32
    %133 = tpu.dynamic_rotate %95 by %c255_i32_47 dim 1 : vector<72x256xf32>, i32 -> vector<72x256xf32>
    %c5_48 = arith.constant 5 : index
    %c0_49 = arith.constant 0 : index
    %134 = vector.load %arg3[%c5_48, %c0_49] : memref<9x256xf32, #tpu.memory_space<vmem>>, vector<1x256xf32>
    %135 = vector.broadcast %134 : vector<1x256xf32> to vector<72x256xf32>
    %136 = arith.mulf %133, %135 : vector<72x256xf32>
    %137 = vector.extract_strided_slice %97 {offsets = [0, 5], sizes = [72, 1], strides = [1, 1]} : vector<72x9xf32> to vector<72x1xf32>
    %138 = vector.broadcast %137 : vector<72x1xf32> to vector<72x256xf32>
    %139 = arith.mulf %138, %136 : vector<72x256xf32>
    %140 = arith.addf %132, %139 : vector<72x256xf32>
    %c241_i32_50 = arith.constant 241 : i32
    %141 = tpu.dynamic_rotate %95 by %c241_i32_50 dim 1 : vector<72x256xf32>, i32 -> vector<72x256xf32>
    %c6_51 = arith.constant 6 : index
    %c0_52 = arith.constant 0 : index
    %142 = vector.load %arg3[%c6_51, %c0_52] : memref<9x256xf32, #tpu.memory_space<vmem>>, vector<1x256xf32>
    %143 = vector.broadcast %142 : vector<1x256xf32> to vector<72x256xf32>
    %144 = arith.mulf %141, %143 : vector<72x256xf32>
    %145 = vector.extract_strided_slice %97 {offsets = [0, 6], sizes = [72, 1], strides = [1, 1]} : vector<72x9xf32> to vector<72x1xf32>
    %146 = vector.broadcast %145 : vector<72x1xf32> to vector<72x256xf32>
    %147 = arith.mulf %146, %144 : vector<72x256xf32>
    %148 = arith.addf %140, %147 : vector<72x256xf32>
    %c240_i32_53 = arith.constant 240 : i32
    %149 = tpu.dynamic_rotate %95 by %c240_i32_53 dim 1 : vector<72x256xf32>, i32 -> vector<72x256xf32>
    %c7_54 = arith.constant 7 : index
    %c0_55 = arith.constant 0 : index
    %150 = vector.load %arg3[%c7_54, %c0_55] : memref<9x256xf32, #tpu.memory_space<vmem>>, vector<1x256xf32>
    %151 = vector.broadcast %150 : vector<1x256xf32> to vector<72x256xf32>
    %152 = arith.mulf %149, %151 : vector<72x256xf32>
    %153 = vector.extract_strided_slice %97 {offsets = [0, 7], sizes = [72, 1], strides = [1, 1]} : vector<72x9xf32> to vector<72x1xf32>
    %154 = vector.broadcast %153 : vector<72x1xf32> to vector<72x256xf32>
    %155 = arith.mulf %154, %152 : vector<72x256xf32>
    %156 = arith.addf %148, %155 : vector<72x256xf32>
    %c239_i32_56 = arith.constant 239 : i32
    %157 = tpu.dynamic_rotate %95 by %c239_i32_56 dim 1 : vector<72x256xf32>, i32 -> vector<72x256xf32>
    %c8_57 = arith.constant 8 : index
    %c0_58 = arith.constant 0 : index
    %158 = vector.load %arg3[%c8_57, %c0_58] : memref<9x256xf32, #tpu.memory_space<vmem>>, vector<1x256xf32>
    %159 = vector.broadcast %158 : vector<1x256xf32> to vector<72x256xf32>
    %160 = arith.mulf %157, %159 : vector<72x256xf32>
    %161 = vector.extract_strided_slice %97 {offsets = [0, 8], sizes = [72, 1], strides = [1, 1]} : vector<72x9xf32> to vector<72x1xf32>
    %162 = vector.broadcast %161 : vector<72x1xf32> to vector<72x256xf32>
    %163 = arith.mulf %162, %160 : vector<72x256xf32>
    %164 = arith.addf %156, %163 : vector<72x256xf32>
    %c0_59 = arith.constant 0 : index
    %c5_60 = arith.constant 5 : index
    %165 = vector.load %arg6[%c0_59, %c5_60] : memref<72x8xf32, #tpu.memory_space<vmem>>, vector<72x1xf32>
    %166 = vector.broadcast %165 : vector<72x1xf32> to vector<72x256xf32>
    %167 = arith.addf %164, %166 : vector<72x256xf32>
    %cst_61 = arith.constant 0.000000e+00 : f32
    %168 = vector.broadcast %cst_61 : f32 to vector<72x256xf32>
    %169 = arith.maximumf %167, %168 : vector<72x256xf32>
    %170 = arith.addf %84, %169 : vector<72x256xf32>
    %c0_62 = arith.constant 0 : index
    %c0_63 = arith.constant 0 : index
    %c0_64 = arith.constant 0 : index
    %171 = vector.load %arg2[%c0_62, %c0_63, %c0_64] : memref<1x72x256xf32, #tpu.memory_space<vmem>>, vector<1x72x256xf32>
    %172 = vector.shape_cast %171 : vector<1x72x256xf32> to vector<72x256xf32>
    %c0_65 = arith.constant 0 : index
    %c0_66 = arith.constant 0 : index
    %c0_67 = arith.constant 0 : index
    %173 = vector.load %arg4[%c0_65, %c0_66, %c0_67] : memref<5x72x72xbf16, #tpu.memory_space<vmem>>, vector<1x72x72xbf16>
    %174 = vector.shape_cast %173 : vector<1x72x72xbf16> to vector<72x72xbf16>
    %175 = arith.truncf %172 : vector<72x256xf32> to vector<72x256xbf16>
    %cst_68 = arith.constant dense<0.000000e+00> : vector<72x256xf32>
    %176 = tpu.matmul %174, %175, %cst_68 {dimension_numbers = #tpu.dot_dimension_numbers<[1], [0], [0], [1], [0, 0, 1, 1], [], []>} : vector<72x72xbf16>, vector<72x256xbf16>, vector<72x256xf32> -> vector<72x256xf32>
    %c0_69 = arith.constant 0 : index
    %c0_70 = arith.constant 0 : index
    %177 = vector.load %arg6[%c0_69, %c0_70] : memref<72x8xf32, #tpu.memory_space<vmem>>, vector<72x1xf32>
    %178 = vector.broadcast %177 : vector<72x1xf32> to vector<72x256xf32>
    %179 = arith.addf %176, %178 : vector<72x256xf32>
    %cst_71 = arith.constant 0.707106769 : f32
    %180 = vector.broadcast %cst_71 : f32 to vector<72x256xf32>
    %181 = arith.mulf %179, %180 : vector<72x256xf32>
    %182 = math.absf %181 : vector<72x256xf32>
    %cst_72 = arith.constant 0.327591091 : f32
    %183 = vector.broadcast %cst_72 : f32 to vector<72x256xf32>
    %184 = arith.mulf %183, %182 : vector<72x256xf32>
    %cst_73 = arith.constant 1.000000e+00 : f32
    %185 = vector.broadcast %cst_73 : f32 to vector<72x256xf32>
    %186 = arith.addf %185, %184 : vector<72x256xf32>
    %187 = tpu.reciprocal %186 {approx = true} : vector<72x256xf32> -> vector<72x256xf32>
    %cst_74 = arith.constant 1.06140542 : f32
    %188 = vector.broadcast %cst_74 : f32 to vector<72x256xf32>
    %189 = arith.mulf %187, %188 : vector<72x256xf32>
    %cst_75 = arith.constant -1.45315206 : f32
    %190 = vector.broadcast %cst_75 : f32 to vector<72x256xf32>
    %191 = arith.addf %190, %189 : vector<72x256xf32>
    %192 = arith.mulf %187, %191 : vector<72x256xf32>
    %cst_76 = arith.constant 1.42141378 : f32
    %193 = vector.broadcast %cst_76 : f32 to vector<72x256xf32>
    %194 = arith.addf %193, %192 : vector<72x256xf32>
    %195 = arith.mulf %187, %194 : vector<72x256xf32>
    %cst_77 = arith.constant -0.284496725 : f32
    %196 = vector.broadcast %cst_77 : f32 to vector<72x256xf32>
    %197 = arith.addf %196, %195 : vector<72x256xf32>
    %198 = arith.mulf %187, %197 : vector<72x256xf32>
    %cst_78 = arith.constant 0.254829586 : f32
    %199 = vector.broadcast %cst_78 : f32 to vector<72x256xf32>
    %200 = arith.addf %199, %198 : vector<72x256xf32>
    %201 = arith.mulf %187, %200 : vector<72x256xf32>
    %cst_79 = arith.constant 0.000000e+00 : f32
    %202 = vector.broadcast %cst_79 : f32 to vector<72x256xf32>
    %203 = arith.subf %202, %182 : vector<72x256xf32>
    %204 = arith.mulf %203, %182 : vector<72x256xf32>
    %205 = math.exp %204 : vector<72x256xf32>
    %206 = arith.mulf %201, %205 : vector<72x256xf32>
    %cst_80 = arith.constant 1.000000e+00 : f32
    %207 = vector.broadcast %cst_80 : f32 to vector<72x256xf32>
    %208 = arith.subf %207, %206 : vector<72x256xf32>
    %cst_81 = arith.constant 0.000000e+00 : f32
    %209 = vector.broadcast %cst_81 : f32 to vector<72x256xf32>
    %210 = arith.cmpf oge, %181, %209 : vector<72x256xf32>
    %cst_82 = arith.constant 0.000000e+00 : f32
    %211 = vector.broadcast %cst_82 : f32 to vector<72x256xf32>
    %212 = arith.subf %211, %208 : vector<72x256xf32>
    %213 = arith.select %210, %208, %212 : vector<72x256xi1>, vector<72x256xf32>
    %cst_83 = arith.constant 5.000000e-01 : f32
    %214 = vector.broadcast %cst_83 : f32 to vector<72x256xf32>
    %215 = arith.mulf %214, %179 : vector<72x256xf32>
    %cst_84 = arith.constant 1.000000e+00 : f32
    %216 = vector.broadcast %cst_84 : f32 to vector<72x256xf32>
    %217 = arith.addf %216, %213 : vector<72x256xf32>
    %218 = arith.mulf %215, %217 : vector<72x256xf32>
    %c0_85 = arith.constant 0 : index
    %c0_86 = arith.constant 0 : index
    %c0_87 = arith.constant 0 : index
    %219 = vector.load %arg5[%c0_85, %c0_86, %c0_87] : memref<3x72x9xf32, #tpu.memory_space<vmem>>, vector<1x72x9xf32>
    %220 = vector.shape_cast %219 : vector<1x72x9xf32> to vector<72x9xf32>
    %221 = vector.extract_strided_slice %220 {offsets = [0, 4], sizes = [72, 1], strides = [1, 1]} : vector<72x9xf32> to vector<72x1xf32>
    %222 = vector.broadcast %221 : vector<72x1xf32> to vector<72x256xf32>
    %223 = arith.mulf %222, %218 : vector<72x256xf32>
    %c17_i32_88 = arith.constant 17 : i32
    %224 = tpu.dynamic_rotate %218 by %c17_i32_88 dim 1 : vector<72x256xf32>, i32 -> vector<72x256xf32>
    %c0_89 = arith.constant 0 : index
    %c0_90 = arith.constant 0 : index
    %225 = vector.load %arg3[%c0_89, %c0_90] : memref<9x256xf32, #tpu.memory_space<vmem>>, vector<1x256xf32>
    %226 = vector.broadcast %225 : vector<1x256xf32> to vector<72x256xf32>
    %227 = arith.mulf %224, %226 : vector<72x256xf32>
    %228 = vector.extract_strided_slice %220 {offsets = [0, 0], sizes = [72, 1], strides = [1, 1]} : vector<72x9xf32> to vector<72x1xf32>
    %229 = vector.broadcast %228 : vector<72x1xf32> to vector<72x256xf32>
    %230 = arith.mulf %229, %227 : vector<72x256xf32>
    %231 = arith.addf %223, %230 : vector<72x256xf32>
    %c16_i32_91 = arith.constant 16 : i32
    %232 = tpu.dynamic_rotate %218 by %c16_i32_91 dim 1 : vector<72x256xf32>, i32 -> vector<72x256xf32>
    %c1_92 = arith.constant 1 : index
    %c0_93 = arith.constant 0 : index
    %233 = vector.load %arg3[%c1_92, %c0_93] : memref<9x256xf32, #tpu.memory_space<vmem>>, vector<1x256xf32>
    %234 = vector.broadcast %233 : vector<1x256xf32> to vector<72x256xf32>
    %235 = arith.mulf %232, %234 : vector<72x256xf32>
    %236 = vector.extract_strided_slice %220 {offsets = [0, 1], sizes = [72, 1], strides = [1, 1]} : vector<72x9xf32> to vector<72x1xf32>
    %237 = vector.broadcast %236 : vector<72x1xf32> to vector<72x256xf32>
    %238 = arith.mulf %237, %235 : vector<72x256xf32>
    %239 = arith.addf %231, %238 : vector<72x256xf32>
    %c15_i32_94 = arith.constant 15 : i32
    %240 = tpu.dynamic_rotate %218 by %c15_i32_94 dim 1 : vector<72x256xf32>, i32 -> vector<72x256xf32>
    %c2_95 = arith.constant 2 : index
    %c0_96 = arith.constant 0 : index
    %241 = vector.load %arg3[%c2_95, %c0_96] : memref<9x256xf32, #tpu.memory_space<vmem>>, vector<1x256xf32>
    %242 = vector.broadcast %241 : vector<1x256xf32> to vector<72x256xf32>
    %243 = arith.mulf %240, %242 : vector<72x256xf32>
    %244 = vector.extract_strided_slice %220 {offsets = [0, 2], sizes = [72, 1], strides = [1, 1]} : vector<72x9xf32> to vector<72x1xf32>
    %245 = vector.broadcast %244 : vector<72x1xf32> to vector<72x256xf32>
    %246 = arith.mulf %245, %243 : vector<72x256xf32>
    %247 = arith.addf %239, %246 : vector<72x256xf32>
    %c1_i32_97 = arith.constant 1 : i32
    %248 = tpu.dynamic_rotate %218 by %c1_i32_97 dim 1 : vector<72x256xf32>, i32 -> vector<72x256xf32>
    %c3_98 = arith.constant 3 : index
    %c0_99 = arith.constant 0 : index
    %249 = vector.load %arg3[%c3_98, %c0_99] : memref<9x256xf32, #tpu.memory_space<vmem>>, vector<1x256xf32>
    %250 = vector.broadcast %249 : vector<1x256xf32> to vector<72x256xf32>
    %251 = arith.mulf %248, %250 : vector<72x256xf32>
    %252 = vector.extract_strided_slice %220 {offsets = [0, 3], sizes = [72, 1], strides = [1, 1]} : vector<72x9xf32> to vector<72x1xf32>
    %253 = vector.broadcast %252 : vector<72x1xf32> to vector<72x256xf32>
    %254 = arith.mulf %253, %251 : vector<72x256xf32>
    %255 = arith.addf %247, %254 : vector<72x256xf32>
    %c255_i32_100 = arith.constant 255 : i32
    %256 = tpu.dynamic_rotate %218 by %c255_i32_100 dim 1 : vector<72x256xf32>, i32 -> vector<72x256xf32>
    %c5_101 = arith.constant 5 : index
    %c0_102 = arith.constant 0 : index
    %257 = vector.load %arg3[%c5_101, %c0_102] : memref<9x256xf32, #tpu.memory_space<vmem>>, vector<1x256xf32>
    %258 = vector.broadcast %257 : vector<1x256xf32> to vector<72x256xf32>
    %259 = arith.mulf %256, %258 : vector<72x256xf32>
    %260 = vector.extract_strided_slice %220 {offsets = [0, 5], sizes = [72, 1], strides = [1, 1]} : vector<72x9xf32> to vector<72x1xf32>
    %261 = vector.broadcast %260 : vector<72x1xf32> to vector<72x256xf32>
    %262 = arith.mulf %261, %259 : vector<72x256xf32>
    %263 = arith.addf %255, %262 : vector<72x256xf32>
    %c241_i32_103 = arith.constant 241 : i32
    %264 = tpu.dynamic_rotate %218 by %c241_i32_103 dim 1 : vector<72x256xf32>, i32 -> vector<72x256xf32>
    %c6_104 = arith.constant 6 : index
    %c0_105 = arith.constant 0 : index
    %265 = vector.load %arg3[%c6_104, %c0_105] : memref<9x256xf32, #tpu.memory_space<vmem>>, vector<1x256xf32>
    %266 = vector.broadcast %265 : vector<1x256xf32> to vector<72x256xf32>
    %267 = arith.mulf %264, %266 : vector<72x256xf32>
    %268 = vector.extract_strided_slice %220 {offsets = [0, 6], sizes = [72, 1], strides = [1, 1]} : vector<72x9xf32> to vector<72x1xf32>
    %269 = vector.broadcast %268 : vector<72x1xf32> to vector<72x256xf32>
    %270 = arith.mulf %269, %267 : vector<72x256xf32>
    %271 = arith.addf %263, %270 : vector<72x256xf32>
    %c240_i32_106 = arith.constant 240 : i32
    %272 = tpu.dynamic_rotate %218 by %c240_i32_106 dim 1 : vector<72x256xf32>, i32 -> vector<72x256xf32>
    %c7_107 = arith.constant 7 : index
    %c0_108 = arith.constant 0 : index
    %273 = vector.load %arg3[%c7_107, %c0_108] : memref<9x256xf32, #tpu.memory_space<vmem>>, vector<1x256xf32>
    %274 = vector.broadcast %273 : vector<1x256xf32> to vector<72x256xf32>
    %275 = arith.mulf %272, %274 : vector<72x256xf32>
    %276 = vector.extract_strided_slice %220 {offsets = [0, 7], sizes = [72, 1], strides = [1, 1]} : vector<72x9xf32> to vector<72x1xf32>
    %277 = vector.broadcast %276 : vector<72x1xf32> to vector<72x256xf32>
    %278 = arith.mulf %277, %275 : vector<72x256xf32>
    %279 = arith.addf %271, %278 : vector<72x256xf32>
    %c239_i32_109 = arith.constant 239 : i32
    %280 = tpu.dynamic_rotate %218 by %c239_i32_109 dim 1 : vector<72x256xf32>, i32 -> vector<72x256xf32>
    %c8_110 = arith.constant 8 : index
    %c0_111 = arith.constant 0 : index
    %281 = vector.load %arg3[%c8_110, %c0_111] : memref<9x256xf32, #tpu.memory_space<vmem>>, vector<1x256xf32>
    %282 = vector.broadcast %281 : vector<1x256xf32> to vector<72x256xf32>
    %283 = arith.mulf %280, %282 : vector<72x256xf32>
    %284 = vector.extract_strided_slice %220 {offsets = [0, 8], sizes = [72, 1], strides = [1, 1]} : vector<72x9xf32> to vector<72x1xf32>
    %285 = vector.broadcast %284 : vector<72x1xf32> to vector<72x256xf32>
    %286 = arith.mulf %285, %283 : vector<72x256xf32>
    %287 = arith.addf %279, %286 : vector<72x256xf32>
    %c0_112 = arith.constant 0 : index
    %c1_113 = arith.constant 1 : index
    %288 = vector.load %arg6[%c0_112, %c1_113] : memref<72x8xf32, #tpu.memory_space<vmem>>, vector<72x1xf32>
    %289 = vector.broadcast %288 : vector<72x1xf32> to vector<72x256xf32>
    %290 = arith.addf %287, %289 : vector<72x256xf32>
    %291 = arith.negf %290 : vector<72x256xf32>
    %292 = math.exp %291 : vector<72x256xf32>
    %cst_114 = arith.constant 1.000000e+00 : f32
    %293 = vector.broadcast %cst_114 : f32 to vector<72x256xf32>
    %294 = arith.addf %293, %292 : vector<72x256xf32>
    %295 = arith.divf %293, %294 : vector<72x256xf32>
    %296 = arith.mulf %170, %295 : vector<72x256xf32>
    %c3_115 = arith.constant 3 : index
    %c0_116 = arith.constant 0 : index
    %c0_117 = arith.constant 0 : index
    %297 = vector.load %arg4[%c3_115, %c0_116, %c0_117] : memref<5x72x72xbf16, #tpu.memory_space<vmem>>, vector<1x72x72xbf16>
    %298 = vector.shape_cast %297 : vector<1x72x72xbf16> to vector<72x72xbf16>
    %299 = arith.truncf %296 : vector<72x256xf32> to vector<72x256xbf16>
    %cst_118 = arith.constant dense<0.000000e+00> : vector<72x256xf32>
    %300 = tpu.matmul %298, %299, %cst_118 {dimension_numbers = #tpu.dot_dimension_numbers<[1], [0], [0], [1], [0, 0, 1, 1], [], []>} : vector<72x72xbf16>, vector<72x256xbf16>, vector<72x256xf32> -> vector<72x256xf32>
    %c0_119 = arith.constant 0 : index
    %c6_120 = arith.constant 6 : index
    %301 = vector.load %arg6[%c0_119, %c6_120] : memref<72x8xf32, #tpu.memory_space<vmem>>, vector<72x1xf32>
    %302 = vector.broadcast %301 : vector<72x1xf32> to vector<72x256xf32>
    %303 = arith.addf %300, %302 : vector<72x256xf32>
    %c4_121 = arith.constant 4 : index
    %c0_122 = arith.constant 0 : index
    %c0_123 = arith.constant 0 : index
    %304 = vector.load %arg4[%c4_121, %c0_122, %c0_123] : memref<5x72x72xbf16, #tpu.memory_space<vmem>>, vector<1x72x72xbf16>
    %305 = vector.shape_cast %304 : vector<1x72x72xbf16> to vector<72x72xbf16>
    %306 = arith.truncf %303 : vector<72x256xf32> to vector<72x256xbf16>
    %cst_124 = arith.constant dense<0.000000e+00> : vector<72x256xf32>
    %307 = tpu.matmul %305, %306, %cst_124 {dimension_numbers = #tpu.dot_dimension_numbers<[1], [0], [0], [1], [0, 0, 1, 1], [], []>} : vector<72x72xbf16>, vector<72x256xbf16>, vector<72x256xf32> -> vector<72x256xf32>
    %c0_125 = arith.constant 0 : index
    %c7_126 = arith.constant 7 : index
    %308 = vector.load %arg6[%c0_125, %c7_126] : memref<72x8xf32, #tpu.memory_space<vmem>>, vector<72x1xf32>
    %309 = vector.broadcast %308 : vector<72x1xf32> to vector<72x256xf32>
    %310 = arith.addf %307, %309 : vector<72x256xf32>
    %c0_127 = arith.constant 0 : index
    %c0_128 = arith.constant 0 : index
    %c0_129 = arith.constant 0 : index
    %311 = vector.load %arg1[%c0_127, %c0_128, %c0_129] : memref<1x72x256xf32, #tpu.memory_space<vmem>>, vector<1x72x256xf32>
    %312 = vector.shape_cast %311 : vector<1x72x256xf32> to vector<72x256xf32>
    %313 = arith.addf %310, %312 : vector<72x256xf32>
    %c0_130 = arith.constant 0 : index
    %c0_131 = arith.constant 0 : index
    %c0_132 = arith.constant 0 : index
    %314 = vector.load %arg7[%c0_130, %c0_131, %c0_132] : memref<1x72x256xf32, #tpu.memory_space<vmem>>, vector<1x72x256xf32>
    %315 = vector.shape_cast %314 : vector<1x72x256xf32> to vector<72x256xf32>
    %316 = vector.shape_cast %313 : vector<72x256xf32> to vector<1x72x256xf32>
    tpu.vector_store %arg7[%c0_130, %c0_131, %c0_132], %316 {strides = array<i32>} : memref<1x72x256xf32, #tpu.memory_space<vmem>>, vector<1x72x256xf32>,
    return
  }
  func.func @transform_0(%arg0: i32) -> (i32, i32, i32) {
    %c0_i32 = arith.constant 0 : i32
    %c0_i32_0 = arith.constant 0 : i32
    %c0_i32_1 = arith.constant 0 : i32
    return %arg0, %c0_i32, %c0_i32_0 : i32, i32, i32
  }
  func.func @transform_1(%arg0: i32) -> (i32, i32, i32) {
    %c0_i32 = arith.constant 0 : i32
    %c0_i32_0 = arith.constant 0 : i32
    %c0_i32_1 = arith.constant 0 : i32
    return %arg0, %c0_i32, %c0_i32_0 : i32, i32, i32
  }
  func.func @transform_2(%arg0: i32) -> (i32, i32) {
    %c0_i32 = arith.constant 0 : i32
    %c0_i32_0 = arith.constant 0 : i32
    %c0_i32_1 = arith.constant 0 : i32
    return %c0_i32, %c0_i32_0 : i32, i32
  }
  func.func @transform_3(%arg0: i32) -> (i32, i32, i32) {
    %c0_i32 = arith.constant 0 : i32
    %c0_i32_0 = arith.constant 0 : i32
    %c0_i32_1 = arith.constant 0 : i32
    %c0_i32_2 = arith.constant 0 : i32
    return %c0_i32, %c0_i32_0, %c0_i32_1 : i32, i32, i32
  }
  func.func @transform_4(%arg0: i32) -> (i32, i32, i32) {
    %c0_i32 = arith.constant 0 : i32
    %c0_i32_0 = arith.constant 0 : i32
    %c0_i32_1 = arith.constant 0 : i32
    %c0_i32_2 = arith.constant 0 : i32
    return %c0_i32, %c0_i32_0, %c0_i32_1 : i32, i32, i32
  }
  func.func @transform_5(%arg0: i32) -> (i32, i32) {
    %c0_i32 = arith.constant 0 : i32
    %c0_i32_0 = arith.constant 0 : i32
    %c0_i32_1 = arith.constant 0 : i32
    return %c0_i32, %c0_i32_0 : i32, i32
  }
  func.func @transform_6(%arg0: i32) -> (i32, i32, i32) {
    %c0_i32 = arith.constant 0 : i32
    %c0_i32_0 = arith.constant 0 : i32
    %c0_i32_1 = arith.constant 0 : i32
    return %arg0, %c0_i32, %c0_i32_0 : i32, i32, i32
  }
}

</mosaic_0001>

<llo_original>
// kernel: sde_module_forward.1
$region0: #{sde_module_forward.1}
  #allocation0 [shape = 'u32[]', space=smem, size = 0x4, offset = 0x4, fixed_abs, tag = 'smem constant byte address 0x4 - core index']
  #allocation1 [shape = 'u32[144,128]{1,0:T(1,128)}', space=vmem, size = 0x12000, scoped, tag = 'internal scratch']
  %s0 = inlined_call_operand.vmem [shape: f32[2,72,256], index: 0, kind: input, shape index: {}]
  %s1 = inlined_call_operand.vmem [shape: f32[2,72,256], index: 1, kind: input, shape index: {}]
  %s2 = inlined_call_operand.vmem [shape: f32[9,256], index: 2, kind: input, shape index: {}]
  %s3 = inlined_call_operand.vmem [shape: bf16[5,72,72], index: 3, kind: input, shape index: {}]
  %s4 = inlined_call_operand.vmem [shape: f32[3,72,9], index: 4, kind: input, shape index: {}]
  %s5 = inlined_call_operand.vmem [shape: f32[72,8], index: 5, kind: input, shape index: {}]
  %s6 = inlined_call_operand.vmem [shape: f32[2,72,256], index: 6, kind: output, shape index: {}]
  %s7 = sld [smem:[#allocation0]]
  $region57: #{sde_module_forward.1} parent=0
    _
  %s9 = ssub.s32 1, %s7
  %s10 = scalar_select 0, %s9, %s7
  loop: start=0, step=1, limit=4
  $region2: #{sde_module_forward.1} parent=0 // loop_pre_header
    _
  $region3: #{sde_module_forward.1} parent=0 // loop_header
    %s12 = sphi 0, %s16
    %p13 = scmp.ge.s32.totalorder %s12, 4
    %s22 = sphi 0, %s24
    %s25 = sphi 0, %s22
    %s26 = sphi 0, %s25
    %s42 = sphi 0, %s26
    %s48 = sphi 0, %s50
    %s51 = sphi 0, %s48
    %s52 = sphi 0, %s51
    %s68 = sphi 0, %s52
    %s72 = sphi 0, %s72
    %s74 = sphi 0, %s72
    %s75 = sphi 0, %s74
    %s89 = sphi 0, %s75
    %s93 = sphi 0, %s93
    %s95 = sphi 0, %s93
    %s96 = sphi 0, %s95
    %s110 = sphi 0, %s96
    %s114 = sphi 0, %s114
    %s116 = sphi 0, %s114
    %s117 = sphi 0, %s116
    %s131 = sphi 0, %s117
    %s135 = sphi 0, %s135
    %s137 = sphi 0, %s135
    %s138 = sphi 0, %s137
    %s152 = sphi 0, %s138
    %s158 = sphi 0, %s160
    %s161 = sphi 0, %s158
    %s162 = sphi 0, %s161
    %s178 = sphi 0, %s162
  $region4: #{sde_module_forward.1} parent=0 // loop_header_branch
    %15 = sbr.rel (%p13) target = $region8
  $region5: #{sde_module_forward.1} parent=0 // loop_body
    %s17 = ssub.s32 %s12, 1
    %s18 = ssub.s32 %s12, 2
    %s19 = sadd.s32 %s12, 1
    %s20 = ssub.s32 %s12, %s19
    %p21 = scmp.eq.s32.totalorder %s20, 0
    %s23 = sadd.s32 %s22, 1
    %s24 = scalar_select %p21, %s22, %s23
    %p27 = pneg %p21
    %p28 = scmp.eq.s32.totalorder %s12, 1
    %p29 = por %p27, %p28
    %p30 = scmp.ne.s32.totalorder %s22, %s25
    %p31 = scmp.eq.s32.totalorder %s12, 0
    %p32 = por %p30, %p31
    %p33 = scmp.ne.s32.totalorder %s22, %s25
    %p34 = scmp.eq.s32.totalorder %s17, 1
    %p35 = por %p33, %p34
    %p36 = scmp.ne.s32.totalorder %s25, %s26
    %p37 = scmp.eq.s32.totalorder %s17, 0
    %p38 = por %p36, %p37
    %p39 = scmp.ne.s32.totalorder %s25, %s26
    %p40 = scmp.eq.s32.totalorder %s18, 1
    %p41 = por %p39, %p40
    %p43 = scmp.ne.s32.totalorder %s26, %s42
    %p44 = scmp.eq.s32.totalorder %s18, 0
    %p45 = por %p43, %p44
    %s46 = ssub.s32 %s12, %s19
    %p47 = scmp.eq.s32.totalorder %s46, 0
    %s49 = sadd.s32 %s48, 1
    %s50 = scalar_select %p47, %s48, %s49
    %p53 = pneg %p47
    %p54 = scmp.eq.s32.totalorder %s12, 1
    %p55 = por %p53, %p54
    %p56 = scmp.ne.s32.totalorder %s48, %s51
    %p57 = scmp.eq.s32.totalorder %s12, 0
    %p58 = por %p56, %p57
    %p59 = scmp.ne.s32.totalorder %s48, %s51
    %p60 = scmp.eq.s32.totalorder %s17, 1
    %p61 = por %p59, %p60
    %p62 = scmp.ne.s32.totalorder %s51, %s52
    %p63 = scmp.eq.s32.totalorder %s17, 0
    %p64 = por %p62, %p63
    %p65 = scmp.ne.s32.totalorder %s51, %s52
    %p66 = scmp.eq.s32.totalorder %s18, 1
    %p67 = por %p65, %p66
    %p69 = scmp.ne.s32.totalorder %s52, %s68
    %p70 = scmp.eq.s32.totalorder %s18, 0
    %p71 = por %p69, %p70
    %s73 = sadd.s32 %s72, 1
    %p76 = scmp.eq.s32.totalorder %s12, 1
    %p77 = scmp.ne.s32.totalorder %s72, %s74
    %p78 = scmp.eq.s32.totalorder %s12, 0
    %p79 = por %p77, %p78
    %p80 = scmp.ne.s32.totalorder %s72, %s74
    %p81 = scmp.eq.s32.totalorder %s17, 1
    %p82 = por %p80, %p81
    %p83 = scmp.ne.s32.totalorder %s74, %s75
    %p84 = scmp.eq.s32.totalorder %s17, 0
    %p85 = por %p83, %p84
    %p86 = scmp.ne.s32.totalorder %s74, %s75
    %p87 = scmp.eq.s32.totalorder %s18, 1
    %p88 = por %p86, %p87
    %p90 = scmp.ne.s32.totalorder %s75, %s89
    %p91 = scmp.eq.s32.totalorder %s18, 0
    %p92 = por %p90, %p91
    %s94 = sadd.s32 %s93, 1
    %p97 = scmp.eq.s32.totalorder %s12, 1
    %p98 = scmp.ne.s32.totalorder %s93, %s95
    %p99 = scmp.eq.s32.totalorder %s12, 0
    %p100 = por %p98, %p99
    %p101 = scmp.ne.s32.totalorder %s93, %s95
    %p102 = scmp.eq.s32.totalorder %s17, 1
    %p103 = por %p101, %p102
    %p104 = scmp.ne.s32.totalorder %s95, %s96
    %p105 = scmp.eq.s32.totalorder %s17, 0
    %p106 = por %p104, %p105
    %p107 = scmp.ne.s32.totalorder %s95, %s96
    %p108 = scmp.eq.s32.totalorder %s18, 1
    %p109 = por %p107, %p108
    %p111 = scmp.ne.s32.totalorder %s96, %s110
    %p112 = scmp.eq.s32.totalorder %s18, 0
    %p113 = por %p111, %p112
    %s115 = sadd.s32 %s114, 1
    %p118 = scmp.eq.s32.totalorder %s12, 1
    %p119 = scmp.ne.s32.totalorder %s114, %s116
    %p120 = scmp.eq.s32.totalorder %s12, 0
    %p121 = por %p119, %p120
    %p122 = scmp.ne.s32.totalorder %s114, %s116
    %p123 = scmp.eq.s32.totalorder %s17, 1
    %p124 = por %p122, %p123
    %p125 = scmp.ne.s32.totalorder %s116, %s117
    %p126 = scmp.eq.s32.totalorder %s17, 0
    %p127 = por %p125, %p126
    %p128 = scmp.ne.s32.totalorder %s116, %s117
    %p129 = scmp.eq.s32.totalorder %s18, 1
    %p130 = por %p128, %p129
    %p132 = scmp.ne.s32.totalorder %s117, %s131
    %p133 = scmp.eq.s32.totalorder %s18, 0
    %p134 = por %p132, %p133
    %s136 = sadd.s32 %s135, 1
    %p139 = scmp.eq.s32.totalorder %s12, 1
    %p140 = scmp.ne.s32.totalorder %s135, %s137
    %p141 = scmp.eq.s32.totalorder %s12, 0
    %p142 = por %p140, %p141
    %p143 = scmp.ne.s32.totalorder %s135, %s137
    %p144 = scmp.eq.s32.totalorder %s17, 1
    %p145 = por %p143, %p144
    %p146 = scmp.ne.s32.totalorder %s137, %s138
    %p147 = scmp.eq.s32.totalorder %s17, 0
    %p148 = por %p146, %p147
    %p149 = scmp.ne.s32.totalorder %s137, %s138
    %p150 = scmp.eq.s32.totalorder %s18, 1
    %p151 = por %p149, %p150
    %p153 = scmp.ne.s32.totalorder %s138, %s152
    %p154 = scmp.eq.s32.totalorder %s18, 0
    %p155 = por %p153, %p154
    %s156 = ssub.s32 %s12, %s19
    %p157 = scmp.eq.s32.totalorder %s156, 0
    %s159 = sadd.s32 %s158, 1
    %s160 = scalar_select %p157, %s158, %s159
    %p163 = pneg %p157
    %p164 = scmp.eq.s32.totalorder %s12, 1
    %p165 = por %p163, %p164
    %p166 = scmp.ne.s32.totalorder %s158, %s161
    %p167 = scmp.eq.s32.totalorder %s12, 0
    %p168 = por %p166, %p167
    %p169 = scmp.ne.s32.totalorder %s158, %s161
    %p170 = scmp.eq.s32.totalorder %s17, 1
    %p171 = por %p169, %p170
    %p172 = scmp.ne.s32.totalorder %s161, %s162
    %p173 = scmp.eq.s32.totalorder %s17, 0
    %p174 = por %p172, %p173
    %p175 = scmp.ne.s32.totalorder %s161, %s162
    %p176 = scmp.eq.s32.totalorder %s18, 1
    %p177 = por %p175, %p176
    %p179 = scmp.ne.s32.totalorder %s162, %s178
    %p180 = scmp.eq.s32.totalorder %s18, 0
    %p181 = por %p179, %p180
    %p182 = scmp.le.s32.totalorder 1, %s12
    %p183 = scmp.lt.s32.totalorder %s12, 3
    %p184 = pnand %p182, %p183
    %p185 = pneg %p184
    // Predicated region
    $region9: #{sde_module_forward.1} parent=5 // pred_check
      _
    $region10: #{sde_module_forward.1} parent=5 // pred_check_branch
      %187 = sbr.rel (%p184) target = $region12
    $region11: #{sde_module_forward.1} parent=5 // pred_region
      %s188 = ssub.s32 %s12, 1
      // Predicated region
      $region13: #{sde_module_forward.1} parent=11 // pred_check
        %p189 = pneg %p85
      $region14: #{sde_module_forward.1} parent=11 // pred_check_branch
        %191 = sbr.rel (%p189) target = $region16
      $region15: #{sde_module_forward.1} parent=11 // pred_region
        _
      $region16: #{sde_module_forward.1} parent=11 // pred_fallthru
        _
      // Predicated region
      $region17: #{sde_module_forward.1} parent=11 // pred_check
        %p192 = pneg %p106
      $region18: #{sde_module_forward.1} parent=11 // pred_check_branch
        %194 = sbr.rel (%p192) target = $region20
      $region19: #{sde_module_forward.1} parent=11 // pred_region
        _
      $region20: #{sde_module_forward.1} parent=11 // pred_fallthru
        _
      // Predicated region
      $region21: #{sde_module_forward.1} parent=11 // pred_check
        %p195 = pneg %p127
      $region22: #{sde_module_forward.1} parent=11 // pred_check_branch
        %197 = sbr.rel (%p195) target = $region24
      $region23: #{sde_module_forward.1} parent=11 // pred_region
        _
      $region24: #{sde_module_forward.1} parent=11 // pred_fallthru
        _
      // Predicated region
      $region25: #{sde_module_forward.1} parent=11 // pred_check
        %p198 = pneg %p148
      $region26: #{sde_module_forward.1} parent=11 // pred_check_branch
        %200 = sbr.rel (%p198) target = $region28
      $region27: #{sde_module_forward.1} parent=11 // pred_region
        _
      $region28: #{sde_module_forward.1} parent=11 // pred_fallthru
        _
    $region12: #{sde_module_forward.1} parent=5 // pred_fallthru
      _
    %p201 = scmp.lt.s32.totalorder %s12, 2
    // Predicated region
    $region29: #{sde_module_forward.1} parent=5 // pred_check
      %p202 = pneg %p201
    $region30: #{sde_module_forward.1} parent=5 // pred_check_branch
      %204 = sbr.rel (%p202) target = $region32
    $region31: #{sde_module_forward.1} parent=5 // pred_region
      // Predicated region
      $region33: #{sde_module_forward.1} parent=31 // pred_check
        %p205 = pneg %p32
      $region34: #{sde_module_forward.1} parent=31 // pred_check_branch
        %207 = sbr.rel (%p205) target = $region36
      $region35: #{sde_module_forward.1} parent=31 // pred_region
        %p208 = scmp.lt.s32.totalorder %s12, 1
        %s209 = scalar_select %p208, %s12, 1
        %s210 = smul.addr %s209, 18
        %s211 = smul.addr %s210, 8
        %s212 = scalar_lea.vmem %s0, %s211
      $region36: #{sde_module_forward.1} parent=31 // pred_fallthru
        _
      // Predicated region
      $region37: #{sde_module_forward.1} parent=31 // pred_check
        %p213 = pneg %p58
      $region38: #{sde_module_forward.1} parent=31 // pred_check_branch
        %215 = sbr.rel (%p213) target = $region40
      $region39: #{sde_module_forward.1} parent=31 // pred_region
        %p216 = scmp.lt.s32.totalorder %s12, 1
        %s217 = scalar_select %p216, %s12, 1
        %s218 = smul.addr %s217, 18
        %s219 = smul.addr %s218, 8
        %s220 = scalar_lea.vmem %s1, %s219
      $region40: #{sde_module_forward.1} parent=31 // pred_fallthru
        _
    $region32: #{sde_module_forward.1} parent=5 // pred_fallthru
      _
    %p221 = scmp.le.s32.totalorder 1, %s12
    %p222 = scmp.lt.s32.totalorder %s12, 3
    %p223 = pnand %p221, %p222
    %p224 = pneg %p223
    // Predicated region
    $region41: #{sde_module_forward.1} parent=5 // pred_check
      _
    $region42: #{sde_module_forward.1} parent=5 // pred_check_branch
      %226 = sbr.rel (%p223) target = $region44
    $region43: #{sde_module_forward.1} parent=5 // pred_region
      %s227 = ssub.s32 %s12, 1
      %p228 = scmp.lt.s32.totalorder %s17, 1
      %s229 = scalar_select %p228, %s17, 1
      %s230 = smul.addr %s229, 18
      %s231 = smul.addr %s230, 8
      %s232 = scalar_lea.vmem %s0, %s231
      %p233 = pneg %p38
      %p234 = pneg %p35
      %p235 = scmp.lt.s32.totalorder %s17, 1
      %s236 = scalar_select %p235, %s17, 1
      %s237 = smul.addr %s236, 18
      %s238 = smul.addr %s237, 8
      %s239 = scalar_lea.vmem %s1, %s238
      %p240 = pneg %p64
      %p241 = pneg %p61
      %p242 = pneg %p85
      %p243 = pneg %p82
      %p244 = pneg %p106
      %p245 = pneg %p103
      %p246 = pneg %p127
      %p247 = pneg %p124
      %p248 = pneg %p148
      %p249 = pneg %p145
      %p250 = pneg %p174
      %p251 = pneg %p171
      %p252 = scmp.lt.s32.totalorder %s17, 1
      %s253 = scalar_select %p252, %s17, 1
      %s254 = smul.addr %s253, 18
      %s255 = smul.addr %s254, 8
      %s256 = scalar_lea.vmem %s6, %s255
      %p257 = scmp.lt.s32.totalorder %s17, 1
      %s258 = scalar_select %p257, %s17, 1
      %s259 = smul.addr %s258, 18
      %s260 = smul.addr %s259, 8
      %s261 = scalar_lea.vmem %s0, %s260
      %p262 = scmp.lt.s32.totalorder %s17, 1
      %s263 = scalar_select %p262, %s17, 1
      %s264 = smul.addr %s263, 18
      %s265 = smul.addr %s264, 8
      %s266 = scalar_lea.vmem %s1, %s265
      %p267 = scmp.lt.s32.totalorder %s17, 1
      %s268 = scalar_select %p267, %s17, 1
      %s269 = smul.addr %s268, 18
      %s270 = smul.addr %s269, 8
      %s271 = scalar_lea.vmem %s6, %s270
      %v273 = vld [vmem:[%s261] sm:$0xff]
      %v274 = vld [vmem:[%s261 + $0x8] sm:$0xff]
      %v275 = vld [vmem:[%s261 + $0x10] sm:$0xff]
      %v276 = vld [vmem:[%s261 + $0x18] sm:$0xff]
      %v277 = vld [vmem:[%s261 + $0x20] sm:$0xff]
      %v278 = vld [vmem:[%s261 + $0x28] sm:$0xff]
      %v279 = vld [vmem:[%s261 + $0x30] sm:$0xff]
      %v280 = vld [vmem:[%s261 + $0x38] sm:$0xff]
      %v281 = vld [vmem:[%s261 + $0x40] sm:$0xff]
      %v282 = vld [vmem:[%s261 + $0x48] sm:$0xff]
      %v283 = vld [vmem:[%s261 + $0x50] sm:$0xff]
      %v284 = vld [vmem:[%s261 + $0x58] sm:$0xff]
      %v285 = vld [vmem:[%s261 + $0x60] sm:$0xff]
      %v286 = vld [vmem:[%s261 + $0x68] sm:$0xff]
      %v287 = vld [vmem:[%s261 + $0x70] sm:$0xff]
      %v288 = vld [vmem:[%s261 + $0x78] sm:$0xff]
      %v289 = vld [vmem:[%s261 + $0x80] sm:$0xff]
      %v290 = vld [vmem:[%s261 + $0x88] sm:$0xff]
      %s291 = scalar_lea.vmem %s3, 36
      %v292 = vld [vmem:[%s291] sm:$0xf]
      %v293 = vld [vmem:[%s291 + $0x4] sm:$0xf]
      %v294 = vld [vmem:[%s291 + $0x8] sm:$0xf]
      %v295 = vld [vmem:[%s291 + $0xc] sm:$0xf]
      %v296 = vld [vmem:[%s291 + $0x10] sm:$0xf]
      %v297 = vld [vmem:[%s291 + $0x14] sm:$0xf]
      %v298 = vld [vmem:[%s291 + $0x18] sm:$0xf]
      %v299 = vld [vmem:[%s291 + $0x1c] sm:$0xf]
      %v300 = vld [vmem:[%s291 + $0x20] sm:$0xf]
      %v301 = vpack.c.bf16 %v275, %v273
      %v302 = vpack.c.bf16 %v276, %v274
      %v303 = vpack.c.bf16 %v279, %v277
      %v304 = vpack.c.bf16 %v280, %v278
      %v305 = vpack.c.bf16 %v283, %v281
      %v306 = vpack.c.bf16 %v284, %v282
      %v307 = vpack.c.bf16 %v287, %v285
      %v308 = vpack.c.bf16 %v288, %v286
      %v309 = vpack.c.bf16 %v289, %v289
      %v310 = vpack.c.bf16 %v290, %v290
      %v311 = vld [vmem:[%s5] sm:$0xff]
      %v312 = vld [vmem:[%s5 + $0x8] sm:$0xff]
      %v313 = vld [vmem:[%s5 + $0x10] sm:$0xff]
      %v314 = vld [vmem:[%s5 + $0x18] sm:$0xff]
      %v315 = vld [vmem:[%s5 + $0x20] sm:$0xff]
      %v316 = vld [vmem:[%s5 + $0x28] sm:$0xff]
      %v317 = vld [vmem:[%s5 + $0x30] sm:$0xff]
      %v318 = vld [vmem:[%s5 + $0x38] sm:$0xff]
      %v319 = vld [vmem:[%s5 + $0x40] sm:$0xff]
      %321 = vset.pattern.permute.xlu0 2
      %322 = vperm.xlu0 %321, %v311
      %v323 = vpop.permute.xlu0 %322
      %326 = vset.pattern.permute.xlu0 2
      %327 = vperm.xlu0 %326, %v312
      %v328 = vpop.permute.xlu0 %327
      %331 = vset.pattern.permute.xlu0 2
      %332 = vperm.xlu0 %331, %v313
      %v333 = vpop.permute.xlu0 %332
      %336 = vset.pattern.permute.xlu0 2
      %337 = vperm.xlu0 %336, %v314
      %v338 = vpop.permute.xlu0 %337
      %341 = vset.pattern.permute.xlu0 2
      %342 = vperm.xlu0 %341, %v315
      %v343 = vpop.permute.xlu0 %342
      %346 = vset.pattern.permute.xlu0 2
      %347 = vperm.xlu0 %346, %v316
      %v348 = vpop.permute.xlu0 %347
      %351 = vset.pattern.permute.xlu0 2
      %352 = vperm.xlu0 %351, %v317
      %v353 = vpop.permute.xlu0 %352
      %356 = vset.pattern.permute.xlu0 2
      %357 = vperm.xlu0 %356, %v318
      %v358 = vpop.permute.xlu0 %357
      %361 = vset.pattern.permute.xlu0 2
      %362 = vperm.xlu0 %361, %v319
      %v363 = vpop.permute.xlu0 %362
      %v374 = vunpack.c.l.b16 %v292
      %v375 = vunpack.c.l.b16 %v293
      %v376 = vunpack.c.l.b16 %v294
      %v377 = vunpack.c.l.b16 %v295
      %v378 = vunpack.c.l.b16 %v296
      %v379 = vunpack.c.l.b16 %v297
      %v380 = vunpack.c.l.b16 %v298
      %v381 = vunpack.c.l.b16 %v299
      %v382 = vunpack.c.l.b16 %v300
      %v383 = vpack.c.b16 %v375, %v374
      %v384 = vpack.c.b16 %v377, %v376
      %v385 = vpack.c.b16 %v379, %v378
      %v386 = vpack.c.b16 %v381, %v380
      %v387 = vpack.c.b16 %v382, %v382
      %vm388 = vcmask 588800
      %v390 = vsel %vm388, %v383, 0
      %v393 = vsel %vm388, %v384, 0
      %v396 = vsel %vm388, %v385, 0
      %v399 = vsel %vm388, %v386, 0
      %v402 = vsel %vm388, %v387, 0
      %vm404 = vcmask 1043456
      %v406 = vsel %vm404, %v309, 0
      %v409 = vsel %vm404, %v310, 0
      %411 = vmatprep.subr.bf16.mxu0 %v302
      %412 = vmatpush1.bf16.msra.mxu0 %v301
      %413 = vmatprep.subr.bf16.mxu0 %v304
      %414 = vmatpush1.bf16.msra.mxu0 %v303
      %415 = vmatprep.subr.bf16.mxu0 %v306
      %416 = vmatpush1.bf16.msra.mxu0 %v305
      %417 = vmatprep.subr.bf16.mxu0 %v308
      %418 = vmatpush1.bf16.msra.mxu0 %v307
      %419 = vmatprep.subr.bf16.mxu0 %v409
      %420 = vmatpush1.bf16.msra.mxu0 %v406
      %421 = vmatprep.subr.bf16.mxu0 0
      %422 = vmatpush1.bf16.msra.mxu0 0
      %423 = vmatprep.subr.bf16.mxu0 0
      %424 = vmatpush1.bf16.msra.mxu0 0
      %425 = vmatprep.subr.bf16.mxu0 0
      %426 = vmatpush1.bf16.msra.mxu0 0
      %427 = vmatprep.subr.bf16.mxu0 0
      %428 = vmatpush1.bf16.msra.mxu0 0
      %429 = vmatprep.subr.bf16.mxu0 0
      %430 = vmatpush1.bf16.msra.mxu0 0
      %431 = vmatprep.subr.bf16.mxu0 0
      %432 = vmatpush1.bf16.msra.mxu0 0
      %433 = vmatprep.subr.bf16.mxu0 0
      %434 = vmatpush1.bf16.msra.mxu0 0
      %435 = vmatprep.subr.bf16.mxu0 0
      %436 = vmatpush1.bf16.msra.mxu0 0
      %437 = vmatprep.subr.bf16.mxu0 0
      %438 = vmatpush1.bf16.msra.mxu0 0
      %439 = vmatprep.subr.bf16.mxu0 0
      %440 = vmatpush1.bf16.msra.mxu0 0
      %441 = vmatprep.subr.bf16.mxu0 0
      %442 = vmatpush1.bf16.msra.mxu0 0
      %443 = vmatprep.mubr.bf16.mxu0 0
      %444 = vmatmul.mubr.bf16.gmra.mrb[0].mxu0 %v390
      %v445 = vpop.f32.mrb[0].mxu0
      %v446 = vadd.f32 %v323, %v445
      %v447 = vpop.f32.mrb[0].mxu0
      %v448 = vadd.f32 %v323, %v447
      %v449 = vpop.f32.mrb[0].mxu0
      %v450 = vadd.f32 %v328, %v449
      %v451 = vpop.f32.mrb[0].mxu0
      %v452 = vadd.f32 %v328, %v451
      %453 = vmatprep.mubr.bf16.mxu0 0
      %454 = vmatmul.mubr.bf16.gmra.mrb[0].mxu0 %v393
      %v455 = vpop.f32.mrb[0].mxu0
      %v456 = vadd.f32 %v333, %v455
      %v457 = vpop.f32.mrb[0].mxu0
      %v458 = vadd.f32 %v333, %v457
      %v459 = vpop.f32.mrb[0].mxu0
      %v460 = vadd.f32 %v338, %v459
      %v461 = vpop.f32.mrb[0].mxu0
      %v462 = vadd.f32 %v338, %v461
      %463 = vmatprep.mubr.bf16.mxu0 0
      %464 = vmatmul.mubr.bf16.gmra.mrb[0].mxu0 %v396
      %v465 = vpop.f32.mrb[0].mxu0
      %v466 = vadd.f32 %v343, %v465
      %v467 = vpop.f32.mrb[0].mxu0
      %v468 = vadd.f32 %v343, %v467
      %v469 = vpop.f32.mrb[0].mxu0
      %v470 = vadd.f32 %v348, %v469
      %v471 = vpop.f32.mrb[0].mxu0
      %v472 = vadd.f32 %v348, %v471
      %473 = vmatprep.mubr.bf16.mxu0 0
      %474 = vmatmul.mubr.bf16.gmra.mrb[0].mxu0 %v399
      %v475 = vpop.f32.mrb[0].mxu0
      %v476 = vadd.f32 %v353, %v475
      %v477 = vpop.f32.mrb[0].mxu0
      %v478 = vadd.f32 %v353, %v477
      %v479 = vpop.f32.mrb[0].mxu0
      %v480 = vadd.f32 %v358, %v479
      %v481 = vpop.f32.mrb[0].mxu0
      %v482 = vadd.f32 %v358, %v481
      %483 = vmatprep.mubr.bf16.mxu0 0
      %484 = vmatmul.mubr.bf16.gmra.mrb[0].mxu0 %v402
      %v485 = vpop.f32.mrb[0].mxu0
      %v486 = vadd.f32 %v363, %v485
      %v487 = vpop.f32.mrb[0].mxu0
      %v488 = vadd.f32 %v363, %v487
      %v489 = vpop.f32.mrb[0].mxu0
      %v490 = vpop.f32.mrb[0].mxu0
      %491 = vdwg.mxu0
      %v492 = vmax.f32 %v446, 0.0
      %v493 = vmax.f32 %v448, 0.0
      %v494 = vmax.f32 %v450, 0.0
      %v495 = vmax.f32 %v452, 0.0
      %v496 = vmax.f32 %v456, 0.0
      %v497 = vmax.f32 %v458, 0.0
      %v498 = vmax.f32 %v460, 0.0
      %v499 = vmax.f32 %v462, 0.0
      %v500 = vmax.f32 %v466, 0.0
      %v501 = vmax.f32 %v468, 0.0
      %v502 = vmax.f32 %v470, 0.0
      %v503 = vmax.f32 %v472, 0.0
      %v504 = vmax.f32 %v476, 0.0
      %v505 = vmax.f32 %v478, 0.0
      %v506 = vmax.f32 %v480, 0.0
      %v507 = vmax.f32 %v482, 0.0
      %v508 = vmax.f32 %v486, 0.0
      %v509 = vmax.f32 %v488, 0.0
      %s510 = scalar_lea.vmem %s4, 72
      %v511 = vld [vmem:[%s510] sm:$0xff]
      %v512 = vld [vmem:[%s510 + $0x8] sm:$0xff]
      %v513 = vld [vmem:[%s510 + $0x10] sm:$0xff]
      %v514 = vld [vmem:[%s510 + $0x18] sm:$0xff]
      %v515 = vld [vmem:[%s510 + $0x20] sm:$0xff]
      %v516 = vld [vmem:[%s510 + $0x28] sm:$0xff]
      %v517 = vld [vmem:[%s510 + $0x30] sm:$0xff]
      %v518 = vld [vmem:[%s510 + $0x38] sm:$0xff]
      %v519 = vld [vmem:[%s510 + $0x40] sm:$0xff]
      %521 = vset.pattern.permute.xlu0 4
      %522 = vperm.xlu0 %521, %v511
      %v523 = vpop.permute.xlu0 %522
      %526 = vset.pattern.permute.xlu0 4
      %527 = vperm.xlu0 %526, %v512
      %v528 = vpop.permute.xlu0 %527
      %531 = vset.pattern.permute.xlu0 4
      %532 = vperm.xlu0 %531, %v513
      %v533 = vpop.permute.xlu0 %532
      %536 = vset.pattern.permute.xlu0 4
      %537 = vperm.xlu0 %536, %v514
      %v538 = vpop.permute.xlu0 %537
      %541 = vset.pattern.permute.xlu0 4
      %542 = vperm.xlu0 %541, %v515
      %v543 = vpop.permute.xlu0 %542
      %546 = vset.pattern.permute.xlu0 4
      %547 = vperm.xlu0 %546, %v516
      %v548 = vpop.permute.xlu0 %547
      %551 = vset.pattern.permute.xlu0 4
      %552 = vperm.xlu0 %551, %v517
      %v553 = vpop.permute.xlu0 %552
      %556 = vset.pattern.permute.xlu0 4
      %557 = vperm.xlu0 %556, %v518
      %v558 = vpop.permute.xlu0 %557
      %561 = vset.pattern.permute.xlu0 4
      %562 = vperm.xlu0 %561, %v519
      %v563 = vpop.permute.xlu0 %562
      %v565 = vmul.f32 %v523, %v492
      %v566 = vmul.f32 %v523, %v493
      %v567 = vmul.f32 %v528, %v494
      %v568 = vmul.f32 %v528, %v495
      %v569 = vmul.f32 %v533, %v496
      %v570 = vmul.f32 %v533, %v497
      %v571 = vmul.f32 %v538, %v498
      %v572 = vmul.f32 %v538, %v499
      %v573 = vmul.f32 %v543, %v500
      %v574 = vmul.f32 %v543, %v501
      %v575 = vmul.f32 %v548, %v502
      %v576 = vmul.f32 %v548, %v503
      %v577 = vmul.f32 %v553, %v504
      %v578 = vmul.f32 %v553, %v505
      %v579 = vmul.f32 %v558, %v506
      %v580 = vmul.f32 %v558, %v507
      %v581 = vmul.f32 %v563, %v508
      %v582 = vmul.f32 %v563, %v509
      %583 = vrot.lane.b32.xlu0 %v492, 17
      %v584 = vpop.permute.xlu0 %583
      %585 = vrot.lane.b32.xlu0 %v494, 17
      %v586 = vpop.permute.xlu0 %585
      %587 = vrot.lane.b32.xlu0 %v496, 17
      %v588 = vpop.permute.xlu0 %587
      %589 = vrot.lane.b32.xlu0 %v498, 17
      %v590 = vpop.permute.xlu0 %589
      %591 = vrot.lane.b32.xlu0 %v500, 17
      %v592 = vpop.permute.xlu0 %591
      %593 = vrot.lane.b32.xlu0 %v502, 17
      %v594 = vpop.permute.xlu0 %593
      %595 = vrot.lane.b32.xlu0 %v504, 17
      %v596 = vpop.permute.xlu0 %595
      %597 = vrot.lane.b32.xlu0 %v506, 17
      %v598 = vpop.permute.xlu0 %597
      %599 = vrot.lane.b32.xlu0 %v508, 17
      %v600 = vpop.permute.xlu0 %599
      %601 = vrot.lane.b32.xlu0 %v493, 17
      %v602 = vpop.permute.xlu0 %601
      %603 = vrot.lane.b32.xlu0 %v495, 17
      %v604 = vpop.permute.xlu0 %603
      %605 = vrot.lane.b32.xlu0 %v497, 17
      %v606 = vpop.permute.xlu0 %605
      %607 = vrot.lane.b32.xlu0 %v499, 17
      %v608 = vpop.permute.xlu0 %607
      %609 = vrot.lane.b32.xlu0 %v501, 17
      %v610 = vpop.permute.xlu0 %609
      %611 = vrot.lane.b32.xlu0 %v503, 17
      %v612 = vpop.permute.xlu0 %611
      %613 = vrot.lane.b32.xlu0 %v505, 17
      %v614 = vpop.permute.xlu0 %613
      %615 = vrot.lane.b32.xlu0 %v507, 17
      %v616 = vpop.permute.xlu0 %615
      %617 = vrot.lane.b32.xlu0 %v509, 17
      %v618 = vpop.permute.xlu0 %617
      %v619 = vlaneseq
      %v620 = vand.u32 %v619, 127
      %vm621 = vcmp.lt.s32.totalorder %v620, 17
      %v622 = vsel %vm621, %v584, %v602
      %v623 = vsel %vm621, %v586, %v604
      %v624 = vsel %vm621, %v588, %v606
      %v625 = vsel %vm621, %v590, %v608
      %v626 = vsel %vm621, %v592, %v610
      %v627 = vsel %vm621, %v594, %v612
      %v628 = vsel %vm621, %v596, %v614
      %v629 = vsel %vm621, %v598, %v616
      %v630 = vsel %vm621, %v600, %v618
      %v631 = vsel %vm621, %v602, %v584
      %v632 = vsel %vm621, %v604, %v586
      %v633 = vsel %vm621, %v606, %v588
      %v634 = vsel %vm621, %v608, %v590
      %v635 = vsel %vm621, %v610, %v592
      %v636 = vsel %vm621, %v612, %v594
      %v637 = vsel %vm621, %v614, %v596
      %v638 = vsel %vm621, %v616, %v598
      %v639 = vsel %vm621, %v618, %v600
      %v640 = vld [vmem:[%s2] ss:$8 sm:$0x3]
      %v642 = vlaneseq
      %v643 = vshrl.u32 %v642, 7
      %v644 = vsub.s32 0, %v643
      %v645 = vrot.slane %v640, %v644
      %v646 = vlaneseq
      %v647 = vshrl.u32 %v646, 7
      %v648 = vsub.s32 1, %v647
      %v649 = vrot.slane %v640, %v648
      %v652 = vmul.f32 %v631, %v645
      %v653 = vmul.f32 %v622, %v649
      %v654 = vmul.f32 %v632, %v645
      %v655 = vmul.f32 %v623, %v649
      %v656 = vmul.f32 %v633, %v645
      %v657 = vmul.f32 %v624, %v649
      %v658 = vmul.f32 %v634, %v645
      %v659 = vmul.f32 %v625, %v649
      %v660 = vmul.f32 %v635, %v645
      %v661 = vmul.f32 %v626, %v649
      %v662 = vmul.f32 %v636, %v645
      %v663 = vmul.f32 %v627, %v649
      %v664 = vmul.f32 %v637, %v645
      %v665 = vmul.f32 %v628, %v649
      %v666 = vmul.f32 %v638, %v645
      %v667 = vmul.f32 %v629, %v649
      %v668 = vmul.f32 %v639, %v645
      %v669 = vmul.f32 %v630, %v649
      %670 = vset.pattern.permute.xlu0 0
      %671 = vperm.xlu0 %670, %v511
      %v672 = vpop.permute.xlu0 %671
      %674 = vset.pattern.permute.xlu0 0
      %675 = vperm.xlu0 %674, %v512
      %v676 = vpop.permute.xlu0 %675
      %678 = vset.pattern.permute.xlu0 0
      %679 = vperm.xlu0 %678, %v513
      %v680 = vpop.permute.xlu0 %679
      %682 = vset.pattern.permute.xlu0 0
      %683 = vperm.xlu0 %682, %v514
      %v684 = vpop.permute.xlu0 %683
      %686 = vset.pattern.permute.xlu0 0
      %687 = vperm.xlu0 %686, %v515
      %v688 = vpop.permute.xlu0 %687
      %690 = vset.pattern.permute.xlu0 0
      %691 = vperm.xlu0 %690, %v516
      %v692 = vpop.permute.xlu0 %691
      %694 = vset.pattern.permute.xlu0 0
      %695 = vperm.xlu0 %694, %v517
      %v696 = vpop.permute.xlu0 %695
      %698 = vset.pattern.permute.xlu0 0
      %699 = vperm.xlu0 %698, %v518
      %v700 = vpop.permute.xlu0 %699
      %702 = vset.pattern.permute.xlu0 0
      %703 = vperm.xlu0 %702, %v519
      %v704 = vpop.permute.xlu0 %703
      %v706 = vmul.f32 %v672, %v652
      %v707 = vmul.f32 %v672, %v653
      %v708 = vmul.f32 %v676, %v654
      %v709 = vmul.f32 %v676, %v655
      %v710 = vmul.f32 %v680, %v656
      %v711 = vmul.f32 %v680, %v657
      %v712 = vmul.f32 %v684, %v658
      %v713 = vmul.f32 %v684, %v659
      %v714 = vmul.f32 %v688, %v660
      %v715 = vmul.f32 %v688, %v661
      %v716 = vmul.f32 %v692, %v662
      %v717 = vmul.f32 %v692, %v663
      %v718 = vmul.f32 %v696, %v664
      %v719 = vmul.f32 %v696, %v665
      %v720 = vmul.f32 %v700, %v666
      %v721 = vmul.f32 %v700, %v667
      %v722 = vmul.f32 %v704, %v668
      %v723 = vmul.f32 %v704, %v669
      %v724 = vadd.f32 %v565, %v706
      %v725 = vadd.f32 %v566, %v707
      %v726 = vadd.f32 %v567, %v708
      %v727 = vadd.f32 %v568, %v709
      %v728 = vadd.f32 %v569, %v710
      %v729 = vadd.f32 %v570, %v711
      %v730 = vadd.f32 %v571, %v712
      %v731 = vadd.f32 %v572, %v713
      %v732 = vadd.f32 %v573, %v714
      %v733 = vadd.f32 %v574, %v715
      %v734 = vadd.f32 %v575, %v716
      %v735 = vadd.f32 %v576, %v717
      %v736 = vadd.f32 %v577, %v718
      %v737 = vadd.f32 %v578, %v719
      %v738 = vadd.f32 %v579, %v720
      %v739 = vadd.f32 %v580, %v721
      %v740 = vadd.f32 %v581, %v722
      %v741 = vadd.f32 %v582, %v723
      %742 = vrot.lane.b32.xlu0 %v492, 16
      %v743 = vpop.permute.xlu0 %742
      %744 = vrot.lane.b32.xlu0 %v494, 16
      %v745 = vpop.permute.xlu0 %744
      %746 = vrot.lane.b32.xlu0 %v496, 16
      %v747 = vpop.permute.xlu0 %746
      %748 = vrot.lane.b32.xlu0 %v498, 16
      %v749 = vpop.permute.xlu0 %748
      %750 = vrot.lane.b32.xlu0 %v500, 16
      %v751 = vpop.permute.xlu0 %750
      %752 = vrot.lane.b32.xlu0 %v502, 16
      %v753 = vpop.permute.xlu0 %752
      %754 = vrot.lane.b32.xlu0 %v504, 16
      %v755 = vpop.permute.xlu0 %754
      %756 = vrot.lane.b32.xlu0 %v506, 16
      %v757 = vpop.permute.xlu0 %756
      %758 = vrot.lane.b32.xlu0 %v508, 16
      %v759 = vpop.permute.xlu0 %758
      %760 = vrot.lane.b32.xlu0 %v493, 16
      %v761 = vpop.permute.xlu0 %760
      %762 = vrot.lane.b32.xlu0 %v495, 16
      %v763 = vpop.permute.xlu0 %762
      %764 = vrot.lane.b32.xlu0 %v497, 16
      %v765 = vpop.permute.xlu0 %764
      %766 = vrot.lane.b32.xlu0 %v499, 16
      %v767 = vpop.permute.xlu0 %766
      %768 = vrot.lane.b32.xlu0 %v501, 16
      %v769 = vpop.permute.xlu0 %768
      %770 = vrot.lane.b32.xlu0 %v503, 16
      %v771 = vpop.permute.xlu0 %770
      %772 = vrot.lane.b32.xlu0 %v505, 16
      %v773 = vpop.permute.xlu0 %772
      %774 = vrot.lane.b32.xlu0 %v507, 16
      %v775 = vpop.permute.xlu0 %774
      %776 = vrot.lane.b32.xlu0 %v509, 16
      %v777 = vpop.permute.xlu0 %776
      %vm778 = vcmp.lt.s32.totalorder %v620, 16
      %v779 = vsel %vm778, %v743, %v761
      %v780 = vsel %vm778, %v745, %v763
      %v781 = vsel %vm778, %v747, %v765
      %v782 = vsel %vm778, %v749, %v767
      %v783 = vsel %vm778, %v751, %v769
      %v784 = vsel %vm778, %v753, %v771
      %v785 = vsel %vm778, %v755, %v773
      %v786 = vsel %vm778, %v757, %v775
      %v787 = vsel %vm778, %v759, %v777
      %v788 = vsel %vm778, %v761, %v743
      %v789 = vsel %vm778, %v763, %v745
      %v790 = vsel %vm778, %v765, %v747
      %v791 = vsel %vm778, %v767, %v749
      %v792 = vsel %vm778, %v769, %v751
      %v793 = vsel %vm778, %v771, %v753
      %v794 = vsel %vm778, %v773, %v755
      %v795 = vsel %vm778, %v775, %v757
      %v796 = vsel %vm778, %v777, %v759
      %s797 = scalar_lea.vmem %s2, 1
      %v798 = vld [vmem:[%s797] ss:$8 sm:$0x3]
      %v800 = vlaneseq
      %v801 = vshrl.u32 %v800, 7
      %v802 = vsub.s32 0, %v801
      %v803 = vrot.slane %v798, %v802
      %v804 = vlaneseq
      %v805 = vshrl.u32 %v804, 7
      %v806 = vsub.s32 1, %v805
      %v807 = vrot.slane %v798, %v806
      %v810 = vmul.f32 %v788, %v803
      %v811 = vmul.f32 %v779, %v807
      %v812 = vmul.f32 %v789, %v803
      %v813 = vmul.f32 %v780, %v807
      %v814 = vmul.f32 %v790, %v803
      %v815 = vmul.f32 %v781, %v807
      %v816 = vmul.f32 %v791, %v803
      %v817 = vmul.f32 %v782, %v807
      %v818 = vmul.f32 %v792, %v803
      %v819 = vmul.f32 %v783, %v807
      %v820 = vmul.f32 %v793, %v803
      %v821 = vmul.f32 %v784, %v807
      %v822 = vmul.f32 %v794, %v803
      %v823 = vmul.f32 %v785, %v807
      %v824 = vmul.f32 %v795, %v803
      %v825 = vmul.f32 %v786, %v807
      %v826 = vmul.f32 %v796, %v803
      %v827 = vmul.f32 %v787, %v807
      %828 = vset.pattern.permute.xlu0 1
      %829 = vperm.xlu0 %828, %v511
      %v830 = vpop.permute.xlu0 %829
      %832 = vset.pattern.permute.xlu0 1
      %833 = vperm.xlu0 %832, %v512
      %v834 = vpop.permute.xlu0 %833
      %836 = vset.pattern.permute.xlu0 1
      %837 = vperm.xlu0 %836, %v513
      %v838 = vpop.permute.xlu0 %837
      %840 = vset.pattern.permute.xlu0 1
      %841 = vperm.xlu0 %840, %v514
      %v842 = vpop.permute.xlu0 %841
      %844 = vset.pattern.permute.xlu0 1
      %845 = vperm.xlu0 %844, %v515
      %v846 = vpop.permute.xlu0 %845
      %848 = vset.pattern.permute.xlu0 1
      %849 = vperm.xlu0 %848, %v516
      %v850 = vpop.permute.xlu0 %849
      %852 = vset.pattern.permute.xlu0 1
      %853 = vperm.xlu0 %852, %v517
      %v854 = vpop.permute.xlu0 %853
      %856 = vset.pattern.permute.xlu0 1
      %857 = vperm.xlu0 %856, %v518
      %v858 = vpop.permute.xlu0 %857
      %860 = vset.pattern.permute.xlu0 1
      %861 = vperm.xlu0 %860, %v519
      %v862 = vpop.permute.xlu0 %861
      %v864 = vmul.f32 %v830, %v810
      %v865 = vmul.f32 %v830, %v811
      %v866 = vmul.f32 %v834, %v812
      %v867 = vmul.f32 %v834, %v813
      %v868 = vmul.f32 %v838, %v814
      %v869 = vmul.f32 %v838, %v815
      %v870 = vmul.f32 %v842, %v816
      %v871 = vmul.f32 %v842, %v817
      %v872 = vmul.f32 %v846, %v818
      %v873 = vmul.f32 %v846, %v819
      %v874 = vmul.f32 %v850, %v820
      %v875 = vmul.f32 %v850, %v821
      %v876 = vmul.f32 %v854, %v822
      %v877 = vmul.f32 %v854, %v823
      %v878 = vmul.f32 %v858, %v824
      %v879 = vmul.f32 %v858, %v825
      %v880 = vmul.f32 %v862, %v826
      %v881 = vmul.f32 %v862, %v827
      %v882 = vadd.f32 %v724, %v864
      %v883 = vadd.f32 %v725, %v865
      %v884 = vadd.f32 %v726, %v866
      %v885 = vadd.f32 %v727, %v867
      %v886 = vadd.f32 %v728, %v868
      %v887 = vadd.f32 %v729, %v869
      %v888 = vadd.f32 %v730, %v870
      %v889 = vadd.f32 %v731, %v871
      %v890 = vadd.f32 %v732, %v872
      %v891 = vadd.f32 %v733, %v873
      %v892 = vadd.f32 %v734, %v874
      %v893 = vadd.f32 %v735, %v875
      %v894 = vadd.f32 %v736, %v876
      %v895 = vadd.f32 %v737, %v877
      %v896 = vadd.f32 %v738, %v878
      %v897 = vadd.f32 %v739, %v879
      %v898 = vadd.f32 %v740, %v880
      %v899 = vadd.f32 %v741, %v881
      %900 = vrot.lane.b32.xlu0 %v492, 15
      %v901 = vpop.permute.xlu0 %900
      %902 = vrot.lane.b32.xlu0 %v494, 15
      %v903 = vpop.permute.xlu0 %902
      %904 = vrot.lane.b32.xlu0 %v496, 15
      %v905 = vpop.permute.xlu0 %904
      %906 = vrot.lane.b32.xlu0 %v498, 15
      %v907 = vpop.permute.xlu0 %906
      %908 = vrot.lane.b32.xlu0 %v500, 15
      %v909 = vpop.permute.xlu0 %908
      %910 = vrot.lane.b32.xlu0 %v502, 15
      %v911 = vpop.permute.xlu0 %910
      %912 = vrot.lane.b32.xlu0 %v504, 15
      %v913 = vpop.permute.xlu0 %912
      %914 = vrot.lane.b32.xlu0 %v506, 15
      %v915 = vpop.permute.xlu0 %914
      %916 = vrot.lane.b32.xlu0 %v508, 15
      %v917 = vpop.permute.xlu0 %916
      %918 = vrot.lane.b32.xlu0 %v493, 15
      %v919 = vpop.permute.xlu0 %918
      %920 = vrot.lane.b32.xlu0 %v495, 15
      %v921 = vpop.permute.xlu0 %920
      %922 = vrot.lane.b32.xlu0 %v497, 15
      %v923 = vpop.permute.xlu0 %922
      %924 = vrot.lane.b32.xlu0 %v499, 15
      %v925 = vpop.permute.xlu0 %924
      %926 = vrot.lane.b32.xlu0 %v501, 15
      %v927 = vpop.permute.xlu0 %926
      %928 = vrot.lane.b32.xlu0 %v503, 15
      %v929 = vpop.permute.xlu0 %928
      %930 = vrot.lane.b32.xlu0 %v505, 15
      %v931 = vpop.permute.xlu0 %930
      %932 = vrot.lane.b32.xlu0 %v507, 15
      %v933 = vpop.permute.xlu0 %932
      %934 = vrot.lane.b32.xlu0 %v509, 15
      %v935 = vpop.permute.xlu0 %934
      %vm936 = vcmp.lt.s32.totalorder %v620, 15
      %v937 = vsel %vm936, %v901, %v919
      %v938 = vsel %vm936, %v903, %v921
      %v939 = vsel %vm936, %v905, %v923
      %v940 = vsel %vm936, %v907, %v925
      %v941 = vsel %vm936, %v909, %v927
      %v942 = vsel %vm936, %v911, %v929
      %v943 = vsel %vm936, %v913, %v931
      %v944 = vsel %vm936, %v915, %v933
      %v945 = vsel %vm936, %v917, %v935
      %v946 = vsel %vm936, %v919, %v901
      %v947 = vsel %vm936, %v921, %v903
      %v948 = vsel %vm936, %v923, %v905
      %v949 = vsel %vm936, %v925, %v907
      %v950 = vsel %vm936, %v927, %v909
      %v951 = vsel %vm936, %v929, %v911
      %v952 = vsel %vm936, %v931, %v913
      %v953 = vsel %vm936, %v933, %v915
      %v954 = vsel %vm936, %v935, %v917
      %s955 = scalar_lea.vmem %s2, 2
      %v956 = vld [vmem:[%s955] ss:$8 sm:$0x3]
      %v958 = vlaneseq
      %v959 = vshrl.u32 %v958, 7
      %v960 = vsub.s32 0, %v959
      %v961 = vrot.slane %v956, %v960
      %v962 = vlaneseq
      %v963 = vshrl.u32 %v962, 7
      %v964 = vsub.s32 1, %v963
      %v965 = vrot.slane %v956, %v964
      %v968 = vmul.f32 %v946, %v961
      %v969 = vmul.f32 %v937, %v965
      %v970 = vmul.f32 %v947, %v961
      %v971 = vmul.f32 %v938, %v965
      %v972 = vmul.f32 %v948, %v961
      %v973 = vmul.f32 %v939, %v965
      %v974 = vmul.f32 %v949, %v961
      %v975 = vmul.f32 %v940, %v965
      %v976 = vmul.f32 %v950, %v961
      %v977 = vmul.f32 %v941, %v965
      %v978 = vmul.f32 %v951, %v961
      %v979 = vmul.f32 %v942, %v965
      %v980 = vmul.f32 %v952, %v961
      %v981 = vmul.f32 %v943, %v965
      %v982 = vmul.f32 %v953, %v961
      %v983 = vmul.f32 %v944, %v965
      %v984 = vmul.f32 %v954, %v961
      %v985 = vmul.f32 %v945, %v965
      %986 = vset.pattern.permute.xlu0 2
      %987 = vperm.xlu0 %986, %v511
      %v988 = vpop.permute.xlu0 %987
      %990 = vset.pattern.permute.xlu0 2
      %991 = vperm.xlu0 %990, %v512
      %v992 = vpop.permute.xlu0 %991
      %994 = vset.pattern.permute.xlu0 2
      %995 = vperm.xlu0 %994, %v513
      %v996 = vpop.permute.xlu0 %995
      %998 = vset.pattern.permute.xlu0 2
      %999 = vperm.xlu0 %998, %v514
      %v1000 = vpop.permute.xlu0 %999
      %1002 = vset.pattern.permute.xlu0 2
      %1003 = vperm.xlu0 %1002, %v515
      %v1004 = vpop.permute.xlu0 %1003
      %1006 = vset.pattern.permute.xlu0 2
      %1007 = vperm.xlu0 %1006, %v516
      %v1008 = vpop.permute.xlu0 %1007
      %1010 = vset.pattern.permute.xlu0 2
      %1011 = vperm.xlu0 %1010, %v517
      %v1012 = vpop.permute.xlu0 %1011
      %1014 = vset.pattern.permute.xlu0 2
      %1015 = vperm.xlu0 %1014, %v518
      %v1016 = vpop.permute.xlu0 %1015
      %1018 = vset.pattern.permute.xlu0 2
      %1019 = vperm.xlu0 %1018, %v519
      %v1020 = vpop.permute.xlu0 %1019
      %v1022 = vmul.f32 %v988, %v968
      %v1023 = vmul.f32 %v988, %v969
      %v1024 = vmul.f32 %v992, %v970
      %v1025 = vmul.f32 %v992, %v971
      %v1026 = vmul.f32 %v996, %v972
      %v1027 = vmul.f32 %v996, %v973
      %v1028 = vmul.f32 %v1000, %v974
      %v1029 = vmul.f32 %v1000, %v975
      %v1030 = vmul.f32 %v1004, %v976
      %v1031 = vmul.f32 %v1004, %v977
      %v1032 = vmul.f32 %v1008, %v978
      %v1033 = vmul.f32 %v1008, %v979
      %v1034 = vmul.f32 %v1012, %v980
      %v1035 = vmul.f32 %v1012, %v981
      %v1036 = vmul.f32 %v1016, %v982
      %v1037 = vmul.f32 %v1016, %v983
      %v1038 = vmul.f32 %v1020, %v984
      %v1039 = vmul.f32 %v1020, %v985
      %v1040 = vadd.f32 %v882, %v1022
      %v1041 = vadd.f32 %v883, %v1023
      %v1042 = vadd.f32 %v884, %v1024
      %v1043 = vadd.f32 %v885, %v1025
      %v1044 = vadd.f32 %v886, %v1026
      %v1045 = vadd.f32 %v887, %v1027
      %v1046 = vadd.f32 %v888, %v1028
      %v1047 = vadd.f32 %v889, %v1029
      %v1048 = vadd.f32 %v890, %v1030
      %v1049 = vadd.f32 %v891, %v1031
      %v1050 = vadd.f32 %v892, %v1032
      %v1051 = vadd.f32 %v893, %v1033
      %v1052 = vadd.f32 %v894, %v1034
      %v1053 = vadd.f32 %v895, %v1035
      %v1054 = vadd.f32 %v896, %v1036
      %v1055 = vadd.f32 %v897, %v1037
      %v1056 = vadd.f32 %v898, %v1038
      %v1057 = vadd.f32 %v899, %v1039
      %1058 = vrot.lane.b32.xlu0 %v492, 1
      %v1059 = vpop.permute.xlu0 %1058
      %1060 = vrot.lane.b32.xlu0 %v494, 1
      %v1061 = vpop.permute.xlu0 %1060
      %1062 = vrot.lane.b32.xlu0 %v496, 1
      %v1063 = vpop.permute.xlu0 %1062
      %1064 = vrot.lane.b32.xlu0 %v498, 1
      %v1065 = vpop.permute.xlu0 %1064
      %1066 = vrot.lane.b32.xlu0 %v500, 1
      %v1067 = vpop.permute.xlu0 %1066
      %1068 = vrot.lane.b32.xlu0 %v502, 1
      %v1069 = vpop.permute.xlu0 %1068
      %1070 = vrot.lane.b32.xlu0 %v504, 1
      %v1071 = vpop.permute.xlu0 %1070
      %1072 = vrot.lane.b32.xlu0 %v506, 1
      %v1073 = vpop.permute.xlu0 %1072
      %1074 = vrot.lane.b32.xlu0 %v508, 1
      %v1075 = vpop.permute.xlu0 %1074
      %1076 = vrot.lane.b32.xlu0 %v493, 1
      %v1077 = vpop.permute.xlu0 %1076
      %1078 = vrot.lane.b32.xlu0 %v495, 1
      %v1079 = vpop.permute.xlu0 %1078
      %1080 = vrot.lane.b32.xlu0 %v497, 1
      %v1081 = vpop.permute.xlu0 %1080
      %1082 = vrot.lane.b32.xlu0 %v499, 1
      %v1083 = vpop.permute.xlu0 %1082
      %1084 = vrot.lane.b32.xlu0 %v501, 1
      %v1085 = vpop.permute.xlu0 %1084
      %1086 = vrot.lane.b32.xlu0 %v503, 1
      %v1087 = vpop.permute.xlu0 %1086
      %1088 = vrot.lane.b32.xlu0 %v505, 1
      %v1089 = vpop.permute.xlu0 %1088
      %1090 = vrot.lane.b32.xlu0 %v507, 1
      %v1091 = vpop.permute.xlu0 %1090
      %1092 = vrot.lane.b32.xlu0 %v509, 1
      %v1093 = vpop.permute.xlu0 %1092
      %vm1094 = vcmp.lt.s32.totalorder %v620, 1
      %v1095 = vsel %vm1094, %v1059, %v1077
      %v1096 = vsel %vm1094, %v1061, %v1079
      %v1097 = vsel %vm1094, %v1063, %v1081
      %v1098 = vsel %vm1094, %v1065, %v1083
      %v1099 = vsel %vm1094, %v1067, %v1085
      %v1100 = vsel %vm1094, %v1069, %v1087
      %v1101 = vsel %vm1094, %v1071, %v1089
      %v1102 = vsel %vm1094, %v1073, %v1091
      %v1103 = vsel %vm1094, %v1075, %v1093
      %v1104 = vsel %vm1094, %v1077, %v1059
      %v1105 = vsel %vm1094, %v1079, %v1061
      %v1106 = vsel %vm1094, %v1081, %v1063
      %v1107 = vsel %vm1094, %v1083, %v1065
      %v1108 = vsel %vm1094, %v1085, %v1067
      %v1109 = vsel %vm1094, %v1087, %v1069
      %v1110 = vsel %vm1094, %v1089, %v1071
      %v1111 = vsel %vm1094, %v1091, %v1073
      %v1112 = vsel %vm1094, %v1093, %v1075
      %s1113 = scalar_lea.vmem %s2, 3
      %v1114 = vld [vmem:[%s1113] ss:$8 sm:$0x3]
      %v1116 = vlaneseq
      %v1117 = vshrl.u32 %v1116, 7
      %v1118 = vsub.s32 0, %v1117
      %v1119 = vrot.slane %v1114, %v1118
      %v1120 = vlaneseq
      %v1121 = vshrl.u32 %v1120, 7
      %v1122 = vsub.s32 1, %v1121
      %v1123 = vrot.slane %v1114, %v1122
      %v1126 = vmul.f32 %v1104, %v1119
      %v1127 = vmul.f32 %v1095, %v1123
      %v1128 = vmul.f32 %v1105, %v1119
      %v1129 = vmul.f32 %v1096, %v1123
      %v1130 = vmul.f32 %v1106, %v1119
      %v1131 = vmul.f32 %v1097, %v1123
      %v1132 = vmul.f32 %v1107, %v1119
      %v1133 = vmul.f32 %v1098, %v1123
      %v1134 = vmul.f32 %v1108, %v1119
      %v1135 = vmul.f32 %v1099, %v1123
      %v1136 = vmul.f32 %v1109, %v1119
      %v1137 = vmul.f32 %v1100, %v1123
      %v1138 = vmul.f32 %v1110, %v1119
      %v1139 = vmul.f32 %v1101, %v1123
      %v1140 = vmul.f32 %v1111, %v1119
      %v1141 = vmul.f32 %v1102, %v1123
      %v1142 = vmul.f32 %v1112, %v1119
      %v1143 = vmul.f32 %v1103, %v1123
      %1144 = vset.pattern.permute.xlu0 3
      %1145 = vperm.xlu0 %1144, %v511
      %v1146 = vpop.permute.xlu0 %1145
      %1148 = vset.pattern.permute.xlu0 3
      %1149 = vperm.xlu0 %1148, %v512
      %v1150 = vpop.permute.xlu0 %1149
      %1152 = vset.pattern.permute.xlu0 3
      %1153 = vperm.xlu0 %1152, %v513
      %v1154 = vpop.permute.xlu0 %1153
      %1156 = vset.pattern.permute.xlu0 3
      %1157 = vperm.xlu0 %1156, %v514
      %v1158 = vpop.permute.xlu0 %1157
      %1160 = vset.pattern.permute.xlu0 3
      %1161 = vperm.xlu0 %1160, %v515
      %v1162 = vpop.permute.xlu0 %1161
      %1164 = vset.pattern.permute.xlu0 3
      %1165 = vperm.xlu0 %1164, %v516
      %v1166 = vpop.permute.xlu0 %1165
      %1168 = vset.pattern.permute.xlu0 3
      %1169 = vperm.xlu0 %1168, %v517
      %v1170 = vpop.permute.xlu0 %1169
      %1172 = vset.pattern.permute.xlu0 3
      %1173 = vperm.xlu0 %1172, %v518
      %v1174 = vpop.permute.xlu0 %1173
      %1176 = vset.pattern.permute.xlu0 3
      %1177 = vperm.xlu0 %1176, %v519
      %v1178 = vpop.permute.xlu0 %1177
      %v1180 = vmul.f32 %v1146, %v1126
      %v1181 = vmul.f32 %v1146, %v1127
      %v1182 = vmul.f32 %v1150, %v1128
      %v1183 = vmul.f32 %v1150, %v1129
      %v1184 = vmul.f32 %v1154, %v1130
      %v1185 = vmul.f32 %v1154, %v1131
      %v1186 = vmul.f32 %v1158, %v1132
      %v1187 = vmul.f32 %v1158, %v1133
      %v1188 = vmul.f32 %v1162, %v1134
      %v1189 = vmul.f32 %v1162, %v1135
      %v1190 = vmul.f32 %v1166, %v1136
      %v1191 = vmul.f32 %v1166, %v1137
      %v1192 = vmul.f32 %v1170, %v1138
      %v1193 = vmul.f32 %v1170, %v1139
      %v1194 = vmul.f32 %v1174, %v1140
      %v1195 = vmul.f32 %v1174, %v1141
      %v1196 = vmul.f32 %v1178, %v1142
      %v1197 = vmul.f32 %v1178, %v1143
      %v1198 = vadd.f32 %v1040, %v1180
      %v1199 = vadd.f32 %v1041, %v1181
      %v1200 = vadd.f32 %v1042, %v1182
      %v1201 = vadd.f32 %v1043, %v1183
      %v1202 = vadd.f32 %v1044, %v1184
      %v1203 = vadd.f32 %v1045, %v1185
      %v1204 = vadd.f32 %v1046, %v1186
      %v1205 = vadd.f32 %v1047, %v1187
      %v1206 = vadd.f32 %v1048, %v1188
      %v1207 = vadd.f32 %v1049, %v1189
      %v1208 = vadd.f32 %v1050, %v1190
      %v1209 = vadd.f32 %v1051, %v1191
      %v1210 = vadd.f32 %v1052, %v1192
      %v1211 = vadd.f32 %v1053, %v1193
      %v1212 = vadd.f32 %v1054, %v1194
      %v1213 = vadd.f32 %v1055, %v1195
      %v1214 = vadd.f32 %v1056, %v1196
      %v1215 = vadd.f32 %v1057, %v1197
      %1216 = vrot.lane.b32.xlu0 %v492, 127
      %v1217 = vpop.permute.xlu0 %1216
      %1218 = vrot.lane.b32.xlu0 %v494, 127
      %v1219 = vpop.permute.xlu0 %1218
      %1220 = vrot.lane.b32.xlu0 %v496, 127
      %v1221 = vpop.permute.xlu0 %1220
      %1222 = vrot.lane.b32.xlu0 %v498, 127
      %v1223 = vpop.permute.xlu0 %1222
      %1224 = vrot.lane.b32.xlu0 %v500, 127
      %v1225 = vpop.permute.xlu0 %1224
      %1226 = vrot.lane.b32.xlu0 %v502, 127
      %v1227 = vpop.permute.xlu0 %1226
      %1228 = vrot.lane.b32.xlu0 %v504, 127
      %v1229 = vpop.permute.xlu0 %1228
      %1230 = vrot.lane.b32.xlu0 %v506, 127
      %v1231 = vpop.permute.xlu0 %1230
      %1232 = vrot.lane.b32.xlu0 %v508, 127
      %v1233 = vpop.permute.xlu0 %1232
      %1234 = vrot.lane.b32.xlu0 %v493, 127
      %v1235 = vpop.permute.xlu0 %1234
      %1236 = vrot.lane.b32.xlu0 %v495, 127
      %v1237 = vpop.permute.xlu0 %1236
      %1238 = vrot.lane.b32.xlu0 %v497, 127
      %v1239 = vpop.permute.xlu0 %1238
      %1240 = vrot.lane.b32.xlu0 %v499, 127
      %v1241 = vpop.permute.xlu0 %1240
      %1242 = vrot.lane.b32.xlu0 %v501, 127
      %v1243 = vpop.permute.xlu0 %1242
      %1244 = vrot.lane.b32.xlu0 %v503, 127
      %v1245 = vpop.permute.xlu0 %1244
      %1246 = vrot.lane.b32.xlu0 %v505, 127
      %v1247 = vpop.permute.xlu0 %1246
      %1248 = vrot.lane.b32.xlu0 %v507, 127
      %v1249 = vpop.permute.xlu0 %1248
      %1250 = vrot.lane.b32.xlu0 %v509, 127
      %v1251 = vpop.permute.xlu0 %1250
      %vm1252 = vcmp.lt.s32.totalorder %v620, 127
      %v1253 = vsel %vm1252, %v1217, %v1235
      %v1254 = vsel %vm1252, %v1219, %v1237
      %v1255 = vsel %vm1252, %v1221, %v1239
      %v1256 = vsel %vm1252, %v1223, %v1241
      %v1257 = vsel %vm1252, %v1225, %v1243
      %v1258 = vsel %vm1252, %v1227, %v1245
      %v1259 = vsel %vm1252, %v1229, %v1247
      %v1260 = vsel %vm1252, %v1231, %v1249
      %v1261 = vsel %vm1252, %v1233, %v1251
      %v1262 = vsel %vm1252, %v1235, %v1217
      %v1263 = vsel %vm1252, %v1237, %v1219
      %v1264 = vsel %vm1252, %v1239, %v1221
      %v1265 = vsel %vm1252, %v1241, %v1223
      %v1266 = vsel %vm1252, %v1243, %v1225
      %v1267 = vsel %vm1252, %v1245, %v1227
      %v1268 = vsel %vm1252, %v1247, %v1229
      %v1269 = vsel %vm1252, %v1249, %v1231
      %v1270 = vsel %vm1252, %v1251, %v1233
      %s1271 = scalar_lea.vmem %s2, 5
      %v1272 = vld [vmem:[%s1271] ss:$8 sm:$0x3]
      %v1274 = vlaneseq
      %v1275 = vshrl.u32 %v1274, 7
      %v1276 = vsub.s32 0, %v1275
      %v1277 = vrot.slane %v1272, %v1276
      %v1278 = vlaneseq
      %v1279 = vshrl.u32 %v1278, 7
      %v1280 = vsub.s32 1, %v1279
      %v1281 = vrot.slane %v1272, %v1280
      %v1284 = vmul.f32 %v1253, %v1277
      %v1285 = vmul.f32 %v1262, %v1281
      %v1286 = vmul.f32 %v1254, %v1277
      %v1287 = vmul.f32 %v1263, %v1281
      %v1288 = vmul.f32 %v1255, %v1277
      %v1289 = vmul.f32 %v1264, %v1281
      %v1290 = vmul.f32 %v1256, %v1277
      %v1291 = vmul.f32 %v1265, %v1281
      %v1292 = vmul.f32 %v1257, %v1277
      %v1293 = vmul.f32 %v1266, %v1281
      %v1294 = vmul.f32 %v1258, %v1277
      %v1295 = vmul.f32 %v1267, %v1281
      %v1296 = vmul.f32 %v1259, %v1277
      %v1297 = vmul.f32 %v1268, %v1281
      %v1298 = vmul.f32 %v1260, %v1277
      %v1299 = vmul.f32 %v1269, %v1281
      %v1300 = vmul.f32 %v1261, %v1277
      %v1301 = vmul.f32 %v1270, %v1281
      %1302 = vset.pattern.permute.xlu0 5
      %1303 = vperm.xlu0 %1302, %v511
      %v1304 = vpop.permute.xlu0 %1303
      %1306 = vset.pattern.permute.xlu0 5
      %1307 = vperm.xlu0 %1306, %v512
      %v1308 = vpop.permute.xlu0 %1307
      %1310 = vset.pattern.permute.xlu0 5
      %1311 = vperm.xlu0 %1310, %v513
      %v1312 = vpop.permute.xlu0 %1311
      %1314 = vset.pattern.permute.xlu0 5
      %1315 = vperm.xlu0 %1314, %v514
      %v1316 = vpop.permute.xlu0 %1315
      %1318 = vset.pattern.permute.xlu0 5
      %1319 = vperm.xlu0 %1318, %v515
      %v1320 = vpop.permute.xlu0 %1319
      %1322 = vset.pattern.permute.xlu0 5
      %1323 = vperm.xlu0 %1322, %v516
      %v1324 = vpop.permute.xlu0 %1323
      %1326 = vset.pattern.permute.xlu0 5
      %1327 = vperm.xlu0 %1326, %v517
      %v1328 = vpop.permute.xlu0 %1327
      %1330 = vset.pattern.permute.xlu0 5
      %1331 = vperm.xlu0 %1330, %v518
      %v1332 = vpop.permute.xlu0 %1331
      %1334 = vset.pattern.permute.xlu0 5
      %1335 = vperm.xlu0 %1334, %v519
      %v1336 = vpop.permute.xlu0 %1335
      %v1338 = vmul.f32 %v1304, %v1284
      %v1339 = vmul.f32 %v1304, %v1285
      %v1340 = vmul.f32 %v1308, %v1286
      %v1341 = vmul.f32 %v1308, %v1287
      %v1342 = vmul.f32 %v1312, %v1288
      %v1343 = vmul.f32 %v1312, %v1289
      %v1344 = vmul.f32 %v1316, %v1290
      %v1345 = vmul.f32 %v1316, %v1291
      %v1346 = vmul.f32 %v1320, %v1292
      %v1347 = vmul.f32 %v1320, %v1293
      %v1348 = vmul.f32 %v1324, %v1294
      %v1349 = vmul.f32 %v1324, %v1295
      %v1350 = vmul.f32 %v1328, %v1296
      %v1351 = vmul.f32 %v1328, %v1297
      %v1352 = vmul.f32 %v1332, %v1298
      %v1353 = vmul.f32 %v1332, %v1299
      %v1354 = vmul.f32 %v1336, %v1300
      %v1355 = vmul.f32 %v1336, %v1301
      %v1356 = vadd.f32 %v1198, %v1338
      %v1357 = vadd.f32 %v1199, %v1339
      %v1358 = vadd.f32 %v1200, %v1340
      %v1359 = vadd.f32 %v1201, %v1341
      %v1360 = vadd.f32 %v1202, %v1342
      %v1361 = vadd.f32 %v1203, %v1343
      %v1362 = vadd.f32 %v1204, %v1344
      %v1363 = vadd.f32 %v1205, %v1345
      %v1364 = vadd.f32 %v1206, %v1346
      %v1365 = vadd.f32 %v1207, %v1347
      %v1366 = vadd.f32 %v1208, %v1348
      %v1367 = vadd.f32 %v1209, %v1349
      %v1368 = vadd.f32 %v1210, %v1350
      %v1369 = vadd.f32 %v1211, %v1351
      %v1370 = vadd.f32 %v1212, %v1352
      %v1371 = vadd.f32 %v1213, %v1353
      %v1372 = vadd.f32 %v1214, %v1354
      %v1373 = vadd.f32 %v1215, %v1355
      %1374 = vrot.lane.b32.xlu0 %v492, 113
      %v1375 = vpop.permute.xlu0 %1374
      %1376 = vrot.lane.b32.xlu0 %v494, 113
      %v1377 = vpop.permute.xlu0 %1376
      %1378 = vrot.lane.b32.xlu0 %v496, 113
      %v1379 = vpop.permute.xlu0 %1378
      %1380 = vrot.lane.b32.xlu0 %v498, 113
      %v1381 = vpop.permute.xlu0 %1380
      %1382 = vrot.lane.b32.xlu0 %v500, 113
      %v1383 = vpop.permute.xlu0 %1382
      %1384 = vrot.lane.b32.xlu0 %v502, 113
      %v1385 = vpop.permute.xlu0 %1384
      %1386 = vrot.lane.b32.xlu0 %v504, 113
      %v1387 = vpop.permute.xlu0 %1386
      %1388 = vrot.lane.b32.xlu0 %v506, 113
      %v1389 = vpop.permute.xlu0 %1388
      %1390 = vrot.lane.b32.xlu0 %v508, 113
      %v1391 = vpop.permute.xlu0 %1390
      %1392 = vrot.lane.b32.xlu0 %v493, 113
      %v1393 = vpop.permute.xlu0 %1392
      %1394 = vrot.lane.b32.xlu0 %v495, 113
      %v1395 = vpop.permute.xlu0 %1394
      %1396 = vrot.lane.b32.xlu0 %v497, 113
      %v1397 = vpop.permute.xlu0 %1396
      %1398 = vrot.lane.b32.xlu0 %v499, 113
      %v1399 = vpop.permute.xlu0 %1398
      %1400 = vrot.lane.b32.xlu0 %v501, 113
      %v1401 = vpop.permute.xlu0 %1400
      %1402 = vrot.lane.b32.xlu0 %v503, 113
      %v1403 = vpop.permute.xlu0 %1402
      %1404 = vrot.lane.b32.xlu0 %v505, 113
      %v1405 = vpop.permute.xlu0 %1404
      %1406 = vrot.lane.b32.xlu0 %v507, 113
      %v1407 = vpop.permute.xlu0 %1406
      %1408 = vrot.lane.b32.xlu0 %v509, 113
      %v1409 = vpop.permute.xlu0 %1408
      %vm1410 = vcmp.lt.s32.totalorder %v620, 113
      %v1411 = vsel %vm1410, %v1375, %v1393
      %v1412 = vsel %vm1410, %v1377, %v1395
      %v1413 = vsel %vm1410, %v1379, %v1397
      %v1414 = vsel %vm1410, %v1381, %v1399
      %v1415 = vsel %vm1410, %v1383, %v1401
      %v1416 = vsel %vm1410, %v1385, %v1403
      %v1417 = vsel %vm1410, %v1387, %v1405
      %v1418 = vsel %vm1410, %v1389, %v1407
      %v1419 = vsel %vm1410, %v1391, %v1409
      %v1420 = vsel %vm1410, %v1393, %v1375
      %v1421 = vsel %vm1410, %v1395, %v1377
      %v1422 = vsel %vm1410, %v1397, %v1379
      %v1423 = vsel %vm1410, %v1399, %v1381
      %v1424 = vsel %vm1410, %v1401, %v1383
      %v1425 = vsel %vm1410, %v1403, %v1385
      %v1426 = vsel %vm1410, %v1405, %v1387
      %v1427 = vsel %vm1410, %v1407, %v1389
      %v1428 = vsel %vm1410, %v1409, %v1391
      %s1429 = scalar_lea.vmem %s2, 6
      %v1430 = vld [vmem:[%s1429] ss:$8 sm:$0x3]
      %v1432 = vlaneseq
      %v1433 = vshrl.u32 %v1432, 7
      %v1434 = vsub.s32 0, %v1433
      %v1435 = vrot.slane %v1430, %v1434
      %v1436 = vlaneseq
      %v1437 = vshrl.u32 %v1436, 7
      %v1438 = vsub.s32 1, %v1437
      %v1439 = vrot.slane %v1430, %v1438
      %v1442 = vmul.f32 %v1411, %v1435
      %v1443 = vmul.f32 %v1420, %v1439
      %v1444 = vmul.f32 %v1412, %v1435
      %v1445 = vmul.f32 %v1421, %v1439
      %v1446 = vmul.f32 %v1413, %v1435
      %v1447 = vmul.f32 %v1422, %v1439
      %v1448 = vmul.f32 %v1414, %v1435
      %v1449 = vmul.f32 %v1423, %v1439
      %v1450 = vmul.f32 %v1415, %v1435
      %v1451 = vmul.f32 %v1424, %v1439
      %v1452 = vmul.f32 %v1416, %v1435
      %v1453 = vmul.f32 %v1425, %v1439
      %v1454 = vmul.f32 %v1417, %v1435
      %v1455 = vmul.f32 %v1426, %v1439
      %v1456 = vmul.f32 %v1418, %v1435
      %v1457 = vmul.f32 %v1427, %v1439
      %v1458 = vmul.f32 %v1419, %v1435
      %v1459 = vmul.f32 %v1428, %v1439
      %1460 = vset.pattern.permute.xlu0 6
      %1461 = vperm.xlu0 %1460, %v511
      %v1462 = vpop.permute.xlu0 %1461
      %1464 = vset.pattern.permute.xlu0 6
      %1465 = vperm.xlu0 %1464, %v512
      %v1466 = vpop.permute.xlu0 %1465
      %1468 = vset.pattern.permute.xlu0 6
      %1469 = vperm.xlu0 %1468, %v513
      %v1470 = vpop.permute.xlu0 %1469
      %1472 = vset.pattern.permute.xlu0 6
      %1473 = vperm.xlu0 %1472, %v514
      %v1474 = vpop.permute.xlu0 %1473
      %1476 = vset.pattern.permute.xlu0 6
      %1477 = vperm.xlu0 %1476, %v515
      %v1478 = vpop.permute.xlu0 %1477
      %1480 = vset.pattern.permute.xlu0 6
      %1481 = vperm.xlu0 %1480, %v516
      %v1482 = vpop.permute.xlu0 %1481
      %1484 = vset.pattern.permute.xlu0 6
      %1485 = vperm.xlu0 %1484, %v517
      %v1486 = vpop.permute.xlu0 %1485
      %1488 = vset.pattern.permute.xlu0 6
      %1489 = vperm.xlu0 %1488, %v518
      %v1490 = vpop.permute.xlu0 %1489
      %1492 = vset.pattern.permute.xlu0 6
      %1493 = vperm.xlu0 %1492, %v519
      %v1494 = vpop.permute.xlu0 %1493
      %v1496 = vmul.f32 %v1462, %v1442
      %v1497 = vmul.f32 %v1462, %v1443
      %v1498 = vmul.f32 %v1466, %v1444
      %v1499 = vmul.f32 %v1466, %v1445
      %v1500 = vmul.f32 %v1470, %v1446
      %v1501 = vmul.f32 %v1470, %v1447
      %v1502 = vmul.f32 %v1474, %v1448
      %v1503 = vmul.f32 %v1474, %v1449
      %v1504 = vmul.f32 %v1478, %v1450
      %v1505 = vmul.f32 %v1478, %v1451
      %v1506 = vmul.f32 %v1482, %v1452
      %v1507 = vmul.f32 %v1482, %v1453
      %v1508 = vmul.f32 %v1486, %v1454
      %v1509 = vmul.f32 %v1486, %v1455
      %v1510 = vmul.f32 %v1490, %v1456
      %v1511 = vmul.f32 %v1490, %v1457
      %v1512 = vmul.f32 %v1494, %v1458
      %v1513 = vmul.f32 %v1494, %v1459
      %v1514 = vadd.f32 %v1356, %v1496
      %v1515 = vadd.f32 %v1357, %v1497
      %v1516 = vadd.f32 %v1358, %v1498
      %v1517 = vadd.f32 %v1359, %v1499
      %v1518 = vadd.f32 %v1360, %v1500
      %v1519 = vadd.f32 %v1361, %v1501
      %v1520 = vadd.f32 %v1362, %v1502
      %v1521 = vadd.f32 %v1363, %v1503
      %v1522 = vadd.f32 %v1364, %v1504
      %v1523 = vadd.f32 %v1365, %v1505
      %v1524 = vadd.f32 %v1366, %v1506
      %v1525 = vadd.f32 %v1367, %v1507
      %v1526 = vadd.f32 %v1368, %v1508
      %v1527 = vadd.f32 %v1369, %v1509
      %v1528 = vadd.f32 %v1370, %v1510
      %v1529 = vadd.f32 %v1371, %v1511
      %v1530 = vadd.f32 %v1372, %v1512
      %v1531 = vadd.f32 %v1373, %v1513
      %1532 = vrot.lane.b32.xlu0 %v492, 112
      %v1533 = vpop.permute.xlu0 %1532
      %1534 = vrot.lane.b32.xlu0 %v494, 112
      %v1535 = vpop.permute.xlu0 %1534
      %1536 = vrot.lane.b32.xlu0 %v496, 112
      %v1537 = vpop.permute.xlu0 %1536
      %1538 = vrot.lane.b32.xlu0 %v498, 112
      %v1539 = vpop.permute.xlu0 %1538
      %1540 = vrot.lane.b32.xlu0 %v500, 112
      %v1541 = vpop.permute.xlu0 %1540
      %1542 = vrot.lane.b32.xlu0 %v502, 112
      %v1543 = vpop.permute.xlu0 %1542
      %1544 = vrot.lane.b32.xlu0 %v504, 112
      %v1545 = vpop.permute.xlu0 %1544
      %1546 = vrot.lane.b32.xlu0 %v506, 112
      %v1547 = vpop.permute.xlu0 %1546
      %1548 = vrot.lane.b32.xlu0 %v508, 112
      %v1549 = vpop.permute.xlu0 %1548
      %1550 = vrot.lane.b32.xlu0 %v493, 112
      %v1551 = vpop.permute.xlu0 %1550
      %1552 = vrot.lane.b32.xlu0 %v495, 112
      %v1553 = vpop.permute.xlu0 %1552
      %1554 = vrot.lane.b32.xlu0 %v497, 112
      %v1555 = vpop.permute.xlu0 %1554
      %1556 = vrot.lane.b32.xlu0 %v499, 112
      %v1557 = vpop.permute.xlu0 %1556
      %1558 = vrot.lane.b32.xlu0 %v501, 112
      %v1559 = vpop.permute.xlu0 %1558
      %1560 = vrot.lane.b32.xlu0 %v503, 112
      %v1561 = vpop.permute.xlu0 %1560
      %1562 = vrot.lane.b32.xlu0 %v505, 112
      %v1563 = vpop.permute.xlu0 %1562
      %1564 = vrot.lane.b32.xlu0 %v507, 112
      %v1565 = vpop.permute.xlu0 %1564
      %1566 = vrot.lane.b32.xlu0 %v509, 112
      %v1567 = vpop.permute.xlu0 %1566
      %vm1568 = vcmp.lt.s32.totalorder %v620, 112
      %v1569 = vsel %vm1568, %v1533, %v1551
      %v1570 = vsel %vm1568, %v1535, %v1553
      %v1571 = vsel %vm1568, %v1537, %v1555
      %v1572 = vsel %vm1568, %v1539, %v1557
      %v1573 = vsel %vm1568, %v1541, %v1559
      %v1574 = vsel %vm1568, %v1543, %v1561
      %v1575 = vsel %vm1568, %v1545, %v1563
      %v1576 = vsel %vm1568, %v1547, %v1565
      %v1577 = vsel %vm1568, %v1549, %v1567
      %v1578 = vsel %vm1568, %v1551, %v1533
      %v1579 = vsel %vm1568, %v1553, %v1535
      %v1580 = vsel %vm1568, %v1555, %v1537
      %v1581 = vsel %vm1568, %v1557, %v1539
      %v1582 = vsel %vm1568, %v1559, %v1541
      %v1583 = vsel %vm1568, %v1561, %v1543
      %v1584 = vsel %vm1568, %v1563, %v1545
      %v1585 = vsel %vm1568, %v1565, %v1547
      %v1586 = vsel %vm1568, %v1567, %v1549
      %s1587 = scalar_lea.vmem %s2, 7
      %v1588 = vld [vmem:[%s1587] ss:$8 sm:$0x3]
      %v1590 = vlaneseq
      %v1591 = vshrl.u32 %v1590, 7
      %v1592 = vsub.s32 0, %v1591
      %v1593 = vrot.slane %v1588, %v1592
      %v1594 = vlaneseq
      %v1595 = vshrl.u32 %v1594, 7
      %v1596 = vsub.s32 1, %v1595
      %v1597 = vrot.slane %v1588, %v1596
      %v1600 = vmul.f32 %v1569, %v1593
      %v1601 = vmul.f32 %v1578, %v1597
      %v1602 = vmul.f32 %v1570, %v1593
      %v1603 = vmul.f32 %v1579, %v1597
      %v1604 = vmul.f32 %v1571, %v1593
      %v1605 = vmul.f32 %v1580, %v1597
      %v1606 = vmul.f32 %v1572, %v1593
      %v1607 = vmul.f32 %v1581, %v1597
      %v1608 = vmul.f32 %v1573, %v1593
      %v1609 = vmul.f32 %v1582, %v1597
      %v1610 = vmul.f32 %v1574, %v1593
      %v1611 = vmul.f32 %v1583, %v1597
      %v1612 = vmul.f32 %v1575, %v1593
      %v1613 = vmul.f32 %v1584, %v1597
      %v1614 = vmul.f32 %v1576, %v1593
      %v1615 = vmul.f32 %v1585, %v1597
      %v1616 = vmul.f32 %v1577, %v1593
      %v1617 = vmul.f32 %v1586, %v1597
      %1618 = vset.pattern.permute.xlu0 7
      %1619 = vperm.xlu0 %1618, %v511
      %v1620 = vpop.permute.xlu0 %1619
      %1622 = vset.pattern.permute.xlu0 7
      %1623 = vperm.xlu0 %1622, %v512
      %v1624 = vpop.permute.xlu0 %1623
      %1626 = vset.pattern.permute.xlu0 7
      %1627 = vperm.xlu0 %1626, %v513
      %v1628 = vpop.permute.xlu0 %1627
      %1630 = vset.pattern.permute.xlu0 7
      %1631 = vperm.xlu0 %1630, %v514
      %v1632 = vpop.permute.xlu0 %1631
      %1634 = vset.pattern.permute.xlu0 7
      %1635 = vperm.xlu0 %1634, %v515
      %v1636 = vpop.permute.xlu0 %1635
      %1638 = vset.pattern.permute.xlu0 7
      %1639 = vperm.xlu0 %1638, %v516
      %v1640 = vpop.permute.xlu0 %1639
      %1642 = vset.pattern.permute.xlu0 7
      %1643 = vperm.xlu0 %1642, %v517
      %v1644 = vpop.permute.xlu0 %1643
      %1646 = vset.pattern.permute.xlu0 7
      %1647 = vperm.xlu0 %1646, %v518
      %v1648 = vpop.permute.xlu0 %1647
      %1650 = vset.pattern.permute.xlu0 7
      %1651 = vperm.xlu0 %1650, %v519
      %v1652 = vpop.permute.xlu0 %1651
      %v1654 = vmul.f32 %v1620, %v1600
      %v1655 = vmul.f32 %v1620, %v1601
      %v1656 = vmul.f32 %v1624, %v1602
      %v1657 = vmul.f32 %v1624, %v1603
      %v1658 = vmul.f32 %v1628, %v1604
      %v1659 = vmul.f32 %v1628, %v1605
      %v1660 = vmul.f32 %v1632, %v1606
      %v1661 = vmul.f32 %v1632, %v1607
      %v1662 = vmul.f32 %v1636, %v1608
      %v1663 = vmul.f32 %v1636, %v1609
      %v1664 = vmul.f32 %v1640, %v1610
      %v1665 = vmul.f32 %v1640, %v1611
      %v1666 = vmul.f32 %v1644, %v1612
      %v1667 = vmul.f32 %v1644, %v1613
      %v1668 = vmul.f32 %v1648, %v1614
      %v1669 = vmul.f32 %v1648, %v1615
      %v1670 = vmul.f32 %v1652, %v1616
      %v1671 = vmul.f32 %v1652, %v1617
      %v1672 = vadd.f32 %v1514, %v1654
      %v1673 = vadd.f32 %v1515, %v1655
      %v1674 = vadd.f32 %v1516, %v1656
      %v1675 = vadd.f32 %v1517, %v1657
      %v1676 = vadd.f32 %v1518, %v1658
      %v1677 = vadd.f32 %v1519, %v1659
      %v1678 = vadd.f32 %v1520, %v1660
      %v1679 = vadd.f32 %v1521, %v1661
      %v1680 = vadd.f32 %v1522, %v1662
      %v1681 = vadd.f32 %v1523, %v1663
      %v1682 = vadd.f32 %v1524, %v1664
      %v1683 = vadd.f32 %v1525, %v1665
      %v1684 = vadd.f32 %v1526, %v1666
      %v1685 = vadd.f32 %v1527, %v1667
      %v1686 = vadd.f32 %v1528, %v1668
      %v1687 = vadd.f32 %v1529, %v1669
      %v1688 = vadd.f32 %v1530, %v1670
      %v1689 = vadd.f32 %v1531, %v1671
      %1690 = vrot.lane.b32.xlu0 %v492, 111
      %v1691 = vpop.permute.xlu0 %1690
      %1692 = vrot.lane.b32.xlu0 %v494, 111
      %v1693 = vpop.permute.xlu0 %1692
      %1694 = vrot.lane.b32.xlu0 %v496, 111
      %v1695 = vpop.permute.xlu0 %1694
      %1696 = vrot.lane.b32.xlu0 %v498, 111
      %v1697 = vpop.permute.xlu0 %1696
      %1698 = vrot.lane.b32.xlu0 %v500, 111
      %v1699 = vpop.permute.xlu0 %1698
      %1700 = vrot.lane.b32.xlu0 %v502, 111
      %v1701 = vpop.permute.xlu0 %1700
      %1702 = vrot.lane.b32.xlu0 %v504, 111
      %v1703 = vpop.permute.xlu0 %1702
      %1704 = vrot.lane.b32.xlu0 %v506, 111
      %v1705 = vpop.permute.xlu0 %1704
      %1706 = vrot.lane.b32.xlu0 %v508, 111
      %v1707 = vpop.permute.xlu0 %1706
      %1708 = vrot.lane.b32.xlu0 %v493, 111
      %v1709 = vpop.permute.xlu0 %1708
      %1710 = vrot.lane.b32.xlu0 %v495, 111
      %v1711 = vpop.permute.xlu0 %1710
      %1712 = vrot.lane.b32.xlu0 %v497, 111
      %v1713 = vpop.permute.xlu0 %1712
      %1714 = vrot.lane.b32.xlu0 %v499, 111
      %v1715 = vpop.permute.xlu0 %1714
      %1716 = vrot.lane.b32.xlu0 %v501, 111
      %v1717 = vpop.permute.xlu0 %1716
      %1718 = vrot.lane.b32.xlu0 %v503, 111
      %v1719 = vpop.permute.xlu0 %1718
      %1720 = vrot.lane.b32.xlu0 %v505, 111
      %v1721 = vpop.permute.xlu0 %1720
      %1722 = vrot.lane.b32.xlu0 %v507, 111
      %v1723 = vpop.permute.xlu0 %1722
      %1724 = vrot.lane.b32.xlu0 %v509, 111
      %v1725 = vpop.permute.xlu0 %1724
      %vm1726 = vcmp.lt.s32.totalorder %v620, 111
      %v1727 = vsel %vm1726, %v1691, %v1709
      %v1728 = vsel %vm1726, %v1693, %v1711
      %v1729 = vsel %vm1726, %v1695, %v1713
      %v1730 = vsel %vm1726, %v1697, %v1715
      %v1731 = vsel %vm1726, %v1699, %v1717
      %v1732 = vsel %vm1726, %v1701, %v1719
      %v1733 = vsel %vm1726, %v1703, %v1721
      %v1734 = vsel %vm1726, %v1705, %v1723
      %v1735 = vsel %vm1726, %v1707, %v1725
      %v1736 = vsel %vm1726, %v1709, %v1691
      %v1737 = vsel %vm1726, %v1711, %v1693
      %v1738 = vsel %vm1726, %v1713, %v1695
      %v1739 = vsel %vm1726, %v1715, %v1697
      %v1740 = vsel %vm1726, %v1717, %v1699
      %v1741 = vsel %vm1726, %v1719, %v1701
      %v1742 = vsel %vm1726, %v1721, %v1703
      %v1743 = vsel %vm1726, %v1723, %v1705
      %v1744 = vsel %vm1726, %v1725, %v1707
      %s1745 = scalar_lea.vmem %s2, 16
      %v1746 = vld [vmem:[%s1745] ss:$8 sm:$0x3]
      %v1748 = vlaneseq
      %v1749 = vshrl.u32 %v1748, 7
      %v1750 = vsub.s32 0, %v1749
      %v1751 = vrot.slane %v1746, %v1750
      %v1752 = vlaneseq
      %v1753 = vshrl.u32 %v1752, 7
      %v1754 = vsub.s32 1, %v1753
      %v1755 = vrot.slane %v1746, %v1754
      %v1758 = vmul.f32 %v1727, %v1751
      %v1759 = vmul.f32 %v1736, %v1755
      %v1760 = vmul.f32 %v1728, %v1751
      %v1761 = vmul.f32 %v1737, %v1755
      %v1762 = vmul.f32 %v1729, %v1751
      %v1763 = vmul.f32 %v1738, %v1755
      %v1764 = vmul.f32 %v1730, %v1751
      %v1765 = vmul.f32 %v1739, %v1755
      %v1766 = vmul.f32 %v1731, %v1751
      %v1767 = vmul.f32 %v1740, %v1755
      %v1768 = vmul.f32 %v1732, %v1751
      %v1769 = vmul.f32 %v1741, %v1755
      %v1770 = vmul.f32 %v1733, %v1751
      %v1771 = vmul.f32 %v1742, %v1755
      %v1772 = vmul.f32 %v1734, %v1751
      %v1773 = vmul.f32 %v1743, %v1755
      %v1774 = vmul.f32 %v1735, %v1751
      %v1775 = vmul.f32 %v1744, %v1755
      %1776 = vset.pattern.permute.xlu0 8
      %1777 = vperm.xlu0 %1776, %v511
      %v1778 = vpop.permute.xlu0 %1777
      %1780 = vset.pattern.permute.xlu0 8
      %1781 = vperm.xlu0 %1780, %v512
      %v1782 = vpop.permute.xlu0 %1781
      %1784 = vset.pattern.permute.xlu0 8
      %1785 = vperm.xlu0 %1784, %v513
      %v1786 = vpop.permute.xlu0 %1785
      %1788 = vset.pattern.permute.xlu0 8
      %1789 = vperm.xlu0 %1788, %v514
      %v1790 = vpop.permute.xlu0 %1789
      %1792 = vset.pattern.permute.xlu0 8
      %1793 = vperm.xlu0 %1792, %v515
      %v1794 = vpop.permute.xlu0 %1793
      %1796 = vset.pattern.permute.xlu0 8
      %1797 = vperm.xlu0 %1796, %v516
      %v1798 = vpop.permute.xlu0 %1797
      %1800 = vset.pattern.permute.xlu0 8
      %1801 = vperm.xlu0 %1800, %v517
      %v1802 = vpop.permute.xlu0 %1801
      %1804 = vset.pattern.permute.xlu0 8
      %1805 = vperm.xlu0 %1804, %v518
      %v1806 = vpop.permute.xlu0 %1805
      %1808 = vset.pattern.permute.xlu0 8
      %1809 = vperm.xlu0 %1808, %v519
      %v1810 = vpop.permute.xlu0 %1809
      %v1812 = vmul.f32 %v1778, %v1758
      %v1813 = vmul.f32 %v1778, %v1759
      %v1814 = vmul.f32 %v1782, %v1760
      %v1815 = vmul.f32 %v1782, %v1761
      %v1816 = vmul.f32 %v1786, %v1762
      %v1817 = vmul.f32 %v1786, %v1763
      %v1818 = vmul.f32 %v1790, %v1764
      %v1819 = vmul.f32 %v1790, %v1765
      %v1820 = vmul.f32 %v1794, %v1766
      %v1821 = vmul.f32 %v1794, %v1767
      %v1822 = vmul.f32 %v1798, %v1768
      %v1823 = vmul.f32 %v1798, %v1769
      %v1824 = vmul.f32 %v1802, %v1770
      %v1825 = vmul.f32 %v1802, %v1771
      %v1826 = vmul.f32 %v1806, %v1772
      %v1827 = vmul.f32 %v1806, %v1773
      %v1828 = vmul.f32 %v1810, %v1774
      %v1829 = vmul.f32 %v1810, %v1775
      %v1830 = vadd.f32 %v1672, %v1812
      %v1831 = vadd.f32 %v1673, %v1813
      %v1832 = vadd.f32 %v1674, %v1814
      %v1833 = vadd.f32 %v1675, %v1815
      %v1834 = vadd.f32 %v1676, %v1816
      %v1835 = vadd.f32 %v1677, %v1817
      %v1836 = vadd.f32 %v1678, %v1818
      %v1837 = vadd.f32 %v1679, %v1819
      %v1838 = vadd.f32 %v1680, %v1820
      %v1839 = vadd.f32 %v1681, %v1821
      %v1840 = vadd.f32 %v1682, %v1822
      %v1841 = vadd.f32 %v1683, %v1823
      %v1842 = vadd.f32 %v1684, %v1824
      %v1843 = vadd.f32 %v1685, %v1825
      %v1844 = vadd.f32 %v1686, %v1826
      %v1845 = vadd.f32 %v1687, %v1827
      %v1846 = vadd.f32 %v1688, %v1828
      %v1847 = vadd.f32 %v1689, %v1829
      %1848 = vset.pattern.permute.xlu0 4
      %1849 = vperm.xlu0 %1848, %v311
      %v1850 = vpop.permute.xlu0 %1849
      %1852 = vset.pattern.permute.xlu0 4
      %1853 = vperm.xlu0 %1852, %v312
      %v1854 = vpop.permute.xlu0 %1853
      %1856 = vset.pattern.permute.xlu0 4
      %1857 = vperm.xlu0 %1856, %v313
      %v1858 = vpop.permute.xlu0 %1857
      %1860 = vset.pattern.permute.xlu0 4
      %1861 = vperm.xlu0 %1860, %v314
      %v1862 = vpop.permute.xlu0 %1861
      %1864 = vset.pattern.permute.xlu0 4
      %1865 = vperm.xlu0 %1864, %v315
      %v1866 = vpop.permute.xlu0 %1865
      %1868 = vset.pattern.permute.xlu0 4
      %1869 = vperm.xlu0 %1868, %v316
      %v1870 = vpop.permute.xlu0 %1869
      %1872 = vset.pattern.permute.xlu0 4
      %1873 = vperm.xlu0 %1872, %v317
      %v1874 = vpop.permute.xlu0 %1873
      %1876 = vset.pattern.permute.xlu0 4
      %1877 = vperm.xlu0 %1876, %v318
      %v1878 = vpop.permute.xlu0 %1877
      %1880 = vset.pattern.permute.xlu0 4
      %1881 = vperm.xlu0 %1880, %v319
      %v1882 = vpop.permute.xlu0 %1881
      %v1884 = vadd.f32 %v1830, %v1850
      %v1885 = vadd.f32 %v1831, %v1850
      %v1886 = vadd.f32 %v1832, %v1854
      %v1887 = vadd.f32 %v1833, %v1854
      %v1888 = vadd.f32 %v1834, %v1858
      %v1889 = vadd.f32 %v1835, %v1858
      %v1890 = vadd.f32 %v1836, %v1862
      %v1891 = vadd.f32 %v1837, %v1862
      %v1892 = vadd.f32 %v1838, %v1866
      %v1893 = vadd.f32 %v1839, %v1866
      %v1894 = vadd.f32 %v1840, %v1870
      %v1895 = vadd.f32 %v1841, %v1870
      %v1896 = vadd.f32 %v1842, %v1874
      %v1897 = vadd.f32 %v1843, %v1874
      %v1898 = vadd.f32 %v1844, %v1878
      %v1899 = vadd.f32 %v1845, %v1878
      %v1900 = vadd.f32 %v1846, %v1882
      %v1901 = vadd.f32 %v1847, %v1882
      %v1902 = vmax.f32 %v1884, 0.0
      %v1903 = vmax.f32 %v1885, 0.0
      %v1904 = vmax.f32 %v1886, 0.0
      %v1905 = vmax.f32 %v1887, 0.0
      %v1906 = vmax.f32 %v1888, 0.0
      %v1907 = vmax.f32 %v1889, 0.0
      %v1908 = vmax.f32 %v1890, 0.0
      %v1909 = vmax.f32 %v1891, 0.0
      %v1910 = vmax.f32 %v1892, 0.0
      %v1911 = vmax.f32 %v1893, 0.0
      %v1912 = vmax.f32 %v1894, 0.0
      %v1913 = vmax.f32 %v1895, 0.0
      %v1914 = vmax.f32 %v1896, 0.0
      %v1915 = vmax.f32 %v1897, 0.0
      %v1916 = vmax.f32 %v1898, 0.0
      %v1917 = vmax.f32 %v1899, 0.0
      %v1918 = vmax.f32 %v1900, 0.0
      %v1919 = vmax.f32 %v1901, 0.0
      %s1920 = scalar_lea.vmem %s3, 72
      %v1921 = vld [vmem:[%s1920] sm:$0xf]
      %v1922 = vld [vmem:[%s1920 + $0x4] sm:$0xf]
      %v1923 = vld [vmem:[%s1920 + $0x8] sm:$0xf]
      %v1924 = vld [vmem:[%s1920 + $0xc] sm:$0xf]
      %v1925 = vld [vmem:[%s1920 + $0x10] sm:$0xf]
      %v1926 = vld [vmem:[%s1920 + $0x14] sm:$0xf]
      %v1927 = vld [vmem:[%s1920 + $0x18] sm:$0xf]
      %v1928 = vld [vmem:[%s1920 + $0x1c] sm:$0xf]
      %v1929 = vld [vmem:[%s1920 + $0x20] sm:$0xf]
      %1930 = vset.pattern.permute.xlu0 3
      %1931 = vperm.xlu0 %1930, %v311
      %v1932 = vpop.permute.xlu0 %1931
      %1934 = vset.pattern.permute.xlu0 3
      %1935 = vperm.xlu0 %1934, %v312
      %v1936 = vpop.permute.xlu0 %1935
      %1938 = vset.pattern.permute.xlu0 3
      %1939 = vperm.xlu0 %1938, %v313
      %v1940 = vpop.permute.xlu0 %1939
      %1942 = vset.pattern.permute.xlu0 3
      %1943 = vperm.xlu0 %1942, %v314
      %v1944 = vpop.permute.xlu0 %1943
      %1946 = vset.pattern.permute.xlu0 3
      %1947 = vperm.xlu0 %1946, %v315
      %v1948 = vpop.permute.xlu0 %1947
      %1950 = vset.pattern.permute.xlu0 3
      %1951 = vperm.xlu0 %1950, %v316
      %v1952 = vpop.permute.xlu0 %1951
      %1954 = vset.pattern.permute.xlu0 3
      %1955 = vperm.xlu0 %1954, %v317
      %v1956 = vpop.permute.xlu0 %1955
      %1958 = vset.pattern.permute.xlu0 3
      %1959 = vperm.xlu0 %1958, %v318
      %v1960 = vpop.permute.xlu0 %1959
      %1962 = vset.pattern.permute.xlu0 3
      %1963 = vperm.xlu0 %1962, %v319
      %v1964 = vpop.permute.xlu0 %1963
      %v1975 = vunpack.c.l.b16 %v1921
      %v1976 = vunpack.c.l.b16 %v1922
      %v1977 = vunpack.c.l.b16 %v1923
      %v1978 = vunpack.c.l.b16 %v1924
      %v1979 = vunpack.c.l.b16 %v1925
      %v1980 = vunpack.c.l.b16 %v1926
      %v1981 = vunpack.c.l.b16 %v1927
      %v1982 = vunpack.c.l.b16 %v1928
      %v1983 = vunpack.c.l.b16 %v1929
      %v1984 = vpack.c.b16 %v1976, %v1975
      %v1985 = vpack.c.b16 %v1978, %v1977
      %v1986 = vpack.c.b16 %v1980, %v1979
      %v1987 = vpack.c.b16 %v1982, %v1981
      %v1988 = vpack.c.b16 %v1983, %v1983
      %v1990 = vsel %vm388, %v1984, 0
      %v1993 = vsel %vm388, %v1985, 0
      %v1996 = vsel %vm388, %v1986, 0
      %v1999 = vsel %vm388, %v1987, 0
      %v2002 = vsel %vm388, %v1988, 0
      %2004 = vmatprep.subr.bf16.mxu0 %v302
      %2005 = vmatpush1.bf16.msra.mxu0 %v301
      %2006 = vmatprep.subr.bf16.mxu0 %v304
      %2007 = vmatpush1.bf16.msra.mxu0 %v303
      %2008 = vmatprep.subr.bf16.mxu0 %v306
      %2009 = vmatpush1.bf16.msra.mxu0 %v305
      %2010 = vmatprep.subr.bf16.mxu0 %v308
      %2011 = vmatpush1.bf16.msra.mxu0 %v307
      %2012 = vmatprep.subr.bf16.mxu0 %v409
      %2013 = vmatpush1.bf16.msra.mxu0 %v406
      %2014 = vmatprep.subr.bf16.mxu0 0
      %2015 = vmatpush1.bf16.msra.mxu0 0
      %2016 = vmatprep.subr.bf16.mxu0 0
      %2017 = vmatpush1.bf16.msra.mxu0 0
      %2018 = vmatprep.subr.bf16.mxu0 0
      %2019 = vmatpush1.bf16.msra.mxu0 0
      %2020 = vmatprep.subr.bf16.mxu0 0
      %2021 = vmatpush1.bf16.msra.mxu0 0
      %2022 = vmatprep.subr.bf16.mxu0 0
      %2023 = vmatpush1.bf16.msra.mxu0 0
      %2024 = vmatprep.subr.bf16.mxu0 0
      %2025 = vmatpush1.bf16.msra.mxu0 0
      %2026 = vmatprep.subr.bf16.mxu0 0
      %2027 = vmatpush1.bf16.msra.mxu0 0
      %2028 = vmatprep.subr.bf16.mxu0 0
      %2029 = vmatpush1.bf16.msra.mxu0 0
      %2030 = vmatprep.subr.bf16.mxu0 0
      %2031 = vmatpush1.bf16.msra.mxu0 0
      %2032 = vmatprep.subr.bf16.mxu0 0
      %2033 = vmatpush1.bf16.msra.mxu0 0
      %2034 = vmatprep.subr.bf16.mxu0 0
      %2035 = vmatpush1.bf16.msra.mxu0 0
      %2036 = vmatprep.mubr.bf16.mxu0 0
      %2037 = vmatmul.mubr.bf16.gmra.mrb[0].mxu0 %v1990
      %v2038 = vpop.f32.mrb[0].mxu0
      %v2039 = vadd.f32 %v1932, %v2038
      %v2040 = vpop.f32.mrb[0].mxu0
      %v2041 = vadd.f32 %v1932, %v2040
      %v2042 = vpop.f32.mrb[0].mxu0
      %v2043 = vadd.f32 %v1936, %v2042
      %v2044 = vpop.f32.mrb[0].mxu0
      %v2045 = vadd.f32 %v1936, %v2044
      %2046 = vmatprep.mubr.bf16.mxu0 0
      %2047 = vmatmul.mubr.bf16.gmra.mrb[0].mxu0 %v1993
      %v2048 = vpop.f32.mrb[0].mxu0
      %v2049 = vadd.f32 %v1940, %v2048
      %v2050 = vpop.f32.mrb[0].mxu0
      %v2051 = vadd.f32 %v1940, %v2050
      %v2052 = vpop.f32.mrb[0].mxu0
      %v2053 = vadd.f32 %v1944, %v2052
      %v2054 = vpop.f32.mrb[0].mxu0
      %v2055 = vadd.f32 %v1944, %v2054
      %2056 = vmatprep.mubr.bf16.mxu0 0
      %2057 = vmatmul.mubr.bf16.gmra.mrb[0].mxu0 %v1996
      %v2058 = vpop.f32.mrb[0].mxu0
      %v2059 = vadd.f32 %v1948, %v2058
      %v2060 = vpop.f32.mrb[0].mxu0
      %v2061 = vadd.f32 %v1948, %v2060
      %v2062 = vpop.f32.mrb[0].mxu0
      %v2063 = vadd.f32 %v1952, %v2062
      %v2064 = vpop.f32.mrb[0].mxu0
      %v2065 = vadd.f32 %v1952, %v2064
      %2066 = vmatprep.mubr.bf16.mxu0 0
      %2067 = vmatmul.mubr.bf16.gmra.mrb[0].mxu0 %v1999
      %v2068 = vpop.f32.mrb[0].mxu0
      %v2069 = vadd.f32 %v1956, %v2068
      %v2070 = vpop.f32.mrb[0].mxu0
      %v2071 = vadd.f32 %v1956, %v2070
      %v2072 = vpop.f32.mrb[0].mxu0
      %v2073 = vadd.f32 %v1960, %v2072
      %v2074 = vpop.f32.mrb[0].mxu0
      %v2075 = vadd.f32 %v1960, %v2074
      %2076 = vmatprep.mubr.bf16.mxu0 0
      %2077 = vmatmul.mubr.bf16.gmra.mrb[0].mxu0 %v2002
      %v2078 = vpop.f32.mrb[0].mxu0
      %v2079 = vadd.f32 %v1964, %v2078
      %v2080 = vpop.f32.mrb[0].mxu0
      %v2081 = vadd.f32 %v1964, %v2080
      %v2082 = vpop.f32.mrb[0].mxu0
      %v2083 = vpop.f32.mrb[0].mxu0
      %2084 = vdwg.mxu0
      %v2085 = vmax.f32 %v2039, 0.0
      %v2086 = vmax.f32 %v2041, 0.0
      %v2087 = vmax.f32 %v2043, 0.0
      %v2088 = vmax.f32 %v2045, 0.0
      %v2089 = vmax.f32 %v2049, 0.0
      %v2090 = vmax.f32 %v2051, 0.0
      %v2091 = vmax.f32 %v2053, 0.0
      %v2092 = vmax.f32 %v2055, 0.0
      %v2093 = vmax.f32 %v2059, 0.0
      %v2094 = vmax.f32 %v2061, 0.0
      %v2095 = vmax.f32 %v2063, 0.0
      %v2096 = vmax.f32 %v2065, 0.0
      %v2097 = vmax.f32 %v2069, 0.0
      %v2098 = vmax.f32 %v2071, 0.0
      %v2099 = vmax.f32 %v2073, 0.0
      %v2100 = vmax.f32 %v2075, 0.0
      %v2101 = vmax.f32 %v2079, 0.0
      %v2102 = vmax.f32 %v2081, 0.0
      %s2103 = scalar_lea.vmem %s4, 144
      %v2104 = vld [vmem:[%s2103] sm:$0xff]
      %v2105 = vld [vmem:[%s2103 + $0x8] sm:$0xff]
      %v2106 = vld [vmem:[%s2103 + $0x10] sm:$0xff]
      %v2107 = vld [vmem:[%s2103 + $0x18] sm:$0xff]
      %v2108 = vld [vmem:[%s2103 + $0x20] sm:$0xff]
      %v2109 = vld [vmem:[%s2103 + $0x28] sm:$0xff]
      %v2110 = vld [vmem:[%s2103 + $0x30] sm:$0xff]
      %v2111 = vld [vmem:[%s2103 + $0x38] sm:$0xff]
      %v2112 = vld [vmem:[%s2103 + $0x40] sm:$0xff]
      %2114 = vset.pattern.permute.xlu0 4
      %2115 = vperm.xlu0 %2114, %v2104
      %v2116 = vpop.permute.xlu0 %2115
      %2119 = vset.pattern.permute.xlu0 4
      %2120 = vperm.xlu0 %2119, %v2105
      %v2121 = vpop.permute.xlu0 %2120
      %2124 = vset.pattern.permute.xlu0 4
      %2125 = vperm.xlu0 %2124, %v2106
      %v2126 = vpop.permute.xlu0 %2125
      %2129 = vset.pattern.permute.xlu0 4
      %2130 = vperm.xlu0 %2129, %v2107
      %v2131 = vpop.permute.xlu0 %2130
      %2134 = vset.pattern.permute.xlu0 4
      %2135 = vperm.xlu0 %2134, %v2108
      %v2136 = vpop.permute.xlu0 %2135
      %2139 = vset.pattern.permute.xlu0 4
      %2140 = vperm.xlu0 %2139, %v2109
      %v2141 = vpop.permute.xlu0 %2140
      %2144 = vset.pattern.permute.xlu0 4
      %2145 = vperm.xlu0 %2144, %v2110
      %v2146 = vpop.permute.xlu0 %2145
      %2149 = vset.pattern.permute.xlu0 4
      %2150 = vperm.xlu0 %2149, %v2111
      %v2151 = vpop.permute.xlu0 %2150
      %2154 = vset.pattern.permute.xlu0 4
      %2155 = vperm.xlu0 %2154, %v2112
      %v2156 = vpop.permute.xlu0 %2155
      %v2158 = vmul.f32 %v2116, %v2085
      %v2159 = vmul.f32 %v2116, %v2086
      %v2160 = vmul.f32 %v2121, %v2087
      %v2161 = vmul.f32 %v2121, %v2088
      %v2162 = vmul.f32 %v2126, %v2089
      %v2163 = vmul.f32 %v2126, %v2090
      %v2164 = vmul.f32 %v2131, %v2091
      %v2165 = vmul.f32 %v2131, %v2092
      %v2166 = vmul.f32 %v2136, %v2093
      %v2167 = vmul.f32 %v2136, %v2094
      %v2168 = vmul.f32 %v2141, %v2095
      %v2169 = vmul.f32 %v2141, %v2096
      %v2170 = vmul.f32 %v2146, %v2097
      %v2171 = vmul.f32 %v2146, %v2098
      %v2172 = vmul.f32 %v2151, %v2099
      %v2173 = vmul.f32 %v2151, %v2100
      %v2174 = vmul.f32 %v2156, %v2101
      %v2175 = vmul.f32 %v2156, %v2102
      %2176 = vrot.lane.b32.xlu0 %v2085, 17
      %v2177 = vpop.permute.xlu0 %2176
      %2178 = vrot.lane.b32.xlu0 %v2087, 17
      %v2179 = vpop.permute.xlu0 %2178
      %2180 = vrot.lane.b32.xlu0 %v2089, 17
      %v2181 = vpop.permute.xlu0 %2180
      %2182 = vrot.lane.b32.xlu0 %v2091, 17
      %v2183 = vpop.permute.xlu0 %2182
      %2184 = vrot.lane.b32.xlu0 %v2093, 17
      %v2185 = vpop.permute.xlu0 %2184
      %2186 = vrot.lane.b32.xlu0 %v2095, 17
      %v2187 = vpop.permute.xlu0 %2186
      %2188 = vrot.lane.b32.xlu0 %v2097, 17
      %v2189 = vpop.permute.xlu0 %2188
      %2190 = vrot.lane.b32.xlu0 %v2099, 17
      %v2191 = vpop.permute.xlu0 %2190
      %2192 = vrot.lane.b32.xlu0 %v2101, 17
      %v2193 = vpop.permute.xlu0 %2192
      %2194 = vrot.lane.b32.xlu0 %v2086, 17
      %v2195 = vpop.permute.xlu0 %2194
      %2196 = vrot.lane.b32.xlu0 %v2088, 17
      %v2197 = vpop.permute.xlu0 %2196
      %2198 = vrot.lane.b32.xlu0 %v2090, 17
      %v2199 = vpop.permute.xlu0 %2198
      %2200 = vrot.lane.b32.xlu0 %v2092, 17
      %v2201 = vpop.permute.xlu0 %2200
      %2202 = vrot.lane.b32.xlu0 %v2094, 17
      %v2203 = vpop.permute.xlu0 %2202
      %2204 = vrot.lane.b32.xlu0 %v2096, 17
      %v2205 = vpop.permute.xlu0 %2204
      %2206 = vrot.lane.b32.xlu0 %v2098, 17
      %v2207 = vpop.permute.xlu0 %2206
      %2208 = vrot.lane.b32.xlu0 %v2100, 17
      %v2209 = vpop.permute.xlu0 %2208
      %2210 = vrot.lane.b32.xlu0 %v2102, 17
      %v2211 = vpop.permute.xlu0 %2210
      %v2212 = vsel %vm621, %v2177, %v2195
      %v2213 = vsel %vm621, %v2179, %v2197
      %v2214 = vsel %vm621, %v2181, %v2199
      %v2215 = vsel %vm621, %v2183, %v2201
      %v2216 = vsel %vm621, %v2185, %v2203
      %v2217 = vsel %vm621, %v2187, %v2205
      %v2218 = vsel %vm621, %v2189, %v2207
      %v2219 = vsel %vm621, %v2191, %v2209
      %v2220 = vsel %vm621, %v2193, %v2211
      %v2221 = vsel %vm621, %v2195, %v2177
      %v2222 = vsel %vm621, %v2197, %v2179
      %v2223 = vsel %vm621, %v2199, %v2181
      %v2224 = vsel %vm621, %v2201, %v2183
      %v2225 = vsel %vm621, %v2203, %v2185
      %v2226 = vsel %vm621, %v2205, %v2187
      %v2227 = vsel %vm621, %v2207, %v2189
      %v2228 = vsel %vm621, %v2209, %v2191
      %v2229 = vsel %vm621, %v2211, %v2193
      %v2230 = vmul.f32 %v2221, %v645
      %v2231 = vmul.f32 %v2212, %v649
      %v2232 = vmul.f32 %v2222, %v645
      %v2233 = vmul.f32 %v2213, %v649
      %v2234 = vmul.f32 %v2223, %v645
      %v2235 = vmul.f32 %v2214, %v649
      %v2236 = vmul.f32 %v2224, %v645
      %v2237 = vmul.f32 %v2215, %v649
      %v2238 = vmul.f32 %v2225, %v645
      %v2239 = vmul.f32 %v2216, %v649
      %v2240 = vmul.f32 %v2226, %v645
      %v2241 = vmul.f32 %v2217, %v649
      %v2242 = vmul.f32 %v2227, %v645
      %v2243 = vmul.f32 %v2218, %v649
      %v2244 = vmul.f32 %v2228, %v645
      %v2245 = vmul.f32 %v2219, %v649
      %v2246 = vmul.f32 %v2229, %v645
      %v2247 = vmul.f32 %v2220, %v649
      %2248 = vset.pattern.permute.xlu0 0
      %2249 = vperm.xlu0 %2248, %v2104
      %v2250 = vpop.permute.xlu0 %2249
      %2252 = vset.pattern.permute.xlu0 0
      %2253 = vperm.xlu0 %2252, %v2105
      %v2254 = vpop.permute.xlu0 %2253
      %2256 = vset.pattern.permute.xlu0 0
      %2257 = vperm.xlu0 %2256, %v2106
      %v2258 = vpop.permute.xlu0 %2257
      %2260 = vset.pattern.permute.xlu0 0
      %2261 = vperm.xlu0 %2260, %v2107
      %v2262 = vpop.permute.xlu0 %2261
      %2264 = vset.pattern.permute.xlu0 0
      %2265 = vperm.xlu0 %2264, %v2108
      %v2266 = vpop.permute.xlu0 %2265
      %2268 = vset.pattern.permute.xlu0 0
      %2269 = vperm.xlu0 %2268, %v2109
      %v2270 = vpop.permute.xlu0 %2269
      %2272 = vset.pattern.permute.xlu0 0
      %2273 = vperm.xlu0 %2272, %v2110
      %v2274 = vpop.permute.xlu0 %2273
      %2276 = vset.pattern.permute.xlu0 0
      %2277 = vperm.xlu0 %2276, %v2111
      %v2278 = vpop.permute.xlu0 %2277
      %2280 = vset.pattern.permute.xlu0 0
      %2281 = vperm.xlu0 %2280, %v2112
      %v2282 = vpop.permute.xlu0 %2281
      %v2284 = vmul.f32 %v2250, %v2230
      %v2285 = vmul.f32 %v2250, %v2231
      %v2286 = vmul.f32 %v2254, %v2232
      %v2287 = vmul.f32 %v2254, %v2233
      %v2288 = vmul.f32 %v2258, %v2234
      %v2289 = vmul.f32 %v2258, %v2235
      %v2290 = vmul.f32 %v2262, %v2236
      %v2291 = vmul.f32 %v2262, %v2237
      %v2292 = vmul.f32 %v2266, %v2238
      %v2293 = vmul.f32 %v2266, %v2239
      %v2294 = vmul.f32 %v2270, %v2240
      %v2295 = vmul.f32 %v2270, %v2241
      %v2296 = vmul.f32 %v2274, %v2242
      %v2297 = vmul.f32 %v2274, %v2243
      %v2298 = vmul.f32 %v2278, %v2244
      %v2299 = vmul.f32 %v2278, %v2245
      %v2300 = vmul.f32 %v2282, %v2246
      %v2301 = vmul.f32 %v2282, %v2247
      %v2302 = vadd.f32 %v2158, %v2284
      %v2303 = vadd.f32 %v2159, %v2285
      %v2304 = vadd.f32 %v2160, %v2286
      %v2305 = vadd.f32 %v2161, %v2287
      %v2306 = vadd.f32 %v2162, %v2288
      %v2307 = vadd.f32 %v2163, %v2289
      %v2308 = vadd.f32 %v2164, %v2290
      %v2309 = vadd.f32 %v2165, %v2291
      %v2310 = vadd.f32 %v2166, %v2292
      %v2311 = vadd.f32 %v2167, %v2293
      %v2312 = vadd.f32 %v2168, %v2294
      %v2313 = vadd.f32 %v2169, %v2295
      %v2314 = vadd.f32 %v2170, %v2296
      %v2315 = vadd.f32 %v2171, %v2297
      %v2316 = vadd.f32 %v2172, %v2298
      %v2317 = vadd.f32 %v2173, %v2299
      %v2318 = vadd.f32 %v2174, %v2300
      %v2319 = vadd.f32 %v2175, %v2301
      %2320 = vrot.lane.b32.xlu0 %v2085, 16
      %v2321 = vpop.permute.xlu0 %2320
      %2322 = vrot.lane.b32.xlu0 %v2087, 16
      %v2323 = vpop.permute.xlu0 %2322
      %2324 = vrot.lane.b32.xlu0 %v2089, 16
      %v2325 = vpop.permute.xlu0 %2324
      %2326 = vrot.lane.b32.xlu0 %v2091, 16
      %v2327 = vpop.permute.xlu0 %2326
      %2328 = vrot.lane.b32.xlu0 %v2093, 16
      %v2329 = vpop.permute.xlu0 %2328
      %2330 = vrot.lane.b32.xlu0 %v2095, 16
      %v2331 = vpop.permute.xlu0 %2330
      %2332 = vrot.lane.b32.xlu0 %v2097, 16
      %v2333 = vpop.permute.xlu0 %2332
      %2334 = vrot.lane.b32.xlu0 %v2099, 16
      %v2335 = vpop.permute.xlu0 %2334
      %2336 = vrot.lane.b32.xlu0 %v2101, 16
      %v2337 = vpop.permute.xlu0 %2336
      %2338 = vrot.lane.b32.xlu0 %v2086, 16
      %v2339 = vpop.permute.xlu0 %2338
      %2340 = vrot.lane.b32.xlu0 %v2088, 16
      %v2341 = vpop.permute.xlu0 %2340
      %2342 = vrot.lane.b32.xlu0 %v2090, 16
      %v2343 = vpop.permute.xlu0 %2342
      %2344 = vrot.lane.b32.xlu0 %v2092, 16
      %v2345 = vpop.permute.xlu0 %2344
      %2346 = vrot.lane.b32.xlu0 %v2094, 16
      %v2347 = vpop.permute.xlu0 %2346
      %2348 = vrot.lane.b32.xlu0 %v2096, 16
      %v2349 = vpop.permute.xlu0 %2348
      %2350 = vrot.lane.b32.xlu0 %v2098, 16
      %v2351 = vpop.permute.xlu0 %2350
      %2352 = vrot.lane.b32.xlu0 %v2100, 16
      %v2353 = vpop.permute.xlu0 %2352
      %2354 = vrot.lane.b32.xlu0 %v2102, 16
      %v2355 = vpop.permute.xlu0 %2354
      %v2356 = vsel %vm778, %v2321, %v2339
      %v2357 = vsel %vm778, %v2323, %v2341
      %v2358 = vsel %vm778, %v2325, %v2343
      %v2359 = vsel %vm778, %v2327, %v2345
      %v2360 = vsel %vm778, %v2329, %v2347
      %v2361 = vsel %vm778, %v2331, %v2349
      %v2362 = vsel %vm778, %v2333, %v2351
      %v2363 = vsel %vm778, %v2335, %v2353
      %v2364 = vsel %vm778, %v2337, %v2355
      %v2365 = vsel %vm778, %v2339, %v2321
      %v2366 = vsel %vm778, %v2341, %v2323
      %v2367 = vsel %vm778, %v2343, %v2325
      %v2368 = vsel %vm778, %v2345, %v2327
      %v2369 = vsel %vm778, %v2347, %v2329
      %v2370 = vsel %vm778, %v2349, %v2331
      %v2371 = vsel %vm778, %v2351, %v2333
      %v2372 = vsel %vm778, %v2353, %v2335
      %v2373 = vsel %vm778, %v2355, %v2337
      %v2374 = vmul.f32 %v2365, %v803
      %v2375 = vmul.f32 %v2356, %v807
      %v2376 = vmul.f32 %v2366, %v803
      %v2377 = vmul.f32 %v2357, %v807
      %v2378 = vmul.f32 %v2367, %v803
      %v2379 = vmul.f32 %v2358, %v807
      %v2380 = vmul.f32 %v2368, %v803
      %v2381 = vmul.f32 %v2359, %v807
      %v2382 = vmul.f32 %v2369, %v803
      %v2383 = vmul.f32 %v2360, %v807
      %v2384 = vmul.f32 %v2370, %v803
      %v2385 = vmul.f32 %v2361, %v807
      %v2386 = vmul.f32 %v2371, %v803
      %v2387 = vmul.f32 %v2362, %v807
      %v2388 = vmul.f32 %v2372, %v803
      %v2389 = vmul.f32 %v2363, %v807
      %v2390 = vmul.f32 %v2373, %v803
      %v2391 = vmul.f32 %v2364, %v807
      %2392 = vset.pattern.permute.xlu0 1
      %2393 = vperm.xlu0 %2392, %v2104
      %v2394 = vpop.permute.xlu0 %2393
      %2396 = vset.pattern.permute.xlu0 1
      %2397 = vperm.xlu0 %2396, %v2105
      %v2398 = vpop.permute.xlu0 %2397
      %2400 = vset.pattern.permute.xlu0 1
      %2401 = vperm.xlu0 %2400, %v2106
      %v2402 = vpop.permute.xlu0 %2401
      %2404 = vset.pattern.permute.xlu0 1
      %2405 = vperm.xlu0 %2404, %v2107
      %v2406 = vpop.permute.xlu0 %2405
      %2408 = vset.pattern.permute.xlu0 1
      %2409 = vperm.xlu0 %2408, %v2108
      %v2410 = vpop.permute.xlu0 %2409
      %2412 = vset.pattern.permute.xlu0 1
      %2413 = vperm.xlu0 %2412, %v2109
      %v2414 = vpop.permute.xlu0 %2413
      %2416 = vset.pattern.permute.xlu0 1
      %2417 = vperm.xlu0 %2416, %v2110
      %v2418 = vpop.permute.xlu0 %2417
      %2420 = vset.pattern.permute.xlu0 1
      %2421 = vperm.xlu0 %2420, %v2111
      %v2422 = vpop.permute.xlu0 %2421
      %2424 = vset.pattern.permute.xlu0 1
      %2425 = vperm.xlu0 %2424, %v2112
      %v2426 = vpop.permute.xlu0 %2425
      %v2428 = vmul.f32 %v2394, %v2374
      %v2429 = vmul.f32 %v2394, %v2375
      %v2430 = vmul.f32 %v2398, %v2376
      %v2431 = vmul.f32 %v2398, %v2377
      %v2432 = vmul.f32 %v2402, %v2378
      %v2433 = vmul.f32 %v2402, %v2379
      %v2434 = vmul.f32 %v2406, %v2380
      %v2435 = vmul.f32 %v2406, %v2381
      %v2436 = vmul.f32 %v2410, %v2382
      %v2437 = vmul.f32 %v2410, %v2383
      %v2438 = vmul.f32 %v2414, %v2384
      %v2439 = vmul.f32 %v2414, %v2385
      %v2440 = vmul.f32 %v2418, %v2386
      %v2441 = vmul.f32 %v2418, %v2387
      %v2442 = vmul.f32 %v2422, %v2388
      %v2443 = vmul.f32 %v2422, %v2389
      %v2444 = vmul.f32 %v2426, %v2390
      %v2445 = vmul.f32 %v2426, %v2391
      %v2446 = vadd.f32 %v2302, %v2428
      %v2447 = vadd.f32 %v2303, %v2429
      %v2448 = vadd.f32 %v2304, %v2430
      %v2449 = vadd.f32 %v2305, %v2431
      %v2450 = vadd.f32 %v2306, %v2432
      %v2451 = vadd.f32 %v2307, %v2433
      %v2452 = vadd.f32 %v2308, %v2434
      %v2453 = vadd.f32 %v2309, %v2435
      %v2454 = vadd.f32 %v2310, %v2436
      %v2455 = vadd.f32 %v2311, %v2437
      %v2456 = vadd.f32 %v2312, %v2438
      %v2457 = vadd.f32 %v2313, %v2439
      %v2458 = vadd.f32 %v2314, %v2440
      %v2459 = vadd.f32 %v2315, %v2441
      %v2460 = vadd.f32 %v2316, %v2442
      %v2461 = vadd.f32 %v2317, %v2443
      %v2462 = vadd.f32 %v2318, %v2444
      %v2463 = vadd.f32 %v2319, %v2445
      %2464 = vrot.lane.b32.xlu0 %v2085, 15
      %v2465 = vpop.permute.xlu0 %2464
      %2466 = vrot.lane.b32.xlu0 %v2087, 15
      %v2467 = vpop.permute.xlu0 %2466
      %2468 = vrot.lane.b32.xlu0 %v2089, 15
      %v2469 = vpop.permute.xlu0 %2468
      %2470 = vrot.lane.b32.xlu0 %v2091, 15
      %v2471 = vpop.permute.xlu0 %2470
      %2472 = vrot.lane.b32.xlu0 %v2093, 15
      %v2473 = vpop.permute.xlu0 %2472
      %2474 = vrot.lane.b32.xlu0 %v2095, 15
      %v2475 = vpop.permute.xlu0 %2474
      %2476 = vrot.lane.b32.xlu0 %v2097, 15
      %v2477 = vpop.permute.xlu0 %2476
      %2478 = vrot.lane.b32.xlu0 %v2099, 15
      %v2479 = vpop.permute.xlu0 %2478
      %2480 = vrot.lane.b32.xlu0 %v2101, 15
      %v2481 = vpop.permute.xlu0 %2480
      %2482 = vrot.lane.b32.xlu0 %v2086, 15
      %v2483 = vpop.permute.xlu0 %2482
      %2484 = vrot.lane.b32.xlu0 %v2088, 15
      %v2485 = vpop.permute.xlu0 %2484
      %2486 = vrot.lane.b32.xlu0 %v2090, 15
      %v2487 = vpop.permute.xlu0 %2486
      %2488 = vrot.lane.b32.xlu0 %v2092, 15
      %v2489 = vpop.permute.xlu0 %2488
      %2490 = vrot.lane.b32.xlu0 %v2094, 15
      %v2491 = vpop.permute.xlu0 %2490
      %2492 = vrot.lane.b32.xlu0 %v2096, 15
      %v2493 = vpop.permute.xlu0 %2492
      %2494 = vrot.lane.b32.xlu0 %v2098, 15
      %v2495 = vpop.permute.xlu0 %2494
      %2496 = vrot.lane.b32.xlu0 %v2100, 15
      %v2497 = vpop.permute.xlu0 %2496
      %2498 = vrot.lane.b32.xlu0 %v2102, 15
      %v2499 = vpop.permute.xlu0 %2498
      %v2500 = vsel %vm936, %v2465, %v2483
      %v2501 = vsel %vm936, %v2467, %v2485
      %v2502 = vsel %vm936, %v2469, %v2487
      %v2503 = vsel %vm936, %v2471, %v2489
      %v2504 = vsel %vm936, %v2473, %v2491
      %v2505 = vsel %vm936, %v2475, %v2493
      %v2506 = vsel %vm936, %v2477, %v2495
      %v2507 = vsel %vm936, %v2479, %v2497
      %v2508 = vsel %vm936, %v2481, %v2499
      %v2509 = vsel %vm936, %v2483, %v2465
      %v2510 = vsel %vm936, %v2485, %v2467
      %v2511 = vsel %vm936, %v2487, %v2469
      %v2512 = vsel %vm936, %v2489, %v2471
      %v2513 = vsel %vm936, %v2491, %v2473
      %v2514 = vsel %vm936, %v2493, %v2475
      %v2515 = vsel %vm936, %v2495, %v2477
      %v2516 = vsel %vm936, %v2497, %v2479
      %v2517 = vsel %vm936, %v2499, %v2481
      %v2518 = vmul.f32 %v2509, %v961
      %v2519 = vmul.f32 %v2500, %v965
      %v2520 = vmul.f32 %v2510, %v961
      %v2521 = vmul.f32 %v2501, %v965
      %v2522 = vmul.f32 %v2511, %v961
      %v2523 = vmul.f32 %v2502, %v965
      %v2524 = vmul.f32 %v2512, %v961
      %v2525 = vmul.f32 %v2503, %v965
      %v2526 = vmul.f32 %v2513, %v961
      %v2527 = vmul.f32 %v2504, %v965
      %v2528 = vmul.f32 %v2514, %v961
      %v2529 = vmul.f32 %v2505, %v965
      %v2530 = vmul.f32 %v2515, %v961
      %v2531 = vmul.f32 %v2506, %v965
      %v2532 = vmul.f32 %v2516, %v961
      %v2533 = vmul.f32 %v2507, %v965
      %v2534 = vmul.f32 %v2517, %v961
      %v2535 = vmul.f32 %v2508, %v965
      %2536 = vset.pattern.permute.xlu0 2
      %2537 = vperm.xlu0 %2536, %v2104
      %v2538 = vpop.permute.xlu0 %2537
      %2540 = vset.pattern.permute.xlu0 2
      %2541 = vperm.xlu0 %2540, %v2105
      %v2542 = vpop.permute.xlu0 %2541
      %2544 = vset.pattern.permute.xlu0 2
      %2545 = vperm.xlu0 %2544, %v2106
      %v2546 = vpop.permute.xlu0 %2545
      %2548 = vset.pattern.permute.xlu0 2
      %2549 = vperm.xlu0 %2548, %v2107
      %v2550 = vpop.permute.xlu0 %2549
      %2552 = vset.pattern.permute.xlu0 2
      %2553 = vperm.xlu0 %2552, %v2108
      %v2554 = vpop.permute.xlu0 %2553
      %2556 = vset.pattern.permute.xlu0 2
      %2557 = vperm.xlu0 %2556, %v2109
      %v2558 = vpop.permute.xlu0 %2557
      %2560 = vset.pattern.permute.xlu0 2
      %2561 = vperm.xlu0 %2560, %v2110
      %v2562 = vpop.permute.xlu0 %2561
      %2564 = vset.pattern.permute.xlu0 2
      %2565 = vperm.xlu0 %2564, %v2111
      %v2566 = vpop.permute.xlu0 %2565
      %2568 = vset.pattern.permute.xlu0 2
      %2569 = vperm.xlu0 %2568, %v2112
      %v2570 = vpop.permute.xlu0 %2569
      %v2572 = vmul.f32 %v2538, %v2518
      %v2573 = vmul.f32 %v2538, %v2519
      %v2574 = vmul.f32 %v2542, %v2520
      %v2575 = vmul.f32 %v2542, %v2521
      %v2576 = vmul.f32 %v2546, %v2522
      %v2577 = vmul.f32 %v2546, %v2523
      %v2578 = vmul.f32 %v2550, %v2524
      %v2579 = vmul.f32 %v2550, %v2525
      %v2580 = vmul.f32 %v2554, %v2526
      %v2581 = vmul.f32 %v2554, %v2527
      %v2582 = vmul.f32 %v2558, %v2528
      %v2583 = vmul.f32 %v2558, %v2529
      %v2584 = vmul.f32 %v2562, %v2530
      %v2585 = vmul.f32 %v2562, %v2531
      %v2586 = vmul.f32 %v2566, %v2532
      %v2587 = vmul.f32 %v2566, %v2533
      %v2588 = vmul.f32 %v2570, %v2534
      %v2589 = vmul.f32 %v2570, %v2535
      %v2590 = vadd.f32 %v2446, %v2572
      %v2591 = vadd.f32 %v2447, %v2573
      %v2592 = vadd.f32 %v2448, %v2574
      %v2593 = vadd.f32 %v2449, %v2575
      %v2594 = vadd.f32 %v2450, %v2576
      %v2595 = vadd.f32 %v2451, %v2577
      %v2596 = vadd.f32 %v2452, %v2578
      %v2597 = vadd.f32 %v2453, %v2579
      %v2598 = vadd.f32 %v2454, %v2580
      %v2599 = vadd.f32 %v2455, %v2581
      %v2600 = vadd.f32 %v2456, %v2582
      %v2601 = vadd.f32 %v2457, %v2583
      %v2602 = vadd.f32 %v2458, %v2584
      %v2603 = vadd.f32 %v2459, %v2585
      %v2604 = vadd.f32 %v2460, %v2586
      %v2605 = vadd.f32 %v2461, %v2587
      %v2606 = vadd.f32 %v2462, %v2588
      %v2607 = vadd.f32 %v2463, %v2589
      %2608 = vrot.lane.b32.xlu0 %v2085, 1
      %v2609 = vpop.permute.xlu0 %2608
      %2610 = vrot.lane.b32.xlu0 %v2087, 1
      %v2611 = vpop.permute.xlu0 %2610
      %2612 = vrot.lane.b32.xlu0 %v2089, 1
      %v2613 = vpop.permute.xlu0 %2612
      %2614 = vrot.lane.b32.xlu0 %v2091, 1
      %v2615 = vpop.permute.xlu0 %2614
      %2616 = vrot.lane.b32.xlu0 %v2093, 1
      %v2617 = vpop.permute.xlu0 %2616
      %2618 = vrot.lane.b32.xlu0 %v2095, 1
      %v2619 = vpop.permute.xlu0 %2618
      %2620 = vrot.lane.b32.xlu0 %v2097, 1
      %v2621 = vpop.permute.xlu0 %2620
      %2622 = vrot.lane.b32.xlu0 %v2099, 1
      %v2623 = vpop.permute.xlu0 %2622
      %2624 = vrot.lane.b32.xlu0 %v2101, 1
      %v2625 = vpop.permute.xlu0 %2624
      %2626 = vrot.lane.b32.xlu0 %v2086, 1
      %v2627 = vpop.permute.xlu0 %2626
      %2628 = vrot.lane.b32.xlu0 %v2088, 1
      %v2629 = vpop.permute.xlu0 %2628
      %2630 = vrot.lane.b32.xlu0 %v2090, 1
      %v2631 = vpop.permute.xlu0 %2630
      %2632 = vrot.lane.b32.xlu0 %v2092, 1
      %v2633 = vpop.permute.xlu0 %2632
      %2634 = vrot.lane.b32.xlu0 %v2094, 1
      %v2635 = vpop.permute.xlu0 %2634
      %2636 = vrot.lane.b32.xlu0 %v2096, 1
      %v2637 = vpop.permute.xlu0 %2636
      %2638 = vrot.lane.b32.xlu0 %v2098, 1
      %v2639 = vpop.permute.xlu0 %2638
      %2640 = vrot.lane.b32.xlu0 %v2100, 1
      %v2641 = vpop.permute.xlu0 %2640
      %2642 = vrot.lane.b32.xlu0 %v2102, 1
      %v2643 = vpop.permute.xlu0 %2642
      %v2644 = vsel %vm1094, %v2609, %v2627
      %v2645 = vsel %vm1094, %v2611, %v2629
      %v2646 = vsel %vm1094, %v2613, %v2631
      %v2647 = vsel %vm1094, %v2615, %v2633
      %v2648 = vsel %vm1094, %v2617, %v2635
      %v2649 = vsel %vm1094, %v2619, %v2637
      %v2650 = vsel %vm1094, %v2621, %v2639
      %v2651 = vsel %vm1094, %v2623, %v2641
      %v2652 = vsel %vm1094, %v2625, %v2643
      %v2653 = vsel %vm1094, %v2627, %v2609
      %v2654 = vsel %vm1094, %v2629, %v2611
      %v2655 = vsel %vm1094, %v2631, %v2613
      %v2656 = vsel %vm1094, %v2633, %v2615
      %v2657 = vsel %vm1094, %v2635, %v2617
      %v2658 = vsel %vm1094, %v2637, %v2619
      %v2659 = vsel %vm1094, %v2639, %v2621
      %v2660 = vsel %vm1094, %v2641, %v2623
      %v2661 = vsel %vm1094, %v2643, %v2625
      %v2662 = vmul.f32 %v2653, %v1119
      %v2663 = vmul.f32 %v2644, %v1123
      %v2664 = vmul.f32 %v2654, %v1119
      %v2665 = vmul.f32 %v2645, %v1123
      %v2666 = vmul.f32 %v2655, %v1119
      %v2667 = vmul.f32 %v2646, %v1123
      %v2668 = vmul.f32 %v2656, %v1119
      %v2669 = vmul.f32 %v2647, %v1123
      %v2670 = vmul.f32 %v2657, %v1119
      %v2671 = vmul.f32 %v2648, %v1123
      %v2672 = vmul.f32 %v2658, %v1119
      %v2673 = vmul.f32 %v2649, %v1123
      %v2674 = vmul.f32 %v2659, %v1119
      %v2675 = vmul.f32 %v2650, %v1123
      %v2676 = vmul.f32 %v2660, %v1119
      %v2677 = vmul.f32 %v2651, %v1123
      %v2678 = vmul.f32 %v2661, %v1119
      %v2679 = vmul.f32 %v2652, %v1123
      %2680 = vset.pattern.permute.xlu0 3
      %2681 = vperm.xlu0 %2680, %v2104
      %v2682 = vpop.permute.xlu0 %2681
      %2684 = vset.pattern.permute.xlu0 3
      %2685 = vperm.xlu0 %2684, %v2105
      %v2686 = vpop.permute.xlu0 %2685
      %2688 = vset.pattern.permute.xlu0 3
      %2689 = vperm.xlu0 %2688, %v2106
      %v2690 = vpop.permute.xlu0 %2689
      %2692 = vset.pattern.permute.xlu0 3
      %2693 = vperm.xlu0 %2692, %v2107
      %v2694 = vpop.permute.xlu0 %2693
      %2696 = vset.pattern.permute.xlu0 3
      %2697 = vperm.xlu0 %2696, %v2108
      %v2698 = vpop.permute.xlu0 %2697
      %2700 = vset.pattern.permute.xlu0 3
      %2701 = vperm.xlu0 %2700, %v2109
      %v2702 = vpop.permute.xlu0 %2701
      %2704 = vset.pattern.permute.xlu0 3
      %2705 = vperm.xlu0 %2704, %v2110
      %v2706 = vpop.permute.xlu0 %2705
      %2708 = vset.pattern.permute.xlu0 3
      %2709 = vperm.xlu0 %2708, %v2111
      %v2710 = vpop.permute.xlu0 %2709
      %2712 = vset.pattern.permute.xlu0 3
      %2713 = vperm.xlu0 %2712, %v2112
      %v2714 = vpop.permute.xlu0 %2713
      %v2716 = vmul.f32 %v2682, %v2662
      %v2717 = vmul.f32 %v2682, %v2663
      %v2718 = vmul.f32 %v2686, %v2664
      %v2719 = vmul.f32 %v2686, %v2665
      %v2720 = vmul.f32 %v2690, %v2666
      %v2721 = vmul.f32 %v2690, %v2667
      %v2722 = vmul.f32 %v2694, %v2668
      %v2723 = vmul.f32 %v2694, %v2669
      %v2724 = vmul.f32 %v2698, %v2670
      %v2725 = vmul.f32 %v2698, %v2671
      %v2726 = vmul.f32 %v2702, %v2672
      %v2727 = vmul.f32 %v2702, %v2673
      %v2728 = vmul.f32 %v2706, %v2674
      %v2729 = vmul.f32 %v2706, %v2675
      %v2730 = vmul.f32 %v2710, %v2676
      %v2731 = vmul.f32 %v2710, %v2677
      %v2732 = vmul.f32 %v2714, %v2678
      %v2733 = vmul.f32 %v2714, %v2679
      %v2734 = vadd.f32 %v2590, %v2716
      %v2735 = vadd.f32 %v2591, %v2717
      %v2736 = vadd.f32 %v2592, %v2718
      %v2737 = vadd.f32 %v2593, %v2719
      %v2738 = vadd.f32 %v2594, %v2720
      %v2739 = vadd.f32 %v2595, %v2721
      %v2740 = vadd.f32 %v2596, %v2722
      %v2741 = vadd.f32 %v2597, %v2723
      %v2742 = vadd.f32 %v2598, %v2724
      %v2743 = vadd.f32 %v2599, %v2725
      %v2744 = vadd.f32 %v2600, %v2726
      %v2745 = vadd.f32 %v2601, %v2727
      %v2746 = vadd.f32 %v2602, %v2728
      %v2747 = vadd.f32 %v2603, %v2729
      %v2748 = vadd.f32 %v2604, %v2730
      %v2749 = vadd.f32 %v2605, %v2731
      %v2750 = vadd.f32 %v2606, %v2732
      %v2751 = vadd.f32 %v2607, %v2733
      %2752 = vrot.lane.b32.xlu0 %v2085, 127
      %v2753 = vpop.permute.xlu0 %2752
      %2754 = vrot.lane.b32.xlu0 %v2087, 127
      %v2755 = vpop.permute.xlu0 %2754
      %2756 = vrot.lane.b32.xlu0 %v2089, 127
      %v2757 = vpop.permute.xlu0 %2756
      %2758 = vrot.lane.b32.xlu0 %v2091, 127
      %v2759 = vpop.permute.xlu0 %2758
      %2760 = vrot.lane.b32.xlu0 %v2093, 127
      %v2761 = vpop.permute.xlu0 %2760
      %2762 = vrot.lane.b32.xlu0 %v2095, 127
      %v2763 = vpop.permute.xlu0 %2762
      %2764 = vrot.lane.b32.xlu0 %v2097, 127
      %v2765 = vpop.permute.xlu0 %2764
      %2766 = vrot.lane.b32.xlu0 %v2099, 127
      %v2767 = vpop.permute.xlu0 %2766
      %2768 = vrot.lane.b32.xlu0 %v2101, 127
      %v2769 = vpop.permute.xlu0 %2768
      %2770 = vrot.lane.b32.xlu0 %v2086, 127
      %v2771 = vpop.permute.xlu0 %2770
      %2772 = vrot.lane.b32.xlu0 %v2088, 127
      %v2773 = vpop.permute.xlu0 %2772
      %2774 = vrot.lane.b32.xlu0 %v2090, 127
      %v2775 = vpop.permute.xlu0 %2774
      %2776 = vrot.lane.b32.xlu0 %v2092, 127
      %v2777 = vpop.permute.xlu0 %2776
      %2778 = vrot.lane.b32.xlu0 %v2094, 127
      %v2779 = vpop.permute.xlu0 %2778
      %2780 = vrot.lane.b32.xlu0 %v2096, 127
      %v2781 = vpop.permute.xlu0 %2780
      %2782 = vrot.lane.b32.xlu0 %v2098, 127
      %v2783 = vpop.permute.xlu0 %2782
      %2784 = vrot.lane.b32.xlu0 %v2100, 127
      %v2785 = vpop.permute.xlu0 %2784
      %2786 = vrot.lane.b32.xlu0 %v2102, 127
      %v2787 = vpop.permute.xlu0 %2786
      %v2788 = vsel %vm1252, %v2753, %v2771
      %v2789 = vsel %vm1252, %v2755, %v2773
      %v2790 = vsel %vm1252, %v2757, %v2775
      %v2791 = vsel %vm1252, %v2759, %v2777
      %v2792 = vsel %vm1252, %v2761, %v2779
      %v2793 = vsel %vm1252, %v2763, %v2781
      %v2794 = vsel %vm1252, %v2765, %v2783
      %v2795 = vsel %vm1252, %v2767, %v2785
      %v2796 = vsel %vm1252, %v2769, %v2787
      %v2797 = vsel %vm1252, %v2771, %v2753
      %v2798 = vsel %vm1252, %v2773, %v2755
      %v2799 = vsel %vm1252, %v2775, %v2757
      %v2800 = vsel %vm1252, %v2777, %v2759
      %v2801 = vsel %vm1252, %v2779, %v2761
      %v2802 = vsel %vm1252, %v2781, %v2763
      %v2803 = vsel %vm1252, %v2783, %v2765
      %v2804 = vsel %vm1252, %v2785, %v2767
      %v2805 = vsel %vm1252, %v2787, %v2769
      %v2806 = vmul.f32 %v2788, %v1277
      %v2807 = vmul.f32 %v2797, %v1281
      %v2808 = vmul.f32 %v2789, %v1277
      %v2809 = vmul.f32 %v2798, %v1281
      %v2810 = vmul.f32 %v2790, %v1277
      %v2811 = vmul.f32 %v2799, %v1281
      %v2812 = vmul.f32 %v2791, %v1277
      %v2813 = vmul.f32 %v2800, %v1281
      %v2814 = vmul.f32 %v2792, %v1277
      %v2815 = vmul.f32 %v2801, %v1281
      %v2816 = vmul.f32 %v2793, %v1277
      %v2817 = vmul.f32 %v2802, %v1281
      %v2818 = vmul.f32 %v2794, %v1277
      %v2819 = vmul.f32 %v2803, %v1281
      %v2820 = vmul.f32 %v2795, %v1277
      %v2821 = vmul.f32 %v2804, %v1281
      %v2822 = vmul.f32 %v2796, %v1277
      %v2823 = vmul.f32 %v2805, %v1281
      %2824 = vset.pattern.permute.xlu0 5
      %2825 = vperm.xlu0 %2824, %v2104
      %v2826 = vpop.permute.xlu0 %2825
      %2828 = vset.pattern.permute.xlu0 5
      %2829 = vperm.xlu0 %2828, %v2105
      %v2830 = vpop.permute.xlu0 %2829
      %2832 = vset.pattern.permute.xlu0 5
      %2833 = vperm.xlu0 %2832, %v2106
      %v2834 = vpop.permute.xlu0 %2833
      %2836 = vset.pattern.permute.xlu0 5
      %2837 = vperm.xlu0 %2836, %v2107
      %v2838 = vpop.permute.xlu0 %2837
      %2840 = vset.pattern.permute.xlu0 5
      %2841 = vperm.xlu0 %2840, %v2108
      %v2842 = vpop.permute.xlu0 %2841
      %2844 = vset.pattern.permute.xlu0 5
      %2845 = vperm.xlu0 %2844, %v2109
      %v2846 = vpop.permute.xlu0 %2845
      %2848 = vset.pattern.permute.xlu0 5
      %2849 = vperm.xlu0 %2848, %v2110
      %v2850 = vpop.permute.xlu0 %2849
      %2852 = vset.pattern.permute.xlu0 5
      %2853 = vperm.xlu0 %2852, %v2111
      %v2854 = vpop.permute.xlu0 %2853
      %2856 = vset.pattern.permute.xlu0 5
      %2857 = vperm.xlu0 %2856, %v2112
      %v2858 = vpop.permute.xlu0 %2857
      %v2860 = vmul.f32 %v2826, %v2806
      %v2861 = vmul.f32 %v2826, %v2807
      %v2862 = vmul.f32 %v2830, %v2808
      %v2863 = vmul.f32 %v2830, %v2809
      %v2864 = vmul.f32 %v2834, %v2810
      %v2865 = vmul.f32 %v2834, %v2811
      %v2866 = vmul.f32 %v2838, %v2812
      %v2867 = vmul.f32 %v2838, %v2813
      %v2868 = vmul.f32 %v2842, %v2814
      %v2869 = vmul.f32 %v2842, %v2815
      %v2870 = vmul.f32 %v2846, %v2816
      %v2871 = vmul.f32 %v2846, %v2817
      %v2872 = vmul.f32 %v2850, %v2818
      %v2873 = vmul.f32 %v2850, %v2819
      %v2874 = vmul.f32 %v2854, %v2820
      %v2875 = vmul.f32 %v2854, %v2821
      %v2876 = vmul.f32 %v2858, %v2822
      %v2877 = vmul.f32 %v2858, %v2823
      %v2878 = vadd.f32 %v2734, %v2860
      %v2879 = vadd.f32 %v2735, %v2861
      %v2880 = vadd.f32 %v2736, %v2862
      %v2881 = vadd.f32 %v2737, %v2863
      %v2882 = vadd.f32 %v2738, %v2864
      %v2883 = vadd.f32 %v2739, %v2865
      %v2884 = vadd.f32 %v2740, %v2866
      %v2885 = vadd.f32 %v2741, %v2867
      %v2886 = vadd.f32 %v2742, %v2868
      %v2887 = vadd.f32 %v2743, %v2869
      %v2888 = vadd.f32 %v2744, %v2870
      %v2889 = vadd.f32 %v2745, %v2871
      %v2890 = vadd.f32 %v2746, %v2872
      %v2891 = vadd.f32 %v2747, %v2873
      %v2892 = vadd.f32 %v2748, %v2874
      %v2893 = vadd.f32 %v2749, %v2875
      %v2894 = vadd.f32 %v2750, %v2876
      %v2895 = vadd.f32 %v2751, %v2877
      %2896 = vrot.lane.b32.xlu0 %v2085, 113
      %v2897 = vpop.permute.xlu0 %2896
      %2898 = vrot.lane.b32.xlu0 %v2087, 113
      %v2899 = vpop.permute.xlu0 %2898
      %2900 = vrot.lane.b32.xlu0 %v2089, 113
      %v2901 = vpop.permute.xlu0 %2900
      %2902 = vrot.lane.b32.xlu0 %v2091, 113
      %v2903 = vpop.permute.xlu0 %2902
      %2904 = vrot.lane.b32.xlu0 %v2093, 113
      %v2905 = vpop.permute.xlu0 %2904
      %2906 = vrot.lane.b32.xlu0 %v2095, 113
      %v2907 = vpop.permute.xlu0 %2906
      %2908 = vrot.lane.b32.xlu0 %v2097, 113
      %v2909 = vpop.permute.xlu0 %2908
      %2910 = vrot.lane.b32.xlu0 %v2099, 113
      %v2911 = vpop.permute.xlu0 %2910
      %2912 = vrot.lane.b32.xlu0 %v2101, 113
      %v2913 = vpop.permute.xlu0 %2912
      %2914 = vrot.lane.b32.xlu0 %v2086, 113
      %v2915 = vpop.permute.xlu0 %2914
      %2916 = vrot.lane.b32.xlu0 %v2088, 113
      %v2917 = vpop.permute.xlu0 %2916
      %2918 = vrot.lane.b32.xlu0 %v2090, 113
      %v2919 = vpop.permute.xlu0 %2918
      %2920 = vrot.lane.b32.xlu0 %v2092, 113
      %v2921 = vpop.permute.xlu0 %2920
      %2922 = vrot.lane.b32.xlu0 %v2094, 113
      %v2923 = vpop.permute.xlu0 %2922
      %2924 = vrot.lane.b32.xlu0 %v2096, 113
      %v2925 = vpop.permute.xlu0 %2924
      %2926 = vrot.lane.b32.xlu0 %v2098, 113
      %v2927 = vpop.permute.xlu0 %2926
      %2928 = vrot.lane.b32.xlu0 %v2100, 113
      %v2929 = vpop.permute.xlu0 %2928
      %2930 = vrot.lane.b32.xlu0 %v2102, 113
      %v2931 = vpop.permute.xlu0 %2930
      %v2932 = vsel %vm1410, %v2897, %v2915
      %v2933 = vsel %vm1410, %v2899, %v2917
      %v2934 = vsel %vm1410, %v2901, %v2919
      %v2935 = vsel %vm1410, %v2903, %v2921
      %v2936 = vsel %vm1410, %v2905, %v2923
      %v2937 = vsel %vm1410, %v2907, %v2925
      %v2938 = vsel %vm1410, %v2909, %v2927
      %v2939 = vsel %vm1410, %v2911, %v2929
      %v2940 = vsel %vm1410, %v2913, %v2931
      %v2941 = vsel %vm1410, %v2915, %v2897
      %v2942 = vsel %vm1410, %v2917, %v2899
      %v2943 = vsel %vm1410, %v2919, %v2901
      %v2944 = vsel %vm1410, %v2921, %v2903
      %v2945 = vsel %vm1410, %v2923, %v2905
      %v2946 = vsel %vm1410, %v2925, %v2907
      %v2947 = vsel %vm1410, %v2927, %v2909
      %v2948 = vsel %vm1410, %v2929, %v2911
      %v2949 = vsel %vm1410, %v2931, %v2913
      %v2950 = vmul.f32 %v2932, %v1435
      %v2951 = vmul.f32 %v2941, %v1439
      %v2952 = vmul.f32 %v2933, %v1435
      %v2953 = vmul.f32 %v2942, %v1439
      %v2954 = vmul.f32 %v2934, %v1435
      %v2955 = vmul.f32 %v2943, %v1439
      %v2956 = vmul.f32 %v2935, %v1435
      %v2957 = vmul.f32 %v2944, %v1439
      %v2958 = vmul.f32 %v2936, %v1435
      %v2959 = vmul.f32 %v2945, %v1439
      %v2960 = vmul.f32 %v2937, %v1435
      %v2961 = vmul.f32 %v2946, %v1439
      %v2962 = vmul.f32 %v2938, %v1435
      %v2963 = vmul.f32 %v2947, %v1439
      %v2964 = vmul.f32 %v2939, %v1435
      %v2965 = vmul.f32 %v2948, %v1439
      %v2966 = vmul.f32 %v2940, %v1435
      %v2967 = vmul.f32 %v2949, %v1439
      %2968 = vset.pattern.permute.xlu0 6
      %2969 = vperm.xlu0 %2968, %v2104
      %v2970 = vpop.permute.xlu0 %2969
      %2972 = vset.pattern.permute.xlu0 6
      %2973 = vperm.xlu0 %2972, %v2105
      %v2974 = vpop.permute.xlu0 %2973
      %2976 = vset.pattern.permute.xlu0 6
      %2977 = vperm.xlu0 %2976, %v2106
      %v2978 = vpop.permute.xlu0 %2977
      %2980 = vset.pattern.permute.xlu0 6
      %2981 = vperm.xlu0 %2980, %v2107
      %v2982 = vpop.permute.xlu0 %2981
      %2984 = vset.pattern.permute.xlu0 6
      %2985 = vperm.xlu0 %2984, %v2108
      %v2986 = vpop.permute.xlu0 %2985
      %2988 = vset.pattern.permute.xlu0 6
      %2989 = vperm.xlu0 %2988, %v2109
      %v2990 = vpop.permute.xlu0 %2989
      %2992 = vset.pattern.permute.xlu0 6
      %2993 = vperm.xlu0 %2992, %v2110
      %v2994 = vpop.permute.xlu0 %2993
      %2996 = vset.pattern.permute.xlu0 6
      %2997 = vperm.xlu0 %2996, %v2111
      %v2998 = vpop.permute.xlu0 %2997
      %3000 = vset.pattern.permute.xlu0 6
      %3001 = vperm.xlu0 %3000, %v2112
      %v3002 = vpop.permute.xlu0 %3001
      %v3004 = vmul.f32 %v2970, %v2950
      %v3005 = vmul.f32 %v2970, %v2951
      %v3006 = vmul.f32 %v2974, %v2952
      %v3007 = vmul.f32 %v2974, %v2953
      %v3008 = vmul.f32 %v2978, %v2954
      %v3009 = vmul.f32 %v2978, %v2955
      %v3010 = vmul.f32 %v2982, %v2956
      %v3011 = vmul.f32 %v2982, %v2957
      %v3012 = vmul.f32 %v2986, %v2958
      %v3013 = vmul.f32 %v2986, %v2959
      %v3014 = vmul.f32 %v2990, %v2960
      %v3015 = vmul.f32 %v2990, %v2961
      %v3016 = vmul.f32 %v2994, %v2962
      %v3017 = vmul.f32 %v2994, %v2963
      %v3018 = vmul.f32 %v2998, %v2964
      %v3019 = vmul.f32 %v2998, %v2965
      %v3020 = vmul.f32 %v3002, %v2966
      %v3021 = vmul.f32 %v3002, %v2967
      %v3022 = vadd.f32 %v2878, %v3004
      %v3023 = vadd.f32 %v2879, %v3005
      %v3024 = vadd.f32 %v2880, %v3006
      %v3025 = vadd.f32 %v2881, %v3007
      %v3026 = vadd.f32 %v2882, %v3008
      %v3027 = vadd.f32 %v2883, %v3009
      %v3028 = vadd.f32 %v2884, %v3010
      %v3029 = vadd.f32 %v2885, %v3011
      %v3030 = vadd.f32 %v2886, %v3012
      %v3031 = vadd.f32 %v2887, %v3013
      %v3032 = vadd.f32 %v2888, %v3014
      %v3033 = vadd.f32 %v2889, %v3015
      %v3034 = vadd.f32 %v2890, %v3016
      %v3035 = vadd.f32 %v2891, %v3017
      %v3036 = vadd.f32 %v2892, %v3018
      %v3037 = vadd.f32 %v2893, %v3019
      %v3038 = vadd.f32 %v2894, %v3020
      %v3039 = vadd.f32 %v2895, %v3021
      %3040 = vrot.lane.b32.xlu0 %v2085, 112
      %v3041 = vpop.permute.xlu0 %3040
      %3042 = vrot.lane.b32.xlu0 %v2087, 112
      %v3043 = vpop.permute.xlu0 %3042
      %3044 = vrot.lane.b32.xlu0 %v2089, 112
      %v3045 = vpop.permute.xlu0 %3044
      %3046 = vrot.lane.b32.xlu0 %v2091, 112
      %v3047 = vpop.permute.xlu0 %3046
      %3048 = vrot.lane.b32.xlu0 %v2093, 112
      %v3049 = vpop.permute.xlu0 %3048
      %3050 = vrot.lane.b32.xlu0 %v2095, 112
      %v3051 = vpop.permute.xlu0 %3050
      %3052 = vrot.lane.b32.xlu0 %v2097, 112
      %v3053 = vpop.permute.xlu0 %3052
      %3054 = vrot.lane.b32.xlu0 %v2099, 112
      %v3055 = vpop.permute.xlu0 %3054
      %3056 = vrot.lane.b32.xlu0 %v2101, 112
      %v3057 = vpop.permute.xlu0 %3056
      %3058 = vrot.lane.b32.xlu0 %v2086, 112
      %v3059 = vpop.permute.xlu0 %3058
      %3060 = vrot.lane.b32.xlu0 %v2088, 112
      %v3061 = vpop.permute.xlu0 %3060
      %3062 = vrot.lane.b32.xlu0 %v2090, 112
      %v3063 = vpop.permute.xlu0 %3062
      %3064 = vrot.lane.b32.xlu0 %v2092, 112
      %v3065 = vpop.permute.xlu0 %3064
      %3066 = vrot.lane.b32.xlu0 %v2094, 112
      %v3067 = vpop.permute.xlu0 %3066
      %3068 = vrot.lane.b32.xlu0 %v2096, 112
      %v3069 = vpop.permute.xlu0 %3068
      %3070 = vrot.lane.b32.xlu0 %v2098, 112
      %v3071 = vpop.permute.xlu0 %3070
      %3072 = vrot.lane.b32.xlu0 %v2100, 112
      %v3073 = vpop.permute.xlu0 %3072
      %3074 = vrot.lane.b32.xlu0 %v2102, 112
      %v3075 = vpop.permute.xlu0 %3074
      %v3076 = vsel %vm1568, %v3041, %v3059
      %v3077 = vsel %vm1568, %v3043, %v3061
      %v3078 = vsel %vm1568, %v3045, %v3063
      %v3079 = vsel %vm1568, %v3047, %v3065
      %v3080 = vsel %vm1568, %v3049, %v3067
      %v3081 = vsel %vm1568, %v3051, %v3069
      %v3082 = vsel %vm1568, %v3053, %v3071
      %v3083 = vsel %vm1568, %v3055, %v3073
      %v3084 = vsel %vm1568, %v3057, %v3075
      %v3085 = vsel %vm1568, %v3059, %v3041
      %v3086 = vsel %vm1568, %v3061, %v3043
      %v3087 = vsel %vm1568, %v3063, %v3045
      %v3088 = vsel %vm1568, %v3065, %v3047
      %v3089 = vsel %vm1568, %v3067, %v3049
      %v3090 = vsel %vm1568, %v3069, %v3051
      %v3091 = vsel %vm1568, %v3071, %v3053
      %v3092 = vsel %vm1568, %v3073, %v3055
      %v3093 = vsel %vm1568, %v3075, %v3057
      %v3094 = vmul.f32 %v3076, %v1593
      %v3095 = vmul.f32 %v3085, %v1597
      %v3096 = vmul.f32 %v3077, %v1593
      %v3097 = vmul.f32 %v3086, %v1597
      %v3098 = vmul.f32 %v3078, %v1593
      %v3099 = vmul.f32 %v3087, %v1597
      %v3100 = vmul.f32 %v3079, %v1593
      %v3101 = vmul.f32 %v3088, %v1597
      %v3102 = vmul.f32 %v3080, %v1593
      %v3103 = vmul.f32 %v3089, %v1597
      %v3104 = vmul.f32 %v3081, %v1593
      %v3105 = vmul.f32 %v3090, %v1597
      %v3106 = vmul.f32 %v3082, %v1593
      %v3107 = vmul.f32 %v3091, %v1597
      %v3108 = vmul.f32 %v3083, %v1593
      %v3109 = vmul.f32 %v3092, %v1597
      %v3110 = vmul.f32 %v3084, %v1593
      %v3111 = vmul.f32 %v3093, %v1597
      %3112 = vset.pattern.permute.xlu0 7
      %3113 = vperm.xlu0 %3112, %v2104
      %v3114 = vpop.permute.xlu0 %3113
      %3116 = vset.pattern.permute.xlu0 7
      %3117 = vperm.xlu0 %3116, %v2105
      %v3118 = vpop.permute.xlu0 %3117
      %3120 = vset.pattern.permute.xlu0 7
      %3121 = vperm.xlu0 %3120, %v2106
      %v3122 = vpop.permute.xlu0 %3121
      %3124 = vset.pattern.permute.xlu0 7
      %3125 = vperm.xlu0 %3124, %v2107
      %v3126 = vpop.permute.xlu0 %3125
      %3128 = vset.pattern.permute.xlu0 7
      %3129 = vperm.xlu0 %3128, %v2108
      %v3130 = vpop.permute.xlu0 %3129
      %3132 = vset.pattern.permute.xlu0 7
      %3133 = vperm.xlu0 %3132, %v2109
      %v3134 = vpop.permute.xlu0 %3133
      %3136 = vset.pattern.permute.xlu0 7
      %3137 = vperm.xlu0 %3136, %v2110
      %v3138 = vpop.permute.xlu0 %3137
      %3140 = vset.pattern.permute.xlu0 7
      %3141 = vperm.xlu0 %3140, %v2111
      %v3142 = vpop.permute.xlu0 %3141
      %3144 = vset.pattern.permute.xlu0 7
      %3145 = vperm.xlu0 %3144, %v2112
      %v3146 = vpop.permute.xlu0 %3145
      %v3148 = vmul.f32 %v3114, %v3094
      %v3149 = vmul.f32 %v3114, %v3095
      %v3150 = vmul.f32 %v3118, %v3096
      %v3151 = vmul.f32 %v3118, %v3097
      %v3152 = vmul.f32 %v3122, %v3098
      %v3153 = vmul.f32 %v3122, %v3099
      %v3154 = vmul.f32 %v3126, %v3100
      %v3155 = vmul.f32 %v3126, %v3101
      %v3156 = vmul.f32 %v3130, %v3102
      %v3157 = vmul.f32 %v3130, %v3103
      %v3158 = vmul.f32 %v3134, %v3104
      %v3159 = vmul.f32 %v3134, %v3105
      %v3160 = vmul.f32 %v3138, %v3106
      %v3161 = vmul.f32 %v3138, %v3107
      %v3162 = vmul.f32 %v3142, %v3108
      %v3163 = vmul.f32 %v3142, %v3109
      %v3164 = vmul.f32 %v3146, %v3110
      %v3165 = vmul.f32 %v3146, %v3111
      %v3166 = vadd.f32 %v3022, %v3148
      %v3167 = vadd.f32 %v3023, %v3149
      %v3168 = vadd.f32 %v3024, %v3150
      %v3169 = vadd.f32 %v3025, %v3151
      %v3170 = vadd.f32 %v3026, %v3152
      %v3171 = vadd.f32 %v3027, %v3153
      %v3172 = vadd.f32 %v3028, %v3154
      %v3173 = vadd.f32 %v3029, %v3155
      %v3174 = vadd.f32 %v3030, %v3156
      %v3175 = vadd.f32 %v3031, %v3157
      %v3176 = vadd.f32 %v3032, %v3158
      %v3177 = vadd.f32 %v3033, %v3159
      %v3178 = vadd.f32 %v3034, %v3160
      %v3179 = vadd.f32 %v3035, %v3161
      %v3180 = vadd.f32 %v3036, %v3162
      %v3181 = vadd.f32 %v3037, %v3163
      %v3182 = vadd.f32 %v3038, %v3164
      %v3183 = vadd.f32 %v3039, %v3165
      %3184 = vrot.lane.b32.xlu0 %v2085, 111
      %v3185 = vpop.permute.xlu0 %3184
      %3186 = vrot.lane.b32.xlu0 %v2087, 111
      %v3187 = vpop.permute.xlu0 %3186
      %3188 = vrot.lane.b32.xlu0 %v2089, 111
      %v3189 = vpop.permute.xlu0 %3188
      %3190 = vrot.lane.b32.xlu0 %v2091, 111
      %v3191 = vpop.permute.xlu0 %3190
      %3192 = vrot.lane.b32.xlu0 %v2093, 111
      %v3193 = vpop.permute.xlu0 %3192
      %3194 = vrot.lane.b32.xlu0 %v2095, 111
      %v3195 = vpop.permute.xlu0 %3194
      %3196 = vrot.lane.b32.xlu0 %v2097, 111
      %v3197 = vpop.permute.xlu0 %3196
      %3198 = vrot.lane.b32.xlu0 %v2099, 111
      %v3199 = vpop.permute.xlu0 %3198
      %3200 = vrot.lane.b32.xlu0 %v2101, 111
      %v3201 = vpop.permute.xlu0 %3200
      %3202 = vrot.lane.b32.xlu0 %v2086, 111
      %v3203 = vpop.permute.xlu0 %3202
      %3204 = vrot.lane.b32.xlu0 %v2088, 111
      %v3205 = vpop.permute.xlu0 %3204
      %3206 = vrot.lane.b32.xlu0 %v2090, 111
      %v3207 = vpop.permute.xlu0 %3206
      %3208 = vrot.lane.b32.xlu0 %v2092, 111
      %v3209 = vpop.permute.xlu0 %3208
      %3210 = vrot.lane.b32.xlu0 %v2094, 111
      %v3211 = vpop.permute.xlu0 %3210
      %3212 = vrot.lane.b32.xlu0 %v2096, 111
      %v3213 = vpop.permute.xlu0 %3212
      %3214 = vrot.lane.b32.xlu0 %v2098, 111
      %v3215 = vpop.permute.xlu0 %3214
      %3216 = vrot.lane.b32.xlu0 %v2100, 111
      %v3217 = vpop.permute.xlu0 %3216
      %3218 = vrot.lane.b32.xlu0 %v2102, 111
      %v3219 = vpop.permute.xlu0 %3218
      %v3220 = vsel %vm1726, %v3185, %v3203
      %v3221 = vsel %vm1726, %v3187, %v3205
      %v3222 = vsel %vm1726, %v3189, %v3207
      %v3223 = vsel %vm1726, %v3191, %v3209
      %v3224 = vsel %vm1726, %v3193, %v3211
      %v3225 = vsel %vm1726, %v3195, %v3213
      %v3226 = vsel %vm1726, %v3197, %v3215
      %v3227 = vsel %vm1726, %v3199, %v3217
      %v3228 = vsel %vm1726, %v3201, %v3219
      %v3229 = vsel %vm1726, %v3203, %v3185
      %v3230 = vsel %vm1726, %v3205, %v3187
      %v3231 = vsel %vm1726, %v3207, %v3189
      %v3232 = vsel %vm1726, %v3209, %v3191
      %v3233 = vsel %vm1726, %v3211, %v3193
      %v3234 = vsel %vm1726, %v3213, %v3195
      %v3235 = vsel %vm1726, %v3215, %v3197
      %v3236 = vsel %vm1726, %v3217, %v3199
      %v3237 = vsel %vm1726, %v3219, %v3201
      %v3238 = vmul.f32 %v3220, %v1751
      %v3239 = vmul.f32 %v3229, %v1755
      %v3240 = vmul.f32 %v3221, %v1751
      %v3241 = vmul.f32 %v3230, %v1755
      %v3242 = vmul.f32 %v3222, %v1751
      %v3243 = vmul.f32 %v3231, %v1755
      %v3244 = vmul.f32 %v3223, %v1751
      %v3245 = vmul.f32 %v3232, %v1755
      %v3246 = vmul.f32 %v3224, %v1751
      %v3247 = vmul.f32 %v3233, %v1755
      %v3248 = vmul.f32 %v3225, %v1751
      %v3249 = vmul.f32 %v3234, %v1755
      %v3250 = vmul.f32 %v3226, %v1751
      %v3251 = vmul.f32 %v3235, %v1755
      %v3252 = vmul.f32 %v3227, %v1751
      %v3253 = vmul.f32 %v3236, %v1755
      %v3254 = vmul.f32 %v3228, %v1751
      %v3255 = vmul.f32 %v3237, %v1755
      %3256 = vset.pattern.permute.xlu0 8
      %3257 = vperm.xlu0 %3256, %v2104
      %v3258 = vpop.permute.xlu0 %3257
      %3260 = vset.pattern.permute.xlu0 8
      %3261 = vperm.xlu0 %3260, %v2105
      %v3262 = vpop.permute.xlu0 %3261
      %3264 = vset.pattern.permute.xlu0 8
      %3265 = vperm.xlu0 %3264, %v2106
      %v3266 = vpop.permute.xlu0 %3265
      %3268 = vset.pattern.permute.xlu0 8
      %3269 = vperm.xlu0 %3268, %v2107
      %v3270 = vpop.permute.xlu0 %3269
      %3272 = vset.pattern.permute.xlu0 8
      %3273 = vperm.xlu0 %3272, %v2108
      %v3274 = vpop.permute.xlu0 %3273
      %3276 = vset.pattern.permute.xlu0 8
      %3277 = vperm.xlu0 %3276, %v2109
      %v3278 = vpop.permute.xlu0 %3277
      %3280 = vset.pattern.permute.xlu0 8
      %3281 = vperm.xlu0 %3280, %v2110
      %v3282 = vpop.permute.xlu0 %3281
      %3284 = vset.pattern.permute.xlu0 8
      %3285 = vperm.xlu0 %3284, %v2111
      %v3286 = vpop.permute.xlu0 %3285
      %3288 = vset.pattern.permute.xlu0 8
      %3289 = vperm.xlu0 %3288, %v2112
      %v3290 = vpop.permute.xlu0 %3289
      %v3292 = vmul.f32 %v3258, %v3238
      %v3293 = vmul.f32 %v3258, %v3239
      %v3294 = vmul.f32 %v3262, %v3240
      %v3295 = vmul.f32 %v3262, %v3241
      %v3296 = vmul.f32 %v3266, %v3242
      %v3297 = vmul.f32 %v3266, %v3243
      %v3298 = vmul.f32 %v3270, %v3244
      %v3299 = vmul.f32 %v3270, %v3245
      %v3300 = vmul.f32 %v3274, %v3246
      %v3301 = vmul.f32 %v3274, %v3247
      %v3302 = vmul.f32 %v3278, %v3248
      %v3303 = vmul.f32 %v3278, %v3249
      %v3304 = vmul.f32 %v3282, %v3250
      %v3305 = vmul.f32 %v3282, %v3251
      %v3306 = vmul.f32 %v3286, %v3252
      %v3307 = vmul.f32 %v3286, %v3253
      %v3308 = vmul.f32 %v3290, %v3254
      %v3309 = vmul.f32 %v3290, %v3255
      %v3310 = vadd.f32 %v3166, %v3292
      %v3311 = vadd.f32 %v3167, %v3293
      %v3312 = vadd.f32 %v3168, %v3294
      %v3313 = vadd.f32 %v3169, %v3295
      %v3314 = vadd.f32 %v3170, %v3296
      %v3315 = vadd.f32 %v3171, %v3297
      %v3316 = vadd.f32 %v3172, %v3298
      %v3317 = vadd.f32 %v3173, %v3299
      %v3318 = vadd.f32 %v3174, %v3300
      %v3319 = vadd.f32 %v3175, %v3301
      %v3320 = vadd.f32 %v3176, %v3302
      %v3321 = vadd.f32 %v3177, %v3303
      %v3322 = vadd.f32 %v3178, %v3304
      %v3323 = vadd.f32 %v3179, %v3305
      %v3324 = vadd.f32 %v3180, %v3306
      %v3325 = vadd.f32 %v3181, %v3307
      %v3326 = vadd.f32 %v3182, %v3308
      %v3327 = vadd.f32 %v3183, %v3309
      %3328 = vset.pattern.permute.xlu0 5
      %3329 = vperm.xlu0 %3328, %v311
      %v3330 = vpop.permute.xlu0 %3329
      %3332 = vset.pattern.permute.xlu0 5
      %3333 = vperm.xlu0 %3332, %v312
      %v3334 = vpop.permute.xlu0 %3333
      %3336 = vset.pattern.permute.xlu0 5
      %3337 = vperm.xlu0 %3336, %v313
      %v3338 = vpop.permute.xlu0 %3337
      %3340 = vset.pattern.permute.xlu0 5
      %3341 = vperm.xlu0 %3340, %v314
      %v3342 = vpop.permute.xlu0 %3341
      %3344 = vset.pattern.permute.xlu0 5
      %3345 = vperm.xlu0 %3344, %v315
      %v3346 = vpop.permute.xlu0 %3345
      %3348 = vset.pattern.permute.xlu0 5
      %3349 = vperm.xlu0 %3348, %v316
      %v3350 = vpop.permute.xlu0 %3349
      %3352 = vset.pattern.permute.xlu0 5
      %3353 = vperm.xlu0 %3352, %v317
      %v3354 = vpop.permute.xlu0 %3353
      %3356 = vset.pattern.permute.xlu0 5
      %3357 = vperm.xlu0 %3356, %v318
      %v3358 = vpop.permute.xlu0 %3357
      %3360 = vset.pattern.permute.xlu0 5
      %3361 = vperm.xlu0 %3360, %v319
      %v3362 = vpop.permute.xlu0 %3361
      %v3364 = vadd.f32 %v3310, %v3330
      %v3365 = vadd.f32 %v3311, %v3330
      %v3366 = vadd.f32 %v3312, %v3334
      %v3367 = vadd.f32 %v3313, %v3334
      %v3368 = vadd.f32 %v3314, %v3338
      %v3369 = vadd.f32 %v3315, %v3338
      %v3370 = vadd.f32 %v3316, %v3342
      %v3371 = vadd.f32 %v3317, %v3342
      %v3372 = vadd.f32 %v3318, %v3346
      %v3373 = vadd.f32 %v3319, %v3346
      %v3374 = vadd.f32 %v3320, %v3350
      %v3375 = vadd.f32 %v3321, %v3350
      %v3376 = vadd.f32 %v3322, %v3354
      %v3377 = vadd.f32 %v3323, %v3354
      %v3378 = vadd.f32 %v3324, %v3358
      %v3379 = vadd.f32 %v3325, %v3358
      %v3380 = vadd.f32 %v3326, %v3362
      %v3381 = vadd.f32 %v3327, %v3362
      %v3382 = vmax.f32 %v3364, 0.0
      %v3383 = vmax.f32 %v3365, 0.0
      %v3384 = vmax.f32 %v3366, 0.0
      %v3385 = vmax.f32 %v3367, 0.0
      %v3386 = vmax.f32 %v3368, 0.0
      %v3387 = vmax.f32 %v3369, 0.0
      %v3388 = vmax.f32 %v3370, 0.0
      %v3389 = vmax.f32 %v3371, 0.0
      %v3390 = vmax.f32 %v3372, 0.0
      %v3391 = vmax.f32 %v3373, 0.0
      %v3392 = vmax.f32 %v3374, 0.0
      %v3393 = vmax.f32 %v3375, 0.0
      %v3394 = vmax.f32 %v3376, 0.0
      %v3395 = vmax.f32 %v3377, 0.0
      %v3396 = vmax.f32 %v3378, 0.0
      %v3397 = vmax.f32 %v3379, 0.0
      %v3398 = vmax.f32 %v3380, 0.0
      %v3399 = vmax.f32 %v3381, 0.0
      %v3400 = vadd.f32 %v1902, %v3382
      %v3401 = vadd.f32 %v1903, %v3383
      %v3402 = vadd.f32 %v1904, %v3384
      %v3403 = vadd.f32 %v1905, %v3385
      %v3404 = vadd.f32 %v1906, %v3386
      %v3405 = vadd.f32 %v1907, %v3387
      %v3406 = vadd.f32 %v1908, %v3388
      %v3407 = vadd.f32 %v1909, %v3389
      %v3408 = vadd.f32 %v1910, %v3390
      %v3409 = vadd.f32 %v1911, %v3391
      %v3410 = vadd.f32 %v1912, %v3392
      %v3411 = vadd.f32 %v1913, %v3393
      %v3412 = vadd.f32 %v1914, %v3394
      %v3413 = vadd.f32 %v1915, %v3395
      %v3414 = vadd.f32 %v1916, %v3396
      %v3415 = vadd.f32 %v1917, %v3397
      %v3416 = vadd.f32 %v1918, %v3398
      %v3417 = vadd.f32 %v1919, %v3399
      %v3418 = vld [vmem:[%s266] sm:$0xff]
      %v3419 = vld [vmem:[%s266 + $0x8] sm:$0xff]
      %v3420 = vld [vmem:[%s266 + $0x10] sm:$0xff]
      %v3421 = vld [vmem:[%s266 + $0x18] sm:$0xff]
      %v3422 = vld [vmem:[%s266 + $0x20] sm:$0xff]
      %v3423 = vld [vmem:[%s266 + $0x28] sm:$0xff]
      %v3424 = vld [vmem:[%s266 + $0x30] sm:$0xff]
      %v3425 = vld [vmem:[%s266 + $0x38] sm:$0xff]
      %v3426 = vld [vmem:[%s266 + $0x40] sm:$0xff]
      %v3427 = vld [vmem:[%s266 + $0x48] sm:$0xff]
      %v3428 = vld [vmem:[%s266 + $0x50] sm:$0xff]
      %v3429 = vld [vmem:[%s266 + $0x58] sm:$0xff]
      %v3430 = vld [vmem:[%s266 + $0x60] sm:$0xff]
      %v3431 = vld [vmem:[%s266 + $0x68] sm:$0xff]
      %v3432 = vld [vmem:[%s266 + $0x70] sm:$0xff]
      %v3433 = vld [vmem:[%s266 + $0x78] sm:$0xff]
      %v3434 = vld [vmem:[%s266 + $0x80] sm:$0xff]
      %v3435 = vld [vmem:[%s266 + $0x88] sm:$0xff]
      %v3436 = vld [vmem:[%s3] sm:$0xf]
      %v3437 = vld [vmem:[%s3 + $0x4] sm:$0xf]
      %v3438 = vld [vmem:[%s3 + $0x8] sm:$0xf]
      %v3439 = vld [vmem:[%s3 + $0xc] sm:$0xf]
      %v3440 = vld [vmem:[%s3 + $0x10] sm:$0xf]
      %v3441 = vld [vmem:[%s3 + $0x14] sm:$0xf]
      %v3442 = vld [vmem:[%s3 + $0x18] sm:$0xf]
      %v3443 = vld [vmem:[%s3 + $0x1c] sm:$0xf]
      %v3444 = vld [vmem:[%s3 + $0x20] sm:$0xf]
      %v3445 = vpack.c.bf16 %v3420, %v3418
      %v3446 = vpack.c.bf16 %v3421, %v3419
      %v3447 = vpack.c.bf16 %v3424, %v3422
      %v3448 = vpack.c.bf16 %v3425, %v3423
      %v3449 = vpack.c.bf16 %v3428, %v3426
      %v3450 = vpack.c.bf16 %v3429, %v3427
      %v3451 = vpack.c.bf16 %v3432, %v3430
      %v3452 = vpack.c.bf16 %v3433, %v3431
      %v3453 = vpack.c.bf16 %v3434, %v3434
      %v3454 = vpack.c.bf16 %v3435, %v3435
      %3455 = vset.pattern.permute.xlu0 0
      %3456 = vperm.xlu0 %3455, %v311
      %v3457 = vpop.permute.xlu0 %3456
      %3459 = vset.pattern.permute.xlu0 0
      %3460 = vperm.xlu0 %3459, %v312
      %v3461 = vpop.permute.xlu0 %3460
      %3463 = vset.pattern.permute.xlu0 0
      %3464 = vperm.xlu0 %3463, %v313
      %v3465 = vpop.permute.xlu0 %3464
      %3467 = vset.pattern.permute.xlu0 0
      %3468 = vperm.xlu0 %3467, %v314
      %v3469 = vpop.permute.xlu0 %3468
      %3471 = vset.pattern.permute.xlu0 0
      %3472 = vperm.xlu0 %3471, %v315
      %v3473 = vpop.permute.xlu0 %3472
      %3475 = vset.pattern.permute.xlu0 0
      %3476 = vperm.xlu0 %3475, %v316
      %v3477 = vpop.permute.xlu0 %3476
      %3479 = vset.pattern.permute.xlu0 0
      %3480 = vperm.xlu0 %3479, %v317
      %v3481 = vpop.permute.xlu0 %3480
      %3483 = vset.pattern.permute.xlu0 0
      %3484 = vperm.xlu0 %3483, %v318
      %v3485 = vpop.permute.xlu0 %3484
      %3487 = vset.pattern.permute.xlu0 0
      %3488 = vperm.xlu0 %3487, %v319
      %v3489 = vpop.permute.xlu0 %3488
      %v3500 = vunpack.c.l.b16 %v3436
      %v3501 = vunpack.c.l.b16 %v3437
      %v3502 = vunpack.c.l.b16 %v3438
      %v3503 = vunpack.c.l.b16 %v3439
      %v3504 = vunpack.c.l.b16 %v3440
      %v3505 = vunpack.c.l.b16 %v3441
      %v3506 = vunpack.c.l.b16 %v3442
      %v3507 = vunpack.c.l.b16 %v3443
      %v3508 = vunpack.c.l.b16 %v3444
      %v3509 = vpack.c.b16 %v3501, %v3500
      %v3510 = vpack.c.b16 %v3503, %v3502
      %v3511 = vpack.c.b16 %v3505, %v3504
      %v3512 = vpack.c.b16 %v3507, %v3506
      %v3513 = vpack.c.b16 %v3508, %v3508
      %v3515 = vsel %vm388, %v3509, 0
      %v3518 = vsel %vm388, %v3510, 0
      %v3521 = vsel %vm388, %v3511, 0
      %v3524 = vsel %vm388, %v3512, 0
      %v3527 = vsel %vm388, %v3513, 0
      %v3530 = vsel %vm404, %v3453, 0
      %v3533 = vsel %vm404, %v3454, 0
      %3535 = vmatprep.subr.bf16.mxu0 %v3446
      %3536 = vmatpush1.bf16.msra.mxu0 %v3445
      %3537 = vmatprep.subr.bf16.mxu0 %v3448
      %3538 = vmatpush1.bf16.msra.mxu0 %v3447
      %3539 = vmatprep.subr.bf16.mxu0 %v3450
      %3540 = vmatpush1.bf16.msra.mxu0 %v3449
      %3541 = vmatprep.subr.bf16.mxu0 %v3452
      %3542 = vmatpush1.bf16.msra.mxu0 %v3451
      %3543 = vmatprep.subr.bf16.mxu0 %v3533
      %3544 = vmatpush1.bf16.msra.mxu0 %v3530
      %3545 = vmatprep.subr.bf16.mxu0 0
      %3546 = vmatpush1.bf16.msra.mxu0 0
      %3547 = vmatprep.subr.bf16.mxu0 0
      %3548 = vmatpush1.bf16.msra.mxu0 0
      %3549 = vmatprep.subr.bf16.mxu0 0
      %3550 = vmatpush1.bf16.msra.mxu0 0
      %3551 = vmatprep.subr.bf16.mxu0 0
      %3552 = vmatpush1.bf16.msra.mxu0 0
      %3553 = vmatprep.subr.bf16.mxu0 0
      %3554 = vmatpush1.bf16.msra.mxu0 0
      %3555 = vmatprep.subr.bf16.mxu0 0
      %3556 = vmatpush1.bf16.msra.mxu0 0
      %3557 = vmatprep.subr.bf16.mxu0 0
      %3558 = vmatpush1.bf16.msra.mxu0 0
      %3559 = vmatprep.subr.bf16.mxu0 0
      %3560 = vmatpush1.bf16.msra.mxu0 0
      %3561 = vmatprep.subr.bf16.mxu0 0
      %3562 = vmatpush1.bf16.msra.mxu0 0
      %3563 = vmatprep.subr.bf16.mxu0 0
      %3564 = vmatpush1.bf16.msra.mxu0 0
      %3565 = vmatprep.subr.bf16.mxu0 0
      %3566 = vmatpush1.bf16.msra.mxu0 0
      %3567 = vmatprep.mubr.bf16.mxu0 0
      %3568 = vmatmul.mubr.bf16.gmra.mrb[0].mxu0 %v3515
      %v3569 = vpop.f32.mrb[0].mxu0
      %v3570 = vadd.f32 %v3457, %v3569
      %v3571 = vpop.f32.mrb[0].mxu0
      %v3572 = vadd.f32 %v3457, %v3571
      %v3573 = vpop.f32.mrb[0].mxu0
      %v3574 = vadd.f32 %v3461, %v3573
      %v3575 = vpop.f32.mrb[0].mxu0
      %v3576 = vadd.f32 %v3461, %v3575
      %3577 = vmatprep.mubr.bf16.mxu0 0
      %3578 = vmatmul.mubr.bf16.gmra.mrb[0].mxu0 %v3518
      %v3579 = vpop.f32.mrb[0].mxu0
      %v3580 = vadd.f32 %v3465, %v3579
      %v3581 = vpop.f32.mrb[0].mxu0
      %v3582 = vadd.f32 %v3465, %v3581
      %v3583 = vpop.f32.mrb[0].mxu0
      %v3584 = vadd.f32 %v3469, %v3583
      %v3585 = vpop.f32.mrb[0].mxu0
      %v3586 = vadd.f32 %v3469, %v3585
      %3587 = vmatprep.mubr.bf16.mxu0 0
      %3588 = vmatmul.mubr.bf16.gmra.mrb[0].mxu0 %v3521
      %v3589 = vpop.f32.mrb[0].mxu0
      %v3590 = vadd.f32 %v3473, %v3589
      %v3591 = vpop.f32.mrb[0].mxu0
      %v3592 = vadd.f32 %v3473, %v3591
      %v3593 = vpop.f32.mrb[0].mxu0
      %v3594 = vadd.f32 %v3477, %v3593
      %v3595 = vpop.f32.mrb[0].mxu0
      %v3596 = vadd.f32 %v3477, %v3595
      %3597 = vmatprep.mubr.bf16.mxu0 0
      %3598 = vmatmul.mubr.bf16.gmra.mrb[0].mxu0 %v3524
      %v3599 = vpop.f32.mrb[0].mxu0
      %v3600 = vadd.f32 %v3481, %v3599
      %v3601 = vpop.f32.mrb[0].mxu0
      %v3602 = vadd.f32 %v3481, %v3601
      %v3603 = vpop.f32.mrb[0].mxu0
      %v3604 = vadd.f32 %v3485, %v3603
      %v3605 = vpop.f32.mrb[0].mxu0
      %v3606 = vadd.f32 %v3485, %v3605
      %3607 = vmatprep.mubr.bf16.mxu0 0
      %3608 = vmatmul.mubr.bf16.gmra.mrb[0].mxu0 %v3527
      %v3609 = vpop.f32.mrb[0].mxu0
      %v3610 = vadd.f32 %v3489, %v3609
      %v3611 = vpop.f32.mrb[0].mxu0
      %v3612 = vadd.f32 %v3489, %v3611
      %v3613 = vpop.f32.mrb[0].mxu0
      %v3614 = vpop.f32.mrb[0].mxu0
      %3615 = vdwg.mxu0
      %v3616 = vmul.f32 %v3570, 0.70710677
      %v3617 = vmul.f32 %v3572, 0.70710677
      %v3618 = vmul.f32 %v3574, 0.70710677
      %v3619 = vmul.f32 %v3576, 0.70710677
      %v3620 = vmul.f32 %v3580, 0.70710677
      %v3621 = vmul.f32 %v3582, 0.70710677
      %v3622 = vmul.f32 %v3584, 0.70710677
      %v3623 = vmul.f32 %v3586, 0.70710677
      %v3624 = vmul.f32 %v3590, 0.70710677
      %v3625 = vmul.f32 %v3592, 0.70710677
      %v3626 = vmul.f32 %v3594, 0.70710677
      %v3627 = vmul.f32 %v3596, 0.70710677
      %v3628 = vmul.f32 %v3600, 0.70710677
      %v3629 = vmul.f32 %v3602, 0.70710677
      %v3630 = vmul.f32 %v3604, 0.70710677
      %v3631 = vmul.f32 %v3606, 0.70710677
      %v3632 = vmul.f32 %v3610, 0.70710677
      %v3633 = vmul.f32 %v3612, 0.70710677
      %v3634 = vand.u32 2147483647, %v3616
      %v3635 = vand.u32 2147483647, %v3617
      %v3636 = vand.u32 2147483647, %v3618
      %v3637 = vand.u32 2147483647, %v3619
      %v3638 = vand.u32 2147483647, %v3620
      %v3639 = vand.u32 2147483647, %v3621
      %v3640 = vand.u32 2147483647, %v3622
      %v3641 = vand.u32 2147483647, %v3623
      %v3642 = vand.u32 2147483647, %v3624
      %v3643 = vand.u32 2147483647, %v3625
      %v3644 = vand.u32 2147483647, %v3626
      %v3645 = vand.u32 2147483647, %v3627
      %v3646 = vand.u32 2147483647, %v3628
      %v3647 = vand.u32 2147483647, %v3629
      %v3648 = vand.u32 2147483647, %v3630
      %v3649 = vand.u32 2147483647, %v3631
      %v3650 = vand.u32 2147483647, %v3632
      %v3651 = vand.u32 2147483647, %v3633
      %v3652 = vmul.f32 %v3634, 0.3275911
      %v3653 = vmul.f32 %v3635, 0.3275911
      %v3654 = vmul.f32 %v3636, 0.3275911
      %v3655 = vmul.f32 %v3637, 0.3275911
      %v3656 = vmul.f32 %v3638, 0.3275911
      %v3657 = vmul.f32 %v3639, 0.3275911
      %v3658 = vmul.f32 %v3640, 0.3275911
      %v3659 = vmul.f32 %v3641, 0.3275911
      %v3660 = vmul.f32 %v3642, 0.3275911
      %v3661 = vmul.f32 %v3643, 0.3275911
      %v3662 = vmul.f32 %v3644, 0.3275911
      %v3663 = vmul.f32 %v3645, 0.3275911
      %v3664 = vmul.f32 %v3646, 0.3275911
      %v3665 = vmul.f32 %v3647, 0.3275911
      %v3666 = vmul.f32 %v3648, 0.3275911
      %v3667 = vmul.f32 %v3649, 0.3275911
      %v3668 = vmul.f32 %v3650, 0.3275911
      %v3669 = vmul.f32 %v3651, 0.3275911
      %v3670 = vadd.f32 %v3652, 1.0
      %v3671 = vadd.f32 %v3653, 1.0
      %v3672 = vadd.f32 %v3654, 1.0
      %v3673 = vadd.f32 %v3655, 1.0
      %v3674 = vadd.f32 %v3656, 1.0
      %v3675 = vadd.f32 %v3657, 1.0
      %v3676 = vadd.f32 %v3658, 1.0
      %v3677 = vadd.f32 %v3659, 1.0
      %v3678 = vadd.f32 %v3660, 1.0
      %v3679 = vadd.f32 %v3661, 1.0
      %v3680 = vadd.f32 %v3662, 1.0
      %v3681 = vadd.f32 %v3663, 1.0
      %v3682 = vadd.f32 %v3664, 1.0
      %v3683 = vadd.f32 %v3665, 1.0
      %v3684 = vadd.f32 %v3666, 1.0
      %v3685 = vadd.f32 %v3667, 1.0
      %v3686 = vadd.f32 %v3668, 1.0
      %v3687 = vadd.f32 %v3669, 1.0
      %v3688 = vrcp.pop %v3670
      %v3689 = vrcp.pop %v3671
      %v3690 = vrcp.pop %v3672
      %v3691 = vrcp.pop %v3673
      %v3692 = vrcp.pop %v3674
      %v3693 = vrcp.pop %v3675
      %v3694 = vrcp.pop %v3676
      %v3695 = vrcp.pop %v3677
      %v3696 = vrcp.pop %v3678
      %v3697 = vrcp.pop %v3679
      %v3698 = vrcp.pop %v3680
      %v3699 = vrcp.pop %v3681
      %v3700 = vrcp.pop %v3682
      %v3701 = vrcp.pop %v3683
      %v3702 = vrcp.pop %v3684
      %v3703 = vrcp.pop %v3685
      %v3704 = vrcp.pop %v3686
      %v3705 = vrcp.pop %v3687
      %v3706 = vmul.f32 %v3688, 1.0614054
      %v3707 = vmul.f32 %v3689, 1.0614054
      %v3708 = vmul.f32 %v3690, 1.0614054
      %v3709 = vmul.f32 %v3691, 1.0614054
      %v3710 = vmul.f32 %v3692, 1.0614054
      %v3711 = vmul.f32 %v3693, 1.0614054
      %v3712 = vmul.f32 %v3694, 1.0614054
      %v3713 = vmul.f32 %v3695, 1.0614054
      %v3714 = vmul.f32 %v3696, 1.0614054
      %v3715 = vmul.f32 %v3697, 1.0614054
      %v3716 = vmul.f32 %v3698, 1.0614054
      %v3717 = vmul.f32 %v3699, 1.0614054
      %v3718 = vmul.f32 %v3700, 1.0614054
      %v3719 = vmul.f32 %v3701, 1.0614054
      %v3720 = vmul.f32 %v3702, 1.0614054
      %v3721 = vmul.f32 %v3703, 1.0614054
      %v3722 = vmul.f32 %v3704, 1.0614054
      %v3723 = vmul.f32 %v3705, 1.0614054
      %v3724 = vadd.f32 %v3706, -1.4531521
      %v3725 = vadd.f32 %v3707, -1.4531521
      %v3726 = vadd.f32 %v3708, -1.4531521
      %v3727 = vadd.f32 %v3709, -1.4531521
      %v3728 = vadd.f32 %v3710, -1.4531521
      %v3729 = vadd.f32 %v3711, -1.4531521
      %v3730 = vadd.f32 %v3712, -1.4531521
      %v3731 = vadd.f32 %v3713, -1.4531521
      %v3732 = vadd.f32 %v3714, -1.4531521
      %v3733 = vadd.f32 %v3715, -1.4531521
      %v3734 = vadd.f32 %v3716, -1.4531521
      %v3735 = vadd.f32 %v3717, -1.4531521
      %v3736 = vadd.f32 %v3718, -1.4531521
      %v3737 = vadd.f32 %v3719, -1.4531521
      %v3738 = vadd.f32 %v3720, -1.4531521
      %v3739 = vadd.f32 %v3721, -1.4531521
      %v3740 = vadd.f32 %v3722, -1.4531521
      %v3741 = vadd.f32 %v3723, -1.4531521
      %v3742 = vmul.f32 %v3688, %v3724
      %v3743 = vmul.f32 %v3689, %v3725
      %v3744 = vmul.f32 %v3690, %v3726
      %v3745 = vmul.f32 %v3691, %v3727
      %v3746 = vmul.f32 %v3692, %v3728
      %v3747 = vmul.f32 %v3693, %v3729
      %v3748 = vmul.f32 %v3694, %v3730
      %v3749 = vmul.f32 %v3695, %v3731
      %v3750 = vmul.f32 %v3696, %v3732
      %v3751 = vmul.f32 %v3697, %v3733
      %v3752 = vmul.f32 %v3698, %v3734
      %v3753 = vmul.f32 %v3699, %v3735
      %v3754 = vmul.f32 %v3700, %v3736
      %v3755 = vmul.f32 %v3701, %v3737
      %v3756 = vmul.f32 %v3702, %v3738
      %v3757 = vmul.f32 %v3703, %v3739
      %v3758 = vmul.f32 %v3704, %v3740
      %v3759 = vmul.f32 %v3705, %v3741
      %v3760 = vadd.f32 %v3742, 1.4214138
      %v3761 = vadd.f32 %v3743, 1.4214138
      %v3762 = vadd.f32 %v3744, 1.4214138
      %v3763 = vadd.f32 %v3745, 1.4214138
      %v3764 = vadd.f32 %v3746, 1.4214138
      %v3765 = vadd.f32 %v3747, 1.4214138
      %v3766 = vadd.f32 %v3748, 1.4214138
      %v3767 = vadd.f32 %v3749, 1.4214138
      %v3768 = vadd.f32 %v3750, 1.4214138
      %v3769 = vadd.f32 %v3751, 1.4214138
      %v3770 = vadd.f32 %v3752, 1.4214138
      %v3771 = vadd.f32 %v3753, 1.4214138
      %v3772 = vadd.f32 %v3754, 1.4214138
      %v3773 = vadd.f32 %v3755, 1.4214138
      %v3774 = vadd.f32 %v3756, 1.4214138
      %v3775 = vadd.f32 %v3757, 1.4214138
      %v3776 = vadd.f32 %v3758, 1.4214138
      %v3777 = vadd.f32 %v3759, 1.4214138
      %v3778 = vmul.f32 %v3688, %v3760
      %v3779 = vmul.f32 %v3689, %v3761
      %v3780 = vmul.f32 %v3690, %v3762
      %v3781 = vmul.f32 %v3691, %v3763
      %v3782 = vmul.f32 %v3692, %v3764
      %v3783 = vmul.f32 %v3693, %v3765
      %v3784 = vmul.f32 %v3694, %v3766
      %v3785 = vmul.f32 %v3695, %v3767
      %v3786 = vmul.f32 %v3696, %v3768
      %v3787 = vmul.f32 %v3697, %v3769
      %v3788 = vmul.f32 %v3698, %v3770
      %v3789 = vmul.f32 %v3699, %v3771
      %v3790 = vmul.f32 %v3700, %v3772
      %v3791 = vmul.f32 %v3701, %v3773
      %v3792 = vmul.f32 %v3702, %v3774
      %v3793 = vmul.f32 %v3703, %v3775
      %v3794 = vmul.f32 %v3704, %v3776
      %v3795 = vmul.f32 %v3705, %v3777
      %v3796 = vadd.f32 %v3778, -0.28449672
      %v3797 = vadd.f32 %v3779, -0.28449672
      %v3798 = vadd.f32 %v3780, -0.28449672
      %v3799 = vadd.f32 %v3781, -0.28449672
      %v3800 = vadd.f32 %v3782, -0.28449672
      %v3801 = vadd.f32 %v3783, -0.28449672
      %v3802 = vadd.f32 %v3784, -0.28449672
      %v3803 = vadd.f32 %v3785, -0.28449672
      %v3804 = vadd.f32 %v3786, -0.28449672
      %v3805 = vadd.f32 %v3787, -0.28449672
      %v3806 = vadd.f32 %v3788, -0.28449672
      %v3807 = vadd.f32 %v3789, -0.28449672
      %v3808 = vadd.f32 %v3790, -0.28449672
      %v3809 = vadd.f32 %v3791, -0.28449672
      %v3810 = vadd.f32 %v3792, -0.28449672
      %v3811 = vadd.f32 %v3793, -0.28449672
      %v3812 = vadd.f32 %v3794, -0.28449672
      %v3813 = vadd.f32 %v3795, -0.28449672
      %v3814 = vmul.f32 %v3688, %v3796
      %v3815 = vmul.f32 %v3689, %v3797
      %v3816 = vmul.f32 %v3690, %v3798
      %v3817 = vmul.f32 %v3691, %v3799
      %v3818 = vmul.f32 %v3692, %v3800
      %v3819 = vmul.f32 %v3693, %v3801
      %v3820 = vmul.f32 %v3694, %v3802
      %v3821 = vmul.f32 %v3695, %v3803
      %v3822 = vmul.f32 %v3696, %v3804
      %v3823 = vmul.f32 %v3697, %v3805
      %v3824 = vmul.f32 %v3698, %v3806
      %v3825 = vmul.f32 %v3699, %v3807
      %v3826 = vmul.f32 %v3700, %v3808
      %v3827 = vmul.f32 %v3701, %v3809
      %v3828 = vmul.f32 %v3702, %v3810
      %v3829 = vmul.f32 %v3703, %v3811
      %v3830 = vmul.f32 %v3704, %v3812
      %v3831 = vmul.f32 %v3705, %v3813
      %v3832 = vadd.f32 %v3814, 0.2548296
      %v3833 = vadd.f32 %v3815, 0.2548296
      %v3834 = vadd.f32 %v3816, 0.2548296
      %v3835 = vadd.f32 %v3817, 0.2548296
      %v3836 = vadd.f32 %v3818, 0.2548296
      %v3837 = vadd.f32 %v3819, 0.2548296
      %v3838 = vadd.f32 %v3820, 0.2548296
      %v3839 = vadd.f32 %v3821, 0.2548296
      %v3840 = vadd.f32 %v3822, 0.2548296
      %v3841 = vadd.f32 %v3823, 0.2548296
      %v3842 = vadd.f32 %v3824, 0.2548296
      %v3843 = vadd.f32 %v3825, 0.2548296
      %v3844 = vadd.f32 %v3826, 0.2548296
      %v3845 = vadd.f32 %v3827, 0.2548296
      %v3846 = vadd.f32 %v3828, 0.2548296
      %v3847 = vadd.f32 %v3829, 0.2548296
      %v3848 = vadd.f32 %v3830, 0.2548296
      %v3849 = vadd.f32 %v3831, 0.2548296
      %v3850 = vmul.f32 %v3688, %v3832
      %v3851 = vmul.f32 %v3689, %v3833
      %v3852 = vmul.f32 %v3690, %v3834
      %v3853 = vmul.f32 %v3691, %v3835
      %v3854 = vmul.f32 %v3692, %v3836
      %v3855 = vmul.f32 %v3693, %v3837
      %v3856 = vmul.f32 %v3694, %v3838
      %v3857 = vmul.f32 %v3695, %v3839
      %v3858 = vmul.f32 %v3696, %v3840
      %v3859 = vmul.f32 %v3697, %v3841
      %v3860 = vmul.f32 %v3698, %v3842
      %v3861 = vmul.f32 %v3699, %v3843
      %v3862 = vmul.f32 %v3700, %v3844
      %v3863 = vmul.f32 %v3701, %v3845
      %v3864 = vmul.f32 %v3702, %v3846
      %v3865 = vmul.f32 %v3703, %v3847
      %v3866 = vmul.f32 %v3704, %v3848
      %v3867 = vmul.f32 %v3705, %v3849
      %v3868 = vsub.f32 0.0, %v3634
      %v3869 = vsub.f32 0.0, %v3635
      %v3870 = vsub.f32 0.0, %v3636
      %v3871 = vsub.f32 0.0, %v3637
      %v3872 = vsub.f32 0.0, %v3638
      %v3873 = vsub.f32 0.0, %v3639
      %v3874 = vsub.f32 0.0, %v3640
      %v3875 = vsub.f32 0.0, %v3641
      %v3876 = vsub.f32 0.0, %v3642
      %v3877 = vsub.f32 0.0, %v3643
      %v3878 = vsub.f32 0.0, %v3644
      %v3879 = vsub.f32 0.0, %v3645
      %v3880 = vsub.f32 0.0, %v3646
      %v3881 = vsub.f32 0.0, %v3647
      %v3882 = vsub.f32 0.0, %v3648
      %v3883 = vsub.f32 0.0, %v3649
      %v3884 = vsub.f32 0.0, %v3650
      %v3885 = vsub.f32 0.0, %v3651
      %v3886 = vmul.f32 %v3868, %v3634
      %v3887 = vmul.f32 %v3869, %v3635
      %v3888 = vmul.f32 %v3870, %v3636
      %v3889 = vmul.f32 %v3871, %v3637
      %v3890 = vmul.f32 %v3872, %v3638
      %v3891 = vmul.f32 %v3873, %v3639
      %v3892 = vmul.f32 %v3874, %v3640
      %v3893 = vmul.f32 %v3875, %v3641
      %v3894 = vmul.f32 %v3876, %v3642
      %v3895 = vmul.f32 %v3877, %v3643
      %v3896 = vmul.f32 %v3878, %v3644
      %v3897 = vmul.f32 %v3879, %v3645
      %v3898 = vmul.f32 %v3880, %v3646
      %v3899 = vmul.f32 %v3881, %v3647
      %v3900 = vmul.f32 %v3882, %v3648
      %v3901 = vmul.f32 %v3883, %v3649
      %v3902 = vmul.f32 %v3884, %v3650
      %v3903 = vmul.f32 %v3885, %v3651
      %v3904 = vmul.f32 %v3886, 1.442695
      %v3905 = vpow.pop %v3904
      %v3906 = vmul.f32 %v3887, 1.442695
      %v3907 = vpow.pop %v3906
      %v3908 = vmul.f32 %v3888, 1.442695
      %v3909 = vpow.pop %v3908
      %v3910 = vmul.f32 %v3889, 1.442695
      %v3911 = vpow.pop %v3910
      %v3912 = vmul.f32 %v3890, 1.442695
      %v3913 = vpow.pop %v3912
      %v3914 = vmul.f32 %v3891, 1.442695
      %v3915 = vpow.pop %v3914
      %v3916 = vmul.f32 %v3892, 1.442695
      %v3917 = vpow.pop %v3916
      %v3918 = vmul.f32 %v3893, 1.442695
      %v3919 = vpow.pop %v3918
      %v3920 = vmul.f32 %v3894, 1.442695
      %v3921 = vpow.pop %v3920
      %v3922 = vmul.f32 %v3895, 1.442695
      %v3923 = vpow.pop %v3922
      %v3924 = vmul.f32 %v3896, 1.442695
      %v3925 = vpow.pop %v3924
      %v3926 = vmul.f32 %v3897, 1.442695
      %v3927 = vpow.pop %v3926
      %v3928 = vmul.f32 %v3898, 1.442695
      %v3929 = vpow.pop %v3928
      %v3930 = vmul.f32 %v3899, 1.442695
      %v3931 = vpow.pop %v3930
      %v3932 = vmul.f32 %v3900, 1.442695
      %v3933 = vpow.pop %v3932
      %v3934 = vmul.f32 %v3901, 1.442695
      %v3935 = vpow.pop %v3934
      %v3936 = vmul.f32 %v3902, 1.442695
      %v3937 = vpow.pop %v3936
      %v3938 = vmul.f32 %v3903, 1.442695
      %v3939 = vpow.pop %v3938
      %v3940 = vmul.f32 %v3850, %v3905
      %v3941 = vmul.f32 %v3851, %v3907
      %v3942 = vmul.f32 %v3852, %v3909
      %v3943 = vmul.f32 %v3853, %v3911
      %v3944 = vmul.f32 %v3854, %v3913
      %v3945 = vmul.f32 %v3855, %v3915
      %v3946 = vmul.f32 %v3856, %v3917
      %v3947 = vmul.f32 %v3857, %v3919
      %v3948 = vmul.f32 %v3858, %v3921
      %v3949 = vmul.f32 %v3859, %v3923
      %v3950 = vmul.f32 %v3860, %v3925
      %v3951 = vmul.f32 %v3861, %v3927
      %v3952 = vmul.f32 %v3862, %v3929
      %v3953 = vmul.f32 %v3863, %v3931
      %v3954 = vmul.f32 %v3864, %v3933
      %v3955 = vmul.f32 %v3865, %v3935
      %v3956 = vmul.f32 %v3866, %v3937
      %v3957 = vmul.f32 %v3867, %v3939
      %v3958 = vsub.f32 1.0, %v3940
      %v3959 = vsub.f32 1.0, %v3941
      %v3960 = vsub.f32 1.0, %v3942
      %v3961 = vsub.f32 1.0, %v3943
      %v3962 = vsub.f32 1.0, %v3944
      %v3963 = vsub.f32 1.0, %v3945
      %v3964 = vsub.f32 1.0, %v3946
      %v3965 = vsub.f32 1.0, %v3947
      %v3966 = vsub.f32 1.0, %v3948
      %v3967 = vsub.f32 1.0, %v3949
      %v3968 = vsub.f32 1.0, %v3950
      %v3969 = vsub.f32 1.0, %v3951
      %v3970 = vsub.f32 1.0, %v3952
      %v3971 = vsub.f32 1.0, %v3953
      %v3972 = vsub.f32 1.0, %v3954
      %v3973 = vsub.f32 1.0, %v3955
      %v3974 = vsub.f32 1.0, %v3956
      %v3975 = vsub.f32 1.0, %v3957
      %vm3976 = vcmp.ge.f32.partialorder %v3616, 0.0
      %vm3977 = vcmp.ge.f32.partialorder %v3617, 0.0
      %vm3978 = vcmp.ge.f32.partialorder %v3618, 0.0
      %vm3979 = vcmp.ge.f32.partialorder %v3619, 0.0
      %vm3980 = vcmp.ge.f32.partialorder %v3620, 0.0
      %vm3981 = vcmp.ge.f32.partialorder %v3621, 0.0
      %vm3982 = vcmp.ge.f32.partialorder %v3622, 0.0
      %vm3983 = vcmp.ge.f32.partialorder %v3623, 0.0
      %vm3984 = vcmp.ge.f32.partialorder %v3624, 0.0
      %vm3985 = vcmp.ge.f32.partialorder %v3625, 0.0
      %vm3986 = vcmp.ge.f32.partialorder %v3626, 0.0
      %vm3987 = vcmp.ge.f32.partialorder %v3627, 0.0
      %vm3988 = vcmp.ge.f32.partialorder %v3628, 0.0
      %vm3989 = vcmp.ge.f32.partialorder %v3629, 0.0
      %vm3990 = vcmp.ge.f32.partialorder %v3630, 0.0
      %vm3991 = vcmp.ge.f32.partialorder %v3631, 0.0
      %vm3992 = vcmp.ge.f32.partialorder %v3632, 0.0
      %vm3993 = vcmp.ge.f32.partialorder %v3633, 0.0
      %v3994 = vsub.f32 0.0, %v3958
      %v3995 = vsub.f32 0.0, %v3959
      %v3996 = vsub.f32 0.0, %v3960
      %v3997 = vsub.f32 0.0, %v3961
      %v3998 = vsub.f32 0.0, %v3962
      %v3999 = vsub.f32 0.0, %v3963
      %v4000 = vsub.f32 0.0, %v3964
      %v4001 = vsub.f32 0.0, %v3965
      %v4002 = vsub.f32 0.0, %v3966
      %v4003 = vsub.f32 0.0, %v3967
      %v4004 = vsub.f32 0.0, %v3968
      %v4005 = vsub.f32 0.0, %v3969
      %v4006 = vsub.f32 0.0, %v3970
      %v4007 = vsub.f32 0.0, %v3971
      %v4008 = vsub.f32 0.0, %v3972
      %v4009 = vsub.f32 0.0, %v3973
      %v4010 = vsub.f32 0.0, %v3974
      %v4011 = vsub.f32 0.0, %v3975
      %v4012 = vsel %vm3976, %v3958, %v3994
      %v4013 = vsel %vm3977, %v3959, %v3995
      %v4014 = vsel %vm3978, %v3960, %v3996
      %v4015 = vsel %vm3979, %v3961, %v3997
      %v4016 = vsel %vm3980, %v3962, %v3998
      %v4017 = vsel %vm3981, %v3963, %v3999
      %v4018 = vsel %vm3982, %v3964, %v4000
      %v4019 = vsel %vm3983, %v3965, %v4001
      %v4020 = vsel %vm3984, %v3966, %v4002
      %v4021 = vsel %vm3985, %v3967, %v4003
      %v4022 = vsel %vm3986, %v3968, %v4004
      %v4023 = vsel %vm3987, %v3969, %v4005
      %v4024 = vsel %vm3988, %v3970, %v4006
      %v4025 = vsel %vm3989, %v3971, %v4007
      %v4026 = vsel %vm3990, %v3972, %v4008
      %v4027 = vsel %vm3991, %v3973, %v4009
      %v4028 = vsel %vm3992, %v3974, %v4010
      %v4029 = vsel %vm3993, %v3975, %v4011
      %v4030 = vmul.f32 %v3570, 0.5
      %v4031 = vmul.f32 %v3572, 0.5
      %v4032 = vmul.f32 %v3574, 0.5
      %v4033 = vmul.f32 %v3576, 0.5
      %v4034 = vmul.f32 %v3580, 0.5
      %v4035 = vmul.f32 %v3582, 0.5
      %v4036 = vmul.f32 %v3584, 0.5
      %v4037 = vmul.f32 %v3586, 0.5
      %v4038 = vmul.f32 %v3590, 0.5
      %v4039 = vmul.f32 %v3592, 0.5
      %v4040 = vmul.f32 %v3594, 0.5
      %v4041 = vmul.f32 %v3596, 0.5
      %v4042 = vmul.f32 %v3600, 0.5
      %v4043 = vmul.f32 %v3602, 0.5
      %v4044 = vmul.f32 %v3604, 0.5
      %v4045 = vmul.f32 %v3606, 0.5
      %v4046 = vmul.f32 %v3610, 0.5
      %v4047 = vmul.f32 %v3612, 0.5
      %v4048 = vadd.f32 %v4012, 1.0
      %v4049 = vadd.f32 %v4013, 1.0
      %v4050 = vadd.f32 %v4014, 1.0
      %v4051 = vadd.f32 %v4015, 1.0
      %v4052 = vadd.f32 %v4016, 1.0
      %v4053 = vadd.f32 %v4017, 1.0
      %v4054 = vadd.f32 %v4018, 1.0
      %v4055 = vadd.f32 %v4019, 1.0
      %v4056 = vadd.f32 %v4020, 1.0
      %v4057 = vadd.f32 %v4021, 1.0
      %v4058 = vadd.f32 %v4022, 1.0
      %v4059 = vadd.f32 %v4023, 1.0
      %v4060 = vadd.f32 %v4024, 1.0
      %v4061 = vadd.f32 %v4025, 1.0
      %v4062 = vadd.f32 %v4026, 1.0
      %v4063 = vadd.f32 %v4027, 1.0
      %v4064 = vadd.f32 %v4028, 1.0
      %v4065 = vadd.f32 %v4029, 1.0
      %v4066 = vmul.f32 %v4030, %v4048
      %v4067 = vmul.f32 %v4031, %v4049
      %v4068 = vmul.f32 %v4032, %v4050
      %v4069 = vmul.f32 %v4033, %v4051
      %v4070 = vmul.f32 %v4034, %v4052
      %v4071 = vmul.f32 %v4035, %v4053
      %v4072 = vmul.f32 %v4036, %v4054
      %v4073 = vmul.f32 %v4037, %v4055
      %v4074 = vmul.f32 %v4038, %v4056
      %v4075 = vmul.f32 %v4039, %v4057
      %v4076 = vmul.f32 %v4040, %v4058
      %v4077 = vmul.f32 %v4041, %v4059
      %v4078 = vmul.f32 %v4042, %v4060
      %v4079 = vmul.f32 %v4043, %v4061
      %v4080 = vmul.f32 %v4044, %v4062
      %v4081 = vmul.f32 %v4045, %v4063
      %v4082 = vmul.f32 %v4046, %v4064
      %v4083 = vmul.f32 %v4047, %v4065
      %v4084 = vld [vmem:[%s4] sm:$0xff]
      %v4085 = vld [vmem:[%s4 + $0x8] sm:$0xff]
      %v4086 = vld [vmem:[%s4 + $0x10] sm:$0xff]
      %v4087 = vld [vmem:[%s4 + $0x18] sm:$0xff]
      %v4088 = vld [vmem:[%s4 + $0x20] sm:$0xff]
      %v4089 = vld [vmem:[%s4 + $0x28] sm:$0xff]
      %v4090 = vld [vmem:[%s4 + $0x30] sm:$0xff]
      %v4091 = vld [vmem:[%s4 + $0x38] sm:$0xff]
      %v4092 = vld [vmem:[%s4 + $0x40] sm:$0xff]
      %4094 = vset.pattern.permute.xlu0 4
      %4095 = vperm.xlu0 %4094, %v4084
      %v4096 = vpop.permute.xlu0 %4095
      %4099 = vset.pattern.permute.xlu0 4
      %4100 = vperm.xlu0 %4099, %v4085
      %v4101 = vpop.permute.xlu0 %4100
      %4104 = vset.pattern.permute.xlu0 4
      %4105 = vperm.xlu0 %4104, %v4086
      %v4106 = vpop.permute.xlu0 %4105
      %4109 = vset.pattern.permute.xlu0 4
      %4110 = vperm.xlu0 %4109, %v4087
      %v4111 = vpop.permute.xlu0 %4110
      %4114 = vset.pattern.permute.xlu0 4
      %4115 = vperm.xlu0 %4114, %v4088
      %v4116 = vpop.permute.xlu0 %4115
      %4119 = vset.pattern.permute.xlu0 4
      %4120 = vperm.xlu0 %4119, %v4089
      %v4121 = vpop.permute.xlu0 %4120
      %4124 = vset.pattern.permute.xlu0 4
      %4125 = vperm.xlu0 %4124, %v4090
      %v4126 = vpop.permute.xlu0 %4125
      %4129 = vset.pattern.permute.xlu0 4
      %4130 = vperm.xlu0 %4129, %v4091
      %v4131 = vpop.permute.xlu0 %4130
      %4134 = vset.pattern.permute.xlu0 4
      %4135 = vperm.xlu0 %4134, %v4092
      %v4136 = vpop.permute.xlu0 %4135
      %v4138 = vmul.f32 %v4096, %v4066
      %v4139 = vmul.f32 %v4096, %v4067
      %v4140 = vmul.f32 %v4101, %v4068
      %v4141 = vmul.f32 %v4101, %v4069
      %v4142 = vmul.f32 %v4106, %v4070
      %v4143 = vmul.f32 %v4106, %v4071
      %v4144 = vmul.f32 %v4111, %v4072
      %v4145 = vmul.f32 %v4111, %v4073
      %v4146 = vmul.f32 %v4116, %v4074
      %v4147 = vmul.f32 %v4116, %v4075
      %v4148 = vmul.f32 %v4121, %v4076
      %v4149 = vmul.f32 %v4121, %v4077
      %v4150 = vmul.f32 %v4126, %v4078
      %v4151 = vmul.f32 %v4126, %v4079
      %v4152 = vmul.f32 %v4131, %v4080
      %v4153 = vmul.f32 %v4131, %v4081
      %v4154 = vmul.f32 %v4136, %v4082
      %v4155 = vmul.f32 %v4136, %v4083
      %4156 = vrot.lane.b32.xlu0 %v4066, 17
      %v4157 = vpop.permute.xlu0 %4156
      %4158 = vrot.lane.b32.xlu0 %v4068, 17
      %v4159 = vpop.permute.xlu0 %4158
      %4160 = vrot.lane.b32.xlu0 %v4070, 17
      %v4161 = vpop.permute.xlu0 %4160
      %4162 = vrot.lane.b32.xlu0 %v4072, 17
      %v4163 = vpop.permute.xlu0 %4162
      %4164 = vrot.lane.b32.xlu0 %v4074, 17
      %v4165 = vpop.permute.xlu0 %4164
      %4166 = vrot.lane.b32.xlu0 %v4076, 17
      %v4167 = vpop.permute.xlu0 %4166
      %4168 = vrot.lane.b32.xlu0 %v4078, 17
      %v4169 = vpop.permute.xlu0 %4168
      %4170 = vrot.lane.b32.xlu0 %v4080, 17
      %v4171 = vpop.permute.xlu0 %4170
      %4172 = vrot.lane.b32.xlu0 %v4082, 17
      %v4173 = vpop.permute.xlu0 %4172
      %4174 = vrot.lane.b32.xlu0 %v4067, 17
      %v4175 = vpop.permute.xlu0 %4174
      %4176 = vrot.lane.b32.xlu0 %v4069, 17
      %v4177 = vpop.permute.xlu0 %4176
      %4178 = vrot.lane.b32.xlu0 %v4071, 17
      %v4179 = vpop.permute.xlu0 %4178
      %4180 = vrot.lane.b32.xlu0 %v4073, 17
      %v4181 = vpop.permute.xlu0 %4180
      %4182 = vrot.lane.b32.xlu0 %v4075, 17
      %v4183 = vpop.permute.xlu0 %4182
      %4184 = vrot.lane.b32.xlu0 %v4077, 17
      %v4185 = vpop.permute.xlu0 %4184
      %4186 = vrot.lane.b32.xlu0 %v4079, 17
      %v4187 = vpop.permute.xlu0 %4186
      %4188 = vrot.lane.b32.xlu0 %v4081, 17
      %v4189 = vpop.permute.xlu0 %4188
      %4190 = vrot.lane.b32.xlu0 %v4083, 17
      %v4191 = vpop.permute.xlu0 %4190
      %v4192 = vsel %vm621, %v4157, %v4175
      %v4193 = vsel %vm621, %v4159, %v4177
      %v4194 = vsel %vm621, %v4161, %v4179
      %v4195 = vsel %vm621, %v4163, %v4181
      %v4196 = vsel %vm621, %v4165, %v4183
      %v4197 = vsel %vm621, %v4167, %v4185
      %v4198 = vsel %vm621, %v4169, %v4187
      %v4199 = vsel %vm621, %v4171, %v4189
      %v4200 = vsel %vm621, %v4173, %v4191
      %v4201 = vsel %vm621, %v4175, %v4157
      %v4202 = vsel %vm621, %v4177, %v4159
      %v4203 = vsel %vm621, %v4179, %v4161
      %v4204 = vsel %vm621, %v4181, %v4163
      %v4205 = vsel %vm621, %v4183, %v4165
      %v4206 = vsel %vm621, %v4185, %v4167
      %v4207 = vsel %vm621, %v4187, %v4169
      %v4208 = vsel %vm621, %v4189, %v4171
      %v4209 = vsel %vm621, %v4191, %v4173
      %v4210 = vmul.f32 %v4201, %v645
      %v4211 = vmul.f32 %v4192, %v649
      %v4212 = vmul.f32 %v4202, %v645
      %v4213 = vmul.f32 %v4193, %v649
      %v4214 = vmul.f32 %v4203, %v645
      %v4215 = vmul.f32 %v4194, %v649
      %v4216 = vmul.f32 %v4204, %v645
      %v4217 = vmul.f32 %v4195, %v649
      %v4218 = vmul.f32 %v4205, %v645
      %v4219 = vmul.f32 %v4196, %v649
      %v4220 = vmul.f32 %v4206, %v645
      %v4221 = vmul.f32 %v4197, %v649
      %v4222 = vmul.f32 %v4207, %v645
      %v4223 = vmul.f32 %v4198, %v649
      %v4224 = vmul.f32 %v4208, %v645
      %v4225 = vmul.f32 %v4199, %v649
      %v4226 = vmul.f32 %v4209, %v645
      %v4227 = vmul.f32 %v4200, %v649
      %4228 = vset.pattern.permute.xlu0 0
      %4229 = vperm.xlu0 %4228, %v4084
      %v4230 = vpop.permute.xlu0 %4229
      %4232 = vset.pattern.permute.xlu0 0
      %4233 = vperm.xlu0 %4232, %v4085
      %v4234 = vpop.permute.xlu0 %4233
      %4236 = vset.pattern.permute.xlu0 0
      %4237 = vperm.xlu0 %4236, %v4086
      %v4238 = vpop.permute.xlu0 %4237
      %4240 = vset.pattern.permute.xlu0 0
      %4241 = vperm.xlu0 %4240, %v4087
      %v4242 = vpop.permute.xlu0 %4241
      %4244 = vset.pattern.permute.xlu0 0
      %4245 = vperm.xlu0 %4244, %v4088
      %v4246 = vpop.permute.xlu0 %4245
      %4248 = vset.pattern.permute.xlu0 0
      %4249 = vperm.xlu0 %4248, %v4089
      %v4250 = vpop.permute.xlu0 %4249
      %4252 = vset.pattern.permute.xlu0 0
      %4253 = vperm.xlu0 %4252, %v4090
      %v4254 = vpop.permute.xlu0 %4253
      %4256 = vset.pattern.permute.xlu0 0
      %4257 = vperm.xlu0 %4256, %v4091
      %v4258 = vpop.permute.xlu0 %4257
      %4260 = vset.pattern.permute.xlu0 0
      %4261 = vperm.xlu0 %4260, %v4092
      %v4262 = vpop.permute.xlu0 %4261
      %v4264 = vmul.f32 %v4230, %v4210
      %v4265 = vmul.f32 %v4230, %v4211
      %v4266 = vmul.f32 %v4234, %v4212
      %v4267 = vmul.f32 %v4234, %v4213
      %v4268 = vmul.f32 %v4238, %v4214
      %v4269 = vmul.f32 %v4238, %v4215
      %v4270 = vmul.f32 %v4242, %v4216
      %v4271 = vmul.f32 %v4242, %v4217
      %v4272 = vmul.f32 %v4246, %v4218
      %v4273 = vmul.f32 %v4246, %v4219
      %v4274 = vmul.f32 %v4250, %v4220
      %v4275 = vmul.f32 %v4250, %v4221
      %v4276 = vmul.f32 %v4254, %v4222
      %v4277 = vmul.f32 %v4254, %v4223
      %v4278 = vmul.f32 %v4258, %v4224
      %v4279 = vmul.f32 %v4258, %v4225
      %v4280 = vmul.f32 %v4262, %v4226
      %v4281 = vmul.f32 %v4262, %v4227
      %v4282 = vadd.f32 %v4138, %v4264
      %v4283 = vadd.f32 %v4139, %v4265
      %v4284 = vadd.f32 %v4140, %v4266
      %v4285 = vadd.f32 %v4141, %v4267
      %v4286 = vadd.f32 %v4142, %v4268
      %v4287 = vadd.f32 %v4143, %v4269
      %v4288 = vadd.f32 %v4144, %v4270
      %v4289 = vadd.f32 %v4145, %v4271
      %v4290 = vadd.f32 %v4146, %v4272
      %v4291 = vadd.f32 %v4147, %v4273
      %v4292 = vadd.f32 %v4148, %v4274
      %v4293 = vadd.f32 %v4149, %v4275
      %v4294 = vadd.f32 %v4150, %v4276
      %v4295 = vadd.f32 %v4151, %v4277
      %v4296 = vadd.f32 %v4152, %v4278
      %v4297 = vadd.f32 %v4153, %v4279
      %v4298 = vadd.f32 %v4154, %v4280
      %v4299 = vadd.f32 %v4155, %v4281
      %4300 = vrot.lane.b32.xlu0 %v4066, 16
      %v4301 = vpop.permute.xlu0 %4300
      %4302 = vrot.lane.b32.xlu0 %v4068, 16
      %v4303 = vpop.permute.xlu0 %4302
      %4304 = vrot.lane.b32.xlu0 %v4070, 16
      %v4305 = vpop.permute.xlu0 %4304
      %4306 = vrot.lane.b32.xlu0 %v4072, 16
      %v4307 = vpop.permute.xlu0 %4306
      %4308 = vrot.lane.b32.xlu0 %v4074, 16
      %v4309 = vpop.permute.xlu0 %4308
      %4310 = vrot.lane.b32.xlu0 %v4076, 16
      %v4311 = vpop.permute.xlu0 %4310
      %4312 = vrot.lane.b32.xlu0 %v4078, 16
      %v4313 = vpop.permute.xlu0 %4312
      %4314 = vrot.lane.b32.xlu0 %v4080, 16
      %v4315 = vpop.permute.xlu0 %4314
      %4316 = vrot.lane.b32.xlu0 %v4082, 16
      %v4317 = vpop.permute.xlu0 %4316
      %4318 = vrot.lane.b32.xlu0 %v4067, 16
      %v4319 = vpop.permute.xlu0 %4318
      %4320 = vrot.lane.b32.xlu0 %v4069, 16
      %v4321 = vpop.permute.xlu0 %4320
      %4322 = vrot.lane.b32.xlu0 %v4071, 16
      %v4323 = vpop.permute.xlu0 %4322
      %4324 = vrot.lane.b32.xlu0 %v4073, 16
      %v4325 = vpop.permute.xlu0 %4324
      %4326 = vrot.lane.b32.xlu0 %v4075, 16
      %v4327 = vpop.permute.xlu0 %4326
      %4328 = vrot.lane.b32.xlu0 %v4077, 16
      %v4329 = vpop.permute.xlu0 %4328
      %4330 = vrot.lane.b32.xlu0 %v4079, 16
      %v4331 = vpop.permute.xlu0 %4330
      %4332 = vrot.lane.b32.xlu0 %v4081, 16
      %v4333 = vpop.permute.xlu0 %4332
      %4334 = vrot.lane.b32.xlu0 %v4083, 16
      %v4335 = vpop.permute.xlu0 %4334
      %v4336 = vsel %vm778, %v4301, %v4319
      %v4337 = vsel %vm778, %v4303, %v4321
      %v4338 = vsel %vm778, %v4305, %v4323
      %v4339 = vsel %vm778, %v4307, %v4325
      %v4340 = vsel %vm778, %v4309, %v4327
      %v4341 = vsel %vm778, %v4311, %v4329
      %v4342 = vsel %vm778, %v4313, %v4331
      %v4343 = vsel %vm778, %v4315, %v4333
      %v4344 = vsel %vm778, %v4317, %v4335
      %v4345 = vsel %vm778, %v4319, %v4301
      %v4346 = vsel %vm778, %v4321, %v4303
      %v4347 = vsel %vm778, %v4323, %v4305
      %v4348 = vsel %vm778, %v4325, %v4307
      %v4349 = vsel %vm778, %v4327, %v4309
      %v4350 = vsel %vm778, %v4329, %v4311
      %v4351 = vsel %vm778, %v4331, %v4313
      %v4352 = vsel %vm778, %v4333, %v4315
      %v4353 = vsel %vm778, %v4335, %v4317
      %v4354 = vmul.f32 %v4345, %v803
      %v4355 = vmul.f32 %v4336, %v807
      %v4356 = vmul.f32 %v4346, %v803
      %v4357 = vmul.f32 %v4337, %v807
      %v4358 = vmul.f32 %v4347, %v803
      %v4359 = vmul.f32 %v4338, %v807
      %v4360 = vmul.f32 %v4348, %v803
      %v4361 = vmul.f32 %v4339, %v807
      %v4362 = vmul.f32 %v4349, %v803
      %v4363 = vmul.f32 %v4340, %v807
      %v4364 = vmul.f32 %v4350, %v803
      %v4365 = vmul.f32 %v4341, %v807
      %v4366 = vmul.f32 %v4351, %v803
      %v4367 = vmul.f32 %v4342, %v807
      %v4368 = vmul.f32 %v4352, %v803
      %v4369 = vmul.f32 %v4343, %v807
      %v4370 = vmul.f32 %v4353, %v803
      %v4371 = vmul.f32 %v4344, %v807
      %4372 = vset.pattern.permute.xlu0 1
      %4373 = vperm.xlu0 %4372, %v4084
      %v4374 = vpop.permute.xlu0 %4373
      %4376 = vset.pattern.permute.xlu0 1
      %4377 = vperm.xlu0 %4376, %v4085
      %v4378 = vpop.permute.xlu0 %4377
      %4380 = vset.pattern.permute.xlu0 1
      %4381 = vperm.xlu0 %4380, %v4086
      %v4382 = vpop.permute.xlu0 %4381
      %4384 = vset.pattern.permute.xlu0 1
      %4385 = vperm.xlu0 %4384, %v4087
      %v4386 = vpop.permute.xlu0 %4385
      %4388 = vset.pattern.permute.xlu0 1
      %4389 = vperm.xlu0 %4388, %v4088
      %v4390 = vpop.permute.xlu0 %4389
      %4392 = vset.pattern.permute.xlu0 1
      %4393 = vperm.xlu0 %4392, %v4089
      %v4394 = vpop.permute.xlu0 %4393
      %4396 = vset.pattern.permute.xlu0 1
      %4397 = vperm.xlu0 %4396, %v4090
      %v4398 = vpop.permute.xlu0 %4397
      %4400 = vset.pattern.permute.xlu0 1
      %4401 = vperm.xlu0 %4400, %v4091
      %v4402 = vpop.permute.xlu0 %4401
      %4404 = vset.pattern.permute.xlu0 1
      %4405 = vperm.xlu0 %4404, %v4092
      %v4406 = vpop.permute.xlu0 %4405
      %v4408 = vmul.f32 %v4374, %v4354
      %v4409 = vmul.f32 %v4374, %v4355
      %v4410 = vmul.f32 %v4378, %v4356
      %v4411 = vmul.f32 %v4378, %v4357
      %v4412 = vmul.f32 %v4382, %v4358
      %v4413 = vmul.f32 %v4382, %v4359
      %v4414 = vmul.f32 %v4386, %v4360
      %v4415 = vmul.f32 %v4386, %v4361
      %v4416 = vmul.f32 %v4390, %v4362
      %v4417 = vmul.f32 %v4390, %v4363
      %v4418 = vmul.f32 %v4394, %v4364
      %v4419 = vmul.f32 %v4394, %v4365
      %v4420 = vmul.f32 %v4398, %v4366
      %v4421 = vmul.f32 %v4398, %v4367
      %v4422 = vmul.f32 %v4402, %v4368
      %v4423 = vmul.f32 %v4402, %v4369
      %v4424 = vmul.f32 %v4406, %v4370
      %v4425 = vmul.f32 %v4406, %v4371
      %v4426 = vadd.f32 %v4282, %v4408
      %v4427 = vadd.f32 %v4283, %v4409
      %v4428 = vadd.f32 %v4284, %v4410
      %v4429 = vadd.f32 %v4285, %v4411
      %v4430 = vadd.f32 %v4286, %v4412
      %v4431 = vadd.f32 %v4287, %v4413
      %v4432 = vadd.f32 %v4288, %v4414
      %v4433 = vadd.f32 %v4289, %v4415
      %v4434 = vadd.f32 %v4290, %v4416
      %v4435 = vadd.f32 %v4291, %v4417
      %v4436 = vadd.f32 %v4292, %v4418
      %v4437 = vadd.f32 %v4293, %v4419
      %v4438 = vadd.f32 %v4294, %v4420
      %v4439 = vadd.f32 %v4295, %v4421
      %v4440 = vadd.f32 %v4296, %v4422
      %v4441 = vadd.f32 %v4297, %v4423
      %v4442 = vadd.f32 %v4298, %v4424
      %v4443 = vadd.f32 %v4299, %v4425
      %4444 = vrot.lane.b32.xlu0 %v4066, 15
      %v4445 = vpop.permute.xlu0 %4444
      %4446 = vrot.lane.b32.xlu0 %v4068, 15
      %v4447 = vpop.permute.xlu0 %4446
      %4448 = vrot.lane.b32.xlu0 %v4070, 15
      %v4449 = vpop.permute.xlu0 %4448
      %4450 = vrot.lane.b32.xlu0 %v4072, 15
      %v4451 = vpop.permute.xlu0 %4450
      %4452 = vrot.lane.b32.xlu0 %v4074, 15
      %v4453 = vpop.permute.xlu0 %4452
      %4454 = vrot.lane.b32.xlu0 %v4076, 15
      %v4455 = vpop.permute.xlu0 %4454
      %4456 = vrot.lane.b32.xlu0 %v4078, 15
      %v4457 = vpop.permute.xlu0 %4456
      %4458 = vrot.lane.b32.xlu0 %v4080, 15
      %v4459 = vpop.permute.xlu0 %4458
      %4460 = vrot.lane.b32.xlu0 %v4082, 15
      %v4461 = vpop.permute.xlu0 %4460
      %4462 = vrot.lane.b32.xlu0 %v4067, 15
      %v4463 = vpop.permute.xlu0 %4462
      %4464 = vrot.lane.b32.xlu0 %v4069, 15
      %v4465 = vpop.permute.xlu0 %4464
      %4466 = vrot.lane.b32.xlu0 %v4071, 15
      %v4467 = vpop.permute.xlu0 %4466
      %4468 = vrot.lane.b32.xlu0 %v4073, 15
      %v4469 = vpop.permute.xlu0 %4468
      %4470 = vrot.lane.b32.xlu0 %v4075, 15
      %v4471 = vpop.permute.xlu0 %4470
      %4472 = vrot.lane.b32.xlu0 %v4077, 15
      %v4473 = vpop.permute.xlu0 %4472
      %4474 = vrot.lane.b32.xlu0 %v4079, 15
      %v4475 = vpop.permute.xlu0 %4474
      %4476 = vrot.lane.b32.xlu0 %v4081, 15
      %v4477 = vpop.permute.xlu0 %4476
      %4478 = vrot.lane.b32.xlu0 %v4083, 15
      %v4479 = vpop.permute.xlu0 %4478
      %v4480 = vsel %vm936, %v4445, %v4463
      %v4481 = vsel %vm936, %v4447, %v4465
      %v4482 = vsel %vm936, %v4449, %v4467
      %v4483 = vsel %vm936, %v4451, %v4469
      %v4484 = vsel %vm936, %v4453, %v4471
      %v4485 = vsel %vm936, %v4455, %v4473
      %v4486 = vsel %vm936, %v4457, %v4475
      %v4487 = vsel %vm936, %v4459, %v4477
      %v4488 = vsel %vm936, %v4461, %v4479
      %v4489 = vsel %vm936, %v4463, %v4445
      %v4490 = vsel %vm936, %v4465, %v4447
      %v4491 = vsel %vm936, %v4467, %v4449
      %v4492 = vsel %vm936, %v4469, %v4451
      %v4493 = vsel %vm936, %v4471, %v4453
      %v4494 = vsel %vm936, %v4473, %v4455
      %v4495 = vsel %vm936, %v4475, %v4457
      %v4496 = vsel %vm936, %v4477, %v4459
      %v4497 = vsel %vm936, %v4479, %v4461
      %v4498 = vmul.f32 %v4489, %v961
      %v4499 = vmul.f32 %v4480, %v965
      %v4500 = vmul.f32 %v4490, %v961
      %v4501 = vmul.f32 %v4481, %v965
      %v4502 = vmul.f32 %v4491, %v961
      %v4503 = vmul.f32 %v4482, %v965
      %v4504 = vmul.f32 %v4492, %v961
      %v4505 = vmul.f32 %v4483, %v965
      %v4506 = vmul.f32 %v4493, %v961
      %v4507 = vmul.f32 %v4484, %v965
      %v4508 = vmul.f32 %v4494, %v961
      %v4509 = vmul.f32 %v4485, %v965
      %v4510 = vmul.f32 %v4495, %v961
      %v4511 = vmul.f32 %v4486, %v965
      %v4512 = vmul.f32 %v4496, %v961
      %v4513 = vmul.f32 %v4487, %v965
      %v4514 = vmul.f32 %v4497, %v961
      %v4515 = vmul.f32 %v4488, %v965
      %4516 = vset.pattern.permute.xlu0 2
      %4517 = vperm.xlu0 %4516, %v4084
      %v4518 = vpop.permute.xlu0 %4517
      %4520 = vset.pattern.permute.xlu0 2
      %4521 = vperm.xlu0 %4520, %v4085
      %v4522 = vpop.permute.xlu0 %4521
      %4524 = vset.pattern.permute.xlu0 2
      %4525 = vperm.xlu0 %4524, %v4086
      %v4526 = vpop.permute.xlu0 %4525
      %4528 = vset.pattern.permute.xlu0 2
      %4529 = vperm.xlu0 %4528, %v4087
      %v4530 = vpop.permute.xlu0 %4529
      %4532 = vset.pattern.permute.xlu0 2
      %4533 = vperm.xlu0 %4532, %v4088
      %v4534 = vpop.permute.xlu0 %4533
      %4536 = vset.pattern.permute.xlu0 2
      %4537 = vperm.xlu0 %4536, %v4089
      %v4538 = vpop.permute.xlu0 %4537
      %4540 = vset.pattern.permute.xlu0 2
      %4541 = vperm.xlu0 %4540, %v4090
      %v4542 = vpop.permute.xlu0 %4541
      %4544 = vset.pattern.permute.xlu0 2
      %4545 = vperm.xlu0 %4544, %v4091
      %v4546 = vpop.permute.xlu0 %4545
      %4548 = vset.pattern.permute.xlu0 2
      %4549 = vperm.xlu0 %4548, %v4092
      %v4550 = vpop.permute.xlu0 %4549
      %v4552 = vmul.f32 %v4518, %v4498
      %v4553 = vmul.f32 %v4518, %v4499
      %v4554 = vmul.f32 %v4522, %v4500
      %v4555 = vmul.f32 %v4522, %v4501
      %v4556 = vmul.f32 %v4526, %v4502
      %v4557 = vmul.f32 %v4526, %v4503
      %v4558 = vmul.f32 %v4530, %v4504
      %v4559 = vmul.f32 %v4530, %v4505
      %v4560 = vmul.f32 %v4534, %v4506
      %v4561 = vmul.f32 %v4534, %v4507
      %v4562 = vmul.f32 %v4538, %v4508
      %v4563 = vmul.f32 %v4538, %v4509
      %v4564 = vmul.f32 %v4542, %v4510
      %v4565 = vmul.f32 %v4542, %v4511
      %v4566 = vmul.f32 %v4546, %v4512
      %v4567 = vmul.f32 %v4546, %v4513
      %v4568 = vmul.f32 %v4550, %v4514
      %v4569 = vmul.f32 %v4550, %v4515
      %v4570 = vadd.f32 %v4426, %v4552
      %v4571 = vadd.f32 %v4427, %v4553
      %v4572 = vadd.f32 %v4428, %v4554
      %v4573 = vadd.f32 %v4429, %v4555
      %v4574 = vadd.f32 %v4430, %v4556
      %v4575 = vadd.f32 %v4431, %v4557
      %v4576 = vadd.f32 %v4432, %v4558
      %v4577 = vadd.f32 %v4433, %v4559
      %v4578 = vadd.f32 %v4434, %v4560
      %v4579 = vadd.f32 %v4435, %v4561
      %v4580 = vadd.f32 %v4436, %v4562
      %v4581 = vadd.f32 %v4437, %v4563
      %v4582 = vadd.f32 %v4438, %v4564
      %v4583 = vadd.f32 %v4439, %v4565
      %v4584 = vadd.f32 %v4440, %v4566
      %v4585 = vadd.f32 %v4441, %v4567
      %v4586 = vadd.f32 %v4442, %v4568
      %v4587 = vadd.f32 %v4443, %v4569
      %4588 = vrot.lane.b32.xlu0 %v4066, 1
      %v4589 = vpop.permute.xlu0 %4588
      %4590 = vrot.lane.b32.xlu0 %v4068, 1
      %v4591 = vpop.permute.xlu0 %4590
      %4592 = vrot.lane.b32.xlu0 %v4070, 1
      %v4593 = vpop.permute.xlu0 %4592
      %4594 = vrot.lane.b32.xlu0 %v4072, 1
      %v4595 = vpop.permute.xlu0 %4594
      %4596 = vrot.lane.b32.xlu0 %v4074, 1
      %v4597 = vpop.permute.xlu0 %4596
      %4598 = vrot.lane.b32.xlu0 %v4076, 1
      %v4599 = vpop.permute.xlu0 %4598
      %4600 = vrot.lane.b32.xlu0 %v4078, 1
      %v4601 = vpop.permute.xlu0 %4600
      %4602 = vrot.lane.b32.xlu0 %v4080, 1
      %v4603 = vpop.permute.xlu0 %4602
      %4604 = vrot.lane.b32.xlu0 %v4082, 1
      %v4605 = vpop.permute.xlu0 %4604
      %4606 = vrot.lane.b32.xlu0 %v4067, 1
      %v4607 = vpop.permute.xlu0 %4606
      %4608 = vrot.lane.b32.xlu0 %v4069, 1
      %v4609 = vpop.permute.xlu0 %4608
      %4610 = vrot.lane.b32.xlu0 %v4071, 1
      %v4611 = vpop.permute.xlu0 %4610
      %4612 = vrot.lane.b32.xlu0 %v4073, 1
      %v4613 = vpop.permute.xlu0 %4612
      %4614 = vrot.lane.b32.xlu0 %v4075, 1
      %v4615 = vpop.permute.xlu0 %4614
      %4616 = vrot.lane.b32.xlu0 %v4077, 1
      %v4617 = vpop.permute.xlu0 %4616
      %4618 = vrot.lane.b32.xlu0 %v4079, 1
      %v4619 = vpop.permute.xlu0 %4618
      %4620 = vrot.lane.b32.xlu0 %v4081, 1
      %v4621 = vpop.permute.xlu0 %4620
      %4622 = vrot.lane.b32.xlu0 %v4083, 1
      %v4623 = vpop.permute.xlu0 %4622
      %v4624 = vsel %vm1094, %v4589, %v4607
      %v4625 = vsel %vm1094, %v4591, %v4609
      %v4626 = vsel %vm1094, %v4593, %v4611
      %v4627 = vsel %vm1094, %v4595, %v4613
      %v4628 = vsel %vm1094, %v4597, %v4615
      %v4629 = vsel %vm1094, %v4599, %v4617
      %v4630 = vsel %vm1094, %v4601, %v4619
      %v4631 = vsel %vm1094, %v4603, %v4621
      %v4632 = vsel %vm1094, %v4605, %v4623
      %v4633 = vsel %vm1094, %v4607, %v4589
      %v4634 = vsel %vm1094, %v4609, %v4591
      %v4635 = vsel %vm1094, %v4611, %v4593
      %v4636 = vsel %vm1094, %v4613, %v4595
      %v4637 = vsel %vm1094, %v4615, %v4597
      %v4638 = vsel %vm1094, %v4617, %v4599
      %v4639 = vsel %vm1094, %v4619, %v4601
      %v4640 = vsel %vm1094, %v4621, %v4603
      %v4641 = vsel %vm1094, %v4623, %v4605
      %v4642 = vmul.f32 %v4633, %v1119
      %v4643 = vmul.f32 %v4624, %v1123
      %v4644 = vmul.f32 %v4634, %v1119
      %v4645 = vmul.f32 %v4625, %v1123
      %v4646 = vmul.f32 %v4635, %v1119
      %v4647 = vmul.f32 %v4626, %v1123
      %v4648 = vmul.f32 %v4636, %v1119
      %v4649 = vmul.f32 %v4627, %v1123
      %v4650 = vmul.f32 %v4637, %v1119
      %v4651 = vmul.f32 %v4628, %v1123
      %v4652 = vmul.f32 %v4638, %v1119
      %v4653 = vmul.f32 %v4629, %v1123
      %v4654 = vmul.f32 %v4639, %v1119
      %v4655 = vmul.f32 %v4630, %v1123
      %v4656 = vmul.f32 %v4640, %v1119
      %v4657 = vmul.f32 %v4631, %v1123
      %v4658 = vmul.f32 %v4641, %v1119
      %v4659 = vmul.f32 %v4632, %v1123
      %4660 = vset.pattern.permute.xlu0 3
      %4661 = vperm.xlu0 %4660, %v4084
      %v4662 = vpop.permute.xlu0 %4661
      %4664 = vset.pattern.permute.xlu0 3
      %4665 = vperm.xlu0 %4664, %v4085
      %v4666 = vpop.permute.xlu0 %4665
      %4668 = vset.pattern.permute.xlu0 3
      %4669 = vperm.xlu0 %4668, %v4086
      %v4670 = vpop.permute.xlu0 %4669
      %4672 = vset.pattern.permute.xlu0 3
      %4673 = vperm.xlu0 %4672, %v4087
      %v4674 = vpop.permute.xlu0 %4673
      %4676 = vset.pattern.permute.xlu0 3
      %4677 = vperm.xlu0 %4676, %v4088
      %v4678 = vpop.permute.xlu0 %4677
      %4680 = vset.pattern.permute.xlu0 3
      %4681 = vperm.xlu0 %4680, %v4089
      %v4682 = vpop.permute.xlu0 %4681
      %4684 = vset.pattern.permute.xlu0 3
      %4685 = vperm.xlu0 %4684, %v4090
      %v4686 = vpop.permute.xlu0 %4685
      %4688 = vset.pattern.permute.xlu0 3
      %4689 = vperm.xlu0 %4688, %v4091
      %v4690 = vpop.permute.xlu0 %4689
      %4692 = vset.pattern.permute.xlu0 3
      %4693 = vperm.xlu0 %4692, %v4092
      %v4694 = vpop.permute.xlu0 %4693
      %v4696 = vmul.f32 %v4662, %v4642
      %v4697 = vmul.f32 %v4662, %v4643
      %v4698 = vmul.f32 %v4666, %v4644
      %v4699 = vmul.f32 %v4666, %v4645
      %v4700 = vmul.f32 %v4670, %v4646
      %v4701 = vmul.f32 %v4670, %v4647
      %v4702 = vmul.f32 %v4674, %v4648
      %v4703 = vmul.f32 %v4674, %v4649
      %v4704 = vmul.f32 %v4678, %v4650
      %v4705 = vmul.f32 %v4678, %v4651
      %v4706 = vmul.f32 %v4682, %v4652
      %v4707 = vmul.f32 %v4682, %v4653
      %v4708 = vmul.f32 %v4686, %v4654
      %v4709 = vmul.f32 %v4686, %v4655
      %v4710 = vmul.f32 %v4690, %v4656
      %v4711 = vmul.f32 %v4690, %v4657
      %v4712 = vmul.f32 %v4694, %v4658
      %v4713 = vmul.f32 %v4694, %v4659
      %v4714 = vadd.f32 %v4570, %v4696
      %v4715 = vadd.f32 %v4571, %v4697
      %v4716 = vadd.f32 %v4572, %v4698
      %v4717 = vadd.f32 %v4573, %v4699
      %v4718 = vadd.f32 %v4574, %v4700
      %v4719 = vadd.f32 %v4575, %v4701
      %v4720 = vadd.f32 %v4576, %v4702
      %v4721 = vadd.f32 %v4577, %v4703
      %v4722 = vadd.f32 %v4578, %v4704
      %v4723 = vadd.f32 %v4579, %v4705
      %v4724 = vadd.f32 %v4580, %v4706
      %v4725 = vadd.f32 %v4581, %v4707
      %v4726 = vadd.f32 %v4582, %v4708
      %v4727 = vadd.f32 %v4583, %v4709
      %v4728 = vadd.f32 %v4584, %v4710
      %v4729 = vadd.f32 %v4585, %v4711
      %v4730 = vadd.f32 %v4586, %v4712
      %v4731 = vadd.f32 %v4587, %v4713
      %4732 = vrot.lane.b32.xlu0 %v4066, 127
      %v4733 = vpop.permute.xlu0 %4732
      %4734 = vrot.lane.b32.xlu0 %v4068, 127
      %v4735 = vpop.permute.xlu0 %4734
      %4736 = vrot.lane.b32.xlu0 %v4070, 127
      %v4737 = vpop.permute.xlu0 %4736
      %4738 = vrot.lane.b32.xlu0 %v4072, 127
      %v4739 = vpop.permute.xlu0 %4738
      %4740 = vrot.lane.b32.xlu0 %v4074, 127
      %v4741 = vpop.permute.xlu0 %4740
      %4742 = vrot.lane.b32.xlu0 %v4076, 127
      %v4743 = vpop.permute.xlu0 %4742
      %4744 = vrot.lane.b32.xlu0 %v4078, 127
      %v4745 = vpop.permute.xlu0 %4744
      %4746 = vrot.lane.b32.xlu0 %v4080, 127
      %v4747 = vpop.permute.xlu0 %4746
      %4748 = vrot.lane.b32.xlu0 %v4082, 127
      %v4749 = vpop.permute.xlu0 %4748
      %4750 = vrot.lane.b32.xlu0 %v4067, 127
      %v4751 = vpop.permute.xlu0 %4750
      %4752 = vrot.lane.b32.xlu0 %v4069, 127
      %v4753 = vpop.permute.xlu0 %4752
      %4754 = vrot.lane.b32.xlu0 %v4071, 127
      %v4755 = vpop.permute.xlu0 %4754
      %4756 = vrot.lane.b32.xlu0 %v4073, 127
      %v4757 = vpop.permute.xlu0 %4756
      %4758 = vrot.lane.b32.xlu0 %v4075, 127
      %v4759 = vpop.permute.xlu0 %4758
      %4760 = vrot.lane.b32.xlu0 %v4077, 127
      %v4761 = vpop.permute.xlu0 %4760
      %4762 = vrot.lane.b32.xlu0 %v4079, 127
      %v4763 = vpop.permute.xlu0 %4762
      %4764 = vrot.lane.b32.xlu0 %v4081, 127
      %v4765 = vpop.permute.xlu0 %4764
      %4766 = vrot.lane.b32.xlu0 %v4083, 127
      %v4767 = vpop.permute.xlu0 %4766
      %v4768 = vsel %vm1252, %v4733, %v4751
      %v4769 = vsel %vm1252, %v4735, %v4753
      %v4770 = vsel %vm1252, %v4737, %v4755
      %v4771 = vsel %vm1252, %v4739, %v4757
      %v4772 = vsel %vm1252, %v4741, %v4759
      %v4773 = vsel %vm1252, %v4743, %v4761
      %v4774 = vsel %vm1252, %v4745, %v4763
      %v4775 = vsel %vm1252, %v4747, %v4765
      %v4776 = vsel %vm1252, %v4749, %v4767
      %v4777 = vsel %vm1252, %v4751, %v4733
      %v4778 = vsel %vm1252, %v4753, %v4735
      %v4779 = vsel %vm1252, %v4755, %v4737
      %v4780 = vsel %vm1252, %v4757, %v4739
      %v4781 = vsel %vm1252, %v4759, %v4741
      %v4782 = vsel %vm1252, %v4761, %v4743
      %v4783 = vsel %vm1252, %v4763, %v4745
      %v4784 = vsel %vm1252, %v4765, %v4747
      %v4785 = vsel %vm1252, %v4767, %v4749
      %v4786 = vmul.f32 %v4768, %v1277
      %v4787 = vmul.f32 %v4777, %v1281
      %v4788 = vmul.f32 %v4769, %v1277
      %v4789 = vmul.f32 %v4778, %v1281
      %v4790 = vmul.f32 %v4770, %v1277
      %v4791 = vmul.f32 %v4779, %v1281
      %v4792 = vmul.f32 %v4771, %v1277
      %v4793 = vmul.f32 %v4780, %v1281
      %v4794 = vmul.f32 %v4772, %v1277
      %v4795 = vmul.f32 %v4781, %v1281
      %v4796 = vmul.f32 %v4773, %v1277
      %v4797 = vmul.f32 %v4782, %v1281
      %v4798 = vmul.f32 %v4774, %v1277
      %v4799 = vmul.f32 %v4783, %v1281
      %v4800 = vmul.f32 %v4775, %v1277
      %v4801 = vmul.f32 %v4784, %v1281
      %v4802 = vmul.f32 %v4776, %v1277
      %v4803 = vmul.f32 %v4785, %v1281
      %4804 = vset.pattern.permute.xlu0 5
      %4805 = vperm.xlu0 %4804, %v4084
      %v4806 = vpop.permute.xlu0 %4805
      %4808 = vset.pattern.permute.xlu0 5
      %4809 = vperm.xlu0 %4808, %v4085
      %v4810 = vpop.permute.xlu0 %4809
      %4812 = vset.pattern.permute.xlu0 5
      %4813 = vperm.xlu0 %4812, %v4086
      %v4814 = vpop.permute.xlu0 %4813
      %4816 = vset.pattern.permute.xlu0 5
      %4817 = vperm.xlu0 %4816, %v4087
      %v4818 = vpop.permute.xlu0 %4817
      %4820 = vset.pattern.permute.xlu0 5
      %4821 = vperm.xlu0 %4820, %v4088
      %v4822 = vpop.permute.xlu0 %4821
      %4824 = vset.pattern.permute.xlu0 5
      %4825 = vperm.xlu0 %4824, %v4089
      %v4826 = vpop.permute.xlu0 %4825
      %4828 = vset.pattern.permute.xlu0 5
      %4829 = vperm.xlu0 %4828, %v4090
      %v4830 = vpop.permute.xlu0 %4829
      %4832 = vset.pattern.permute.xlu0 5
      %4833 = vperm.xlu0 %4832, %v4091
      %v4834 = vpop.permute.xlu0 %4833
      %4836 = vset.pattern.permute.xlu0 5
      %4837 = vperm.xlu0 %4836, %v4092
      %v4838 = vpop.permute.xlu0 %4837
      %v4840 = vmul.f32 %v4806, %v4786
      %v4841 = vmul.f32 %v4806, %v4787
      %v4842 = vmul.f32 %v4810, %v4788
      %v4843 = vmul.f32 %v4810, %v4789
      %v4844 = vmul.f32 %v4814, %v4790
      %v4845 = vmul.f32 %v4814, %v4791
      %v4846 = vmul.f32 %v4818, %v4792
      %v4847 = vmul.f32 %v4818, %v4793
      %v4848 = vmul.f32 %v4822, %v4794
      %v4849 = vmul.f32 %v4822, %v4795
      %v4850 = vmul.f32 %v4826, %v4796
      %v4851 = vmul.f32 %v4826, %v4797
      %v4852 = vmul.f32 %v4830, %v4798
      %v4853 = vmul.f32 %v4830, %v4799
      %v4854 = vmul.f32 %v4834, %v4800
      %v4855 = vmul.f32 %v4834, %v4801
      %v4856 = vmul.f32 %v4838, %v4802
      %v4857 = vmul.f32 %v4838, %v4803
      %v4858 = vadd.f32 %v4714, %v4840
      %v4859 = vadd.f32 %v4715, %v4841
      %v4860 = vadd.f32 %v4716, %v4842
      %v4861 = vadd.f32 %v4717, %v4843
      %v4862 = vadd.f32 %v4718, %v4844
      %v4863 = vadd.f32 %v4719, %v4845
      %v4864 = vadd.f32 %v4720, %v4846
      %v4865 = vadd.f32 %v4721, %v4847
      %v4866 = vadd.f32 %v4722, %v4848
      %v4867 = vadd.f32 %v4723, %v4849
      %v4868 = vadd.f32 %v4724, %v4850
      %v4869 = vadd.f32 %v4725, %v4851
      %v4870 = vadd.f32 %v4726, %v4852
      %v4871 = vadd.f32 %v4727, %v4853
      %v4872 = vadd.f32 %v4728, %v4854
      %v4873 = vadd.f32 %v4729, %v4855
      %v4874 = vadd.f32 %v4730, %v4856
      %v4875 = vadd.f32 %v4731, %v4857
      %4876 = vrot.lane.b32.xlu0 %v4066, 113
      %v4877 = vpop.permute.xlu0 %4876
      %4878 = vrot.lane.b32.xlu0 %v4068, 113
      %v4879 = vpop.permute.xlu0 %4878
      %4880 = vrot.lane.b32.xlu0 %v4070, 113
      %v4881 = vpop.permute.xlu0 %4880
      %4882 = vrot.lane.b32.xlu0 %v4072, 113
      %v4883 = vpop.permute.xlu0 %4882
      %4884 = vrot.lane.b32.xlu0 %v4074, 113
      %v4885 = vpop.permute.xlu0 %4884
      %4886 = vrot.lane.b32.xlu0 %v4076, 113
      %v4887 = vpop.permute.xlu0 %4886
      %4888 = vrot.lane.b32.xlu0 %v4078, 113
      %v4889 = vpop.permute.xlu0 %4888
      %4890 = vrot.lane.b32.xlu0 %v4080, 113
      %v4891 = vpop.permute.xlu0 %4890
      %4892 = vrot.lane.b32.xlu0 %v4082, 113
      %v4893 = vpop.permute.xlu0 %4892
      %4894 = vrot.lane.b32.xlu0 %v4067, 113
      %v4895 = vpop.permute.xlu0 %4894
      %4896 = vrot.lane.b32.xlu0 %v4069, 113
      %v4897 = vpop.permute.xlu0 %4896
      %4898 = vrot.lane.b32.xlu0 %v4071, 113
      %v4899 = vpop.permute.xlu0 %4898
      %4900 = vrot.lane.b32.xlu0 %v4073, 113
      %v4901 = vpop.permute.xlu0 %4900
      %4902 = vrot.lane.b32.xlu0 %v4075, 113
      %v4903 = vpop.permute.xlu0 %4902
      %4904 = vrot.lane.b32.xlu0 %v4077, 113
      %v4905 = vpop.permute.xlu0 %4904
      %4906 = vrot.lane.b32.xlu0 %v4079, 113
      %v4907 = vpop.permute.xlu0 %4906
      %4908 = vrot.lane.b32.xlu0 %v4081, 113
      %v4909 = vpop.permute.xlu0 %4908
      %4910 = vrot.lane.b32.xlu0 %v4083, 113
      %v4911 = vpop.permute.xlu0 %4910
      %v4912 = vsel %vm1410, %v4877, %v4895
      %v4913 = vsel %vm1410, %v4879, %v4897
      %v4914 = vsel %vm1410, %v4881, %v4899
      %v4915 = vsel %vm1410, %v4883, %v4901
      %v4916 = vsel %vm1410, %v4885, %v4903
      %v4917 = vsel %vm1410, %v4887, %v4905
      %v4918 = vsel %vm1410, %v4889, %v4907
      %v4919 = vsel %vm1410, %v4891, %v4909
      %v4920 = vsel %vm1410, %v4893, %v4911
      %v4921 = vsel %vm1410, %v4895, %v4877
      %v4922 = vsel %vm1410, %v4897, %v4879
      %v4923 = vsel %vm1410, %v4899, %v4881
      %v4924 = vsel %vm1410, %v4901, %v4883
      %v4925 = vsel %vm1410, %v4903, %v4885
      %v4926 = vsel %vm1410, %v4905, %v4887
      %v4927 = vsel %vm1410, %v4907, %v4889
      %v4928 = vsel %vm1410, %v4909, %v4891
      %v4929 = vsel %vm1410, %v4911, %v4893
      %v4930 = vmul.f32 %v4912, %v1435
      %v4931 = vmul.f32 %v4921, %v1439
      %v4932 = vmul.f32 %v4913, %v1435
      %v4933 = vmul.f32 %v4922, %v1439
      %v4934 = vmul.f32 %v4914, %v1435
      %v4935 = vmul.f32 %v4923, %v1439
      %v4936 = vmul.f32 %v4915, %v1435
      %v4937 = vmul.f32 %v4924, %v1439
      %v4938 = vmul.f32 %v4916, %v1435
      %v4939 = vmul.f32 %v4925, %v1439
      %v4940 = vmul.f32 %v4917, %v1435
      %v4941 = vmul.f32 %v4926, %v1439
      %v4942 = vmul.f32 %v4918, %v1435
      %v4943 = vmul.f32 %v4927, %v1439
      %v4944 = vmul.f32 %v4919, %v1435
      %v4945 = vmul.f32 %v4928, %v1439
      %v4946 = vmul.f32 %v4920, %v1435
      %v4947 = vmul.f32 %v4929, %v1439
      %4948 = vset.pattern.permute.xlu0 6
      %4949 = vperm.xlu0 %4948, %v4084
      %v4950 = vpop.permute.xlu0 %4949
      %4952 = vset.pattern.permute.xlu0 6
      %4953 = vperm.xlu0 %4952, %v4085
      %v4954 = vpop.permute.xlu0 %4953
      %4956 = vset.pattern.permute.xlu0 6
      %4957 = vperm.xlu0 %4956, %v4086
      %v4958 = vpop.permute.xlu0 %4957
      %4960 = vset.pattern.permute.xlu0 6
      %4961 = vperm.xlu0 %4960, %v4087
      %v4962 = vpop.permute.xlu0 %4961
      %4964 = vset.pattern.permute.xlu0 6
      %4965 = vperm.xlu0 %4964, %v4088
      %v4966 = vpop.permute.xlu0 %4965
      %4968 = vset.pattern.permute.xlu0 6
      %4969 = vperm.xlu0 %4968, %v4089
      %v4970 = vpop.permute.xlu0 %4969
      %4972 = vset.pattern.permute.xlu0 6
      %4973 = vperm.xlu0 %4972, %v4090
      %v4974 = vpop.permute.xlu0 %4973
      %4976 = vset.pattern.permute.xlu0 6
      %4977 = vperm.xlu0 %4976, %v4091
      %v4978 = vpop.permute.xlu0 %4977
      %4980 = vset.pattern.permute.xlu0 6
      %4981 = vperm.xlu0 %4980, %v4092
      %v4982 = vpop.permute.xlu0 %4981
      %v4984 = vmul.f32 %v4950, %v4930
      %v4985 = vmul.f32 %v4950, %v4931
      %v4986 = vmul.f32 %v4954, %v4932
      %v4987 = vmul.f32 %v4954, %v4933
      %v4988 = vmul.f32 %v4958, %v4934
      %v4989 = vmul.f32 %v4958, %v4935
      %v4990 = vmul.f32 %v4962, %v4936
      %v4991 = vmul.f32 %v4962, %v4937
      %v4992 = vmul.f32 %v4966, %v4938
      %v4993 = vmul.f32 %v4966, %v4939
      %v4994 = vmul.f32 %v4970, %v4940
      %v4995 = vmul.f32 %v4970, %v4941
      %v4996 = vmul.f32 %v4974, %v4942
      %v4997 = vmul.f32 %v4974, %v4943
      %v4998 = vmul.f32 %v4978, %v4944
      %v4999 = vmul.f32 %v4978, %v4945
      %v5000 = vmul.f32 %v4982, %v4946
      %v5001 = vmul.f32 %v4982, %v4947
      %v5002 = vadd.f32 %v4858, %v4984
      %v5003 = vadd.f32 %v4859, %v4985
      %v5004 = vadd.f32 %v4860, %v4986
      %v5005 = vadd.f32 %v4861, %v4987
      %v5006 = vadd.f32 %v4862, %v4988
      %v5007 = vadd.f32 %v4863, %v4989
      %v5008 = vadd.f32 %v4864, %v4990
      %v5009 = vadd.f32 %v4865, %v4991
      %v5010 = vadd.f32 %v4866, %v4992
      %v5011 = vadd.f32 %v4867, %v4993
      %v5012 = vadd.f32 %v4868, %v4994
      %v5013 = vadd.f32 %v4869, %v4995
      %v5014 = vadd.f32 %v4870, %v4996
      %v5015 = vadd.f32 %v4871, %v4997
      %v5016 = vadd.f32 %v4872, %v4998
      %v5017 = vadd.f32 %v4873, %v4999
      %v5018 = vadd.f32 %v4874, %v5000
      %v5019 = vadd.f32 %v4875, %v5001
      %5020 = vrot.lane.b32.xlu0 %v4066, 112
      %v5021 = vpop.permute.xlu0 %5020
      %5022 = vrot.lane.b32.xlu0 %v4068, 112
      %v5023 = vpop.permute.xlu0 %5022
      %5024 = vrot.lane.b32.xlu0 %v4070, 112
      %v5025 = vpop.permute.xlu0 %5024
      %5026 = vrot.lane.b32.xlu0 %v4072, 112
      %v5027 = vpop.permute.xlu0 %5026
      %5028 = vrot.lane.b32.xlu0 %v4074, 112
      %v5029 = vpop.permute.xlu0 %5028
      %5030 = vrot.lane.b32.xlu0 %v4076, 112
      %v5031 = vpop.permute.xlu0 %5030
      %5032 = vrot.lane.b32.xlu0 %v4078, 112
      %v5033 = vpop.permute.xlu0 %5032
      %5034 = vrot.lane.b32.xlu0 %v4080, 112
      %v5035 = vpop.permute.xlu0 %5034
      %5036 = vrot.lane.b32.xlu0 %v4082, 112
      %v5037 = vpop.permute.xlu0 %5036
      %5038 = vrot.lane.b32.xlu0 %v4067, 112
      %v5039 = vpop.permute.xlu0 %5038
      %5040 = vrot.lane.b32.xlu0 %v4069, 112
      %v5041 = vpop.permute.xlu0 %5040
      %5042 = vrot.lane.b32.xlu0 %v4071, 112
      %v5043 = vpop.permute.xlu0 %5042
      %5044 = vrot.lane.b32.xlu0 %v4073, 112
      %v5045 = vpop.permute.xlu0 %5044
      %5046 = vrot.lane.b32.xlu0 %v4075, 112
      %v5047 = vpop.permute.xlu0 %5046
      %5048 = vrot.lane.b32.xlu0 %v4077, 112
      %v5049 = vpop.permute.xlu0 %5048
      %5050 = vrot.lane.b32.xlu0 %v4079, 112
      %v5051 = vpop.permute.xlu0 %5050
      %5052 = vrot.lane.b32.xlu0 %v4081, 112
      %v5053 = vpop.permute.xlu0 %5052
      %5054 = vrot.lane.b32.xlu0 %v4083, 112
      %v5055 = vpop.permute.xlu0 %5054
      %v5056 = vsel %vm1568, %v5021, %v5039
      %v5057 = vsel %vm1568, %v5023, %v5041
      %v5058 = vsel %vm1568, %v5025, %v5043
      %v5059 = vsel %vm1568, %v5027, %v5045
      %v5060 = vsel %vm1568, %v5029, %v5047
      %v5061 = vsel %vm1568, %v5031, %v5049
      %v5062 = vsel %vm1568, %v5033, %v5051
      %v5063 = vsel %vm1568, %v5035, %v5053
      %v5064 = vsel %vm1568, %v5037, %v5055
      %v5065 = vsel %vm1568, %v5039, %v5021
      %v5066 = vsel %vm1568, %v5041, %v5023
      %v5067 = vsel %vm1568, %v5043, %v5025
      %v5068 = vsel %vm1568, %v5045, %v5027
      %v5069 = vsel %vm1568, %v5047, %v5029
      %v5070 = vsel %vm1568, %v5049, %v5031
      %v5071 = vsel %vm1568, %v5051, %v5033
      %v5072 = vsel %vm1568, %v5053, %v5035
      %v5073 = vsel %vm1568, %v5055, %v5037
      %v5074 = vmul.f32 %v5056, %v1593
      %v5075 = vmul.f32 %v5065, %v1597
      %v5076 = vmul.f32 %v5057, %v1593
      %v5077 = vmul.f32 %v5066, %v1597
      %v5078 = vmul.f32 %v5058, %v1593
      %v5079 = vmul.f32 %v5067, %v1597
      %v5080 = vmul.f32 %v5059, %v1593
      %v5081 = vmul.f32 %v5068, %v1597
      %v5082 = vmul.f32 %v5060, %v1593
      %v5083 = vmul.f32 %v5069, %v1597
      %v5084 = vmul.f32 %v5061, %v1593
      %v5085 = vmul.f32 %v5070, %v1597
      %v5086 = vmul.f32 %v5062, %v1593
      %v5087 = vmul.f32 %v5071, %v1597
      %v5088 = vmul.f32 %v5063, %v1593
      %v5089 = vmul.f32 %v5072, %v1597
      %v5090 = vmul.f32 %v5064, %v1593
      %v5091 = vmul.f32 %v5073, %v1597
      %5092 = vset.pattern.permute.xlu0 7
      %5093 = vperm.xlu0 %5092, %v4084
      %v5094 = vpop.permute.xlu0 %5093
      %5096 = vset.pattern.permute.xlu0 7
      %5097 = vperm.xlu0 %5096, %v4085
      %v5098 = vpop.permute.xlu0 %5097
      %5100 = vset.pattern.permute.xlu0 7
      %5101 = vperm.xlu0 %5100, %v4086
      %v5102 = vpop.permute.xlu0 %5101
      %5104 = vset.pattern.permute.xlu0 7
      %5105 = vperm.xlu0 %5104, %v4087
      %v5106 = vpop.permute.xlu0 %5105
      %5108 = vset.pattern.permute.xlu0 7
      %5109 = vperm.xlu0 %5108, %v4088
      %v5110 = vpop.permute.xlu0 %5109
      %5112 = vset.pattern.permute.xlu0 7
      %5113 = vperm.xlu0 %5112, %v4089
      %v5114 = vpop.permute.xlu0 %5113
      %5116 = vset.pattern.permute.xlu0 7
      %5117 = vperm.xlu0 %5116, %v4090
      %v5118 = vpop.permute.xlu0 %5117
      %5120 = vset.pattern.permute.xlu0 7
      %5121 = vperm.xlu0 %5120, %v4091
      %v5122 = vpop.permute.xlu0 %5121
      %5124 = vset.pattern.permute.xlu0 7
      %5125 = vperm.xlu0 %5124, %v4092
      %v5126 = vpop.permute.xlu0 %5125
      %v5128 = vmul.f32 %v5094, %v5074
      %v5129 = vmul.f32 %v5094, %v5075
      %v5130 = vmul.f32 %v5098, %v5076
      %v5131 = vmul.f32 %v5098, %v5077
      %v5132 = vmul.f32 %v5102, %v5078
      %v5133 = vmul.f32 %v5102, %v5079
      %v5134 = vmul.f32 %v5106, %v5080
      %v5135 = vmul.f32 %v5106, %v5081
      %v5136 = vmul.f32 %v5110, %v5082
      %v5137 = vmul.f32 %v5110, %v5083
      %v5138 = vmul.f32 %v5114, %v5084
      %v5139 = vmul.f32 %v5114, %v5085
      %v5140 = vmul.f32 %v5118, %v5086
      %v5141 = vmul.f32 %v5118, %v5087
      %v5142 = vmul.f32 %v5122, %v5088
      %v5143 = vmul.f32 %v5122, %v5089
      %v5144 = vmul.f32 %v5126, %v5090
      %v5145 = vmul.f32 %v5126, %v5091
      %v5146 = vadd.f32 %v5002, %v5128
      %v5147 = vadd.f32 %v5003, %v5129
      %v5148 = vadd.f32 %v5004, %v5130
      %v5149 = vadd.f32 %v5005, %v5131
      %v5150 = vadd.f32 %v5006, %v5132
      %v5151 = vadd.f32 %v5007, %v5133
      %v5152 = vadd.f32 %v5008, %v5134
      %v5153 = vadd.f32 %v5009, %v5135
      %v5154 = vadd.f32 %v5010, %v5136
      %v5155 = vadd.f32 %v5011, %v5137
      %v5156 = vadd.f32 %v5012, %v5138
      %v5157 = vadd.f32 %v5013, %v5139
      %v5158 = vadd.f32 %v5014, %v5140
      %v5159 = vadd.f32 %v5015, %v5141
      %v5160 = vadd.f32 %v5016, %v5142
      %v5161 = vadd.f32 %v5017, %v5143
      %v5162 = vadd.f32 %v5018, %v5144
      %v5163 = vadd.f32 %v5019, %v5145
      %5164 = vrot.lane.b32.xlu0 %v4066, 111
      %v5165 = vpop.permute.xlu0 %5164
      %5166 = vrot.lane.b32.xlu0 %v4068, 111
      %v5167 = vpop.permute.xlu0 %5166
      %5168 = vrot.lane.b32.xlu0 %v4070, 111
      %v5169 = vpop.permute.xlu0 %5168
      %5170 = vrot.lane.b32.xlu0 %v4072, 111
      %v5171 = vpop.permute.xlu0 %5170
      %5172 = vrot.lane.b32.xlu0 %v4074, 111
      %v5173 = vpop.permute.xlu0 %5172
      %5174 = vrot.lane.b32.xlu0 %v4076, 111
      %v5175 = vpop.permute.xlu0 %5174
      %5176 = vrot.lane.b32.xlu0 %v4078, 111
      %v5177 = vpop.permute.xlu0 %5176
      %5178 = vrot.lane.b32.xlu0 %v4080, 111
      %v5179 = vpop.permute.xlu0 %5178
      %5180 = vrot.lane.b32.xlu0 %v4082, 111
      %v5181 = vpop.permute.xlu0 %5180
      %5182 = vrot.lane.b32.xlu0 %v4067, 111
      %v5183 = vpop.permute.xlu0 %5182
      %5184 = vrot.lane.b32.xlu0 %v4069, 111
      %v5185 = vpop.permute.xlu0 %5184
      %5186 = vrot.lane.b32.xlu0 %v4071, 111
      %v5187 = vpop.permute.xlu0 %5186
      %5188 = vrot.lane.b32.xlu0 %v4073, 111
      %v5189 = vpop.permute.xlu0 %5188
      %5190 = vrot.lane.b32.xlu0 %v4075, 111
      %v5191 = vpop.permute.xlu0 %5190
      %5192 = vrot.lane.b32.xlu0 %v4077, 111
      %v5193 = vpop.permute.xlu0 %5192
      %5194 = vrot.lane.b32.xlu0 %v4079, 111
      %v5195 = vpop.permute.xlu0 %5194
      %5196 = vrot.lane.b32.xlu0 %v4081, 111
      %v5197 = vpop.permute.xlu0 %5196
      %5198 = vrot.lane.b32.xlu0 %v4083, 111
      %v5199 = vpop.permute.xlu0 %5198
      %v5200 = vsel %vm1726, %v5165, %v5183
      %v5201 = vsel %vm1726, %v5167, %v5185
      %v5202 = vsel %vm1726, %v5169, %v5187
      %v5203 = vsel %vm1726, %v5171, %v5189
      %v5204 = vsel %vm1726, %v5173, %v5191
      %v5205 = vsel %vm1726, %v5175, %v5193
      %v5206 = vsel %vm1726, %v5177, %v5195
      %v5207 = vsel %vm1726, %v5179, %v5197
      %v5208 = vsel %vm1726, %v5181, %v5199
      %v5209 = vsel %vm1726, %v5183, %v5165
      %v5210 = vsel %vm1726, %v5185, %v5167
      %v5211 = vsel %vm1726, %v5187, %v5169
      %v5212 = vsel %vm1726, %v5189, %v5171
      %v5213 = vsel %vm1726, %v5191, %v5173
      %v5214 = vsel %vm1726, %v5193, %v5175
      %v5215 = vsel %vm1726, %v5195, %v5177
      %v5216 = vsel %vm1726, %v5197, %v5179
      %v5217 = vsel %vm1726, %v5199, %v5181
      %v5218 = vmul.f32 %v5200, %v1751
      %v5219 = vmul.f32 %v5209, %v1755
      %v5220 = vmul.f32 %v5201, %v1751
      %v5221 = vmul.f32 %v5210, %v1755
      %v5222 = vmul.f32 %v5202, %v1751
      %v5223 = vmul.f32 %v5211, %v1755
      %v5224 = vmul.f32 %v5203, %v1751
      %v5225 = vmul.f32 %v5212, %v1755
      %v5226 = vmul.f32 %v5204, %v1751
      %v5227 = vmul.f32 %v5213, %v1755
      %v5228 = vmul.f32 %v5205, %v1751
      %v5229 = vmul.f32 %v5214, %v1755
      %v5230 = vmul.f32 %v5206, %v1751
      %v5231 = vmul.f32 %v5215, %v1755
      %v5232 = vmul.f32 %v5207, %v1751
      %v5233 = vmul.f32 %v5216, %v1755
      %v5234 = vmul.f32 %v5208, %v1751
      %v5235 = vmul.f32 %v5217, %v1755
      %5236 = vset.pattern.permute.xlu0 8
      %5237 = vperm.xlu0 %5236, %v4084
      %v5238 = vpop.permute.xlu0 %5237
      %5240 = vset.pattern.permute.xlu0 8
      %5241 = vperm.xlu0 %5240, %v4085
      %v5242 = vpop.permute.xlu0 %5241
      %5244 = vset.pattern.permute.xlu0 8
      %5245 = vperm.xlu0 %5244, %v4086
      %v5246 = vpop.permute.xlu0 %5245
      %5248 = vset.pattern.permute.xlu0 8
      %5249 = vperm.xlu0 %5248, %v4087
      %v5250 = vpop.permute.xlu0 %5249
      %5252 = vset.pattern.permute.xlu0 8
      %5253 = vperm.xlu0 %5252, %v4088
      %v5254 = vpop.permute.xlu0 %5253
      %5256 = vset.pattern.permute.xlu0 8
      %5257 = vperm.xlu0 %5256, %v4089
      %v5258 = vpop.permute.xlu0 %5257
      %5260 = vset.pattern.permute.xlu0 8
      %5261 = vperm.xlu0 %5260, %v4090
      %v5262 = vpop.permute.xlu0 %5261
      %5264 = vset.pattern.permute.xlu0 8
      %5265 = vperm.xlu0 %5264, %v4091
      %v5266 = vpop.permute.xlu0 %5265
      %5268 = vset.pattern.permute.xlu0 8
      %5269 = vperm.xlu0 %5268, %v4092
      %v5270 = vpop.permute.xlu0 %5269
      %v5272 = vmul.f32 %v5238, %v5218
      %v5273 = vmul.f32 %v5238, %v5219
      %v5274 = vmul.f32 %v5242, %v5220
      %v5275 = vmul.f32 %v5242, %v5221
      %v5276 = vmul.f32 %v5246, %v5222
      %v5277 = vmul.f32 %v5246, %v5223
      %v5278 = vmul.f32 %v5250, %v5224
      %v5279 = vmul.f32 %v5250, %v5225
      %v5280 = vmul.f32 %v5254, %v5226
      %v5281 = vmul.f32 %v5254, %v5227
      %v5282 = vmul.f32 %v5258, %v5228
      %v5283 = vmul.f32 %v5258, %v5229
      %v5284 = vmul.f32 %v5262, %v5230
      %v5285 = vmul.f32 %v5262, %v5231
      %v5286 = vmul.f32 %v5266, %v5232
      %v5287 = vmul.f32 %v5266, %v5233
      %v5288 = vmul.f32 %v5270, %v5234
      %v5289 = vmul.f32 %v5270, %v5235
      %v5290 = vadd.f32 %v5146, %v5272
      %v5291 = vadd.f32 %v5147, %v5273
      %v5292 = vadd.f32 %v5148, %v5274
      %v5293 = vadd.f32 %v5149, %v5275
      %v5294 = vadd.f32 %v5150, %v5276
      %v5295 = vadd.f32 %v5151, %v5277
      %v5296 = vadd.f32 %v5152, %v5278
      %v5297 = vadd.f32 %v5153, %v5279
      %v5298 = vadd.f32 %v5154, %v5280
      %v5299 = vadd.f32 %v5155, %v5281
      %v5300 = vadd.f32 %v5156, %v5282
      %v5301 = vadd.f32 %v5157, %v5283
      %v5302 = vadd.f32 %v5158, %v5284
      %v5303 = vadd.f32 %v5159, %v5285
      %v5304 = vadd.f32 %v5160, %v5286
      %v5305 = vadd.f32 %v5161, %v5287
      %v5306 = vadd.f32 %v5162, %v5288
      %v5307 = vadd.f32 %v5163, %v5289
      %5308 = vset.pattern.permute.xlu0 1
      %5309 = vperm.xlu0 %5308, %v311
      %v5310 = vpop.permute.xlu0 %5309
      %5312 = vset.pattern.permute.xlu0 1
      %5313 = vperm.xlu0 %5312, %v312
      %v5314 = vpop.permute.xlu0 %5313
      %5316 = vset.pattern.permute.xlu0 1
      %5317 = vperm.xlu0 %5316, %v313
      %v5318 = vpop.permute.xlu0 %5317
      %5320 = vset.pattern.permute.xlu0 1
      %5321 = vperm.xlu0 %5320, %v314
      %v5322 = vpop.permute.xlu0 %5321
      %5324 = vset.pattern.permute.xlu0 1
      %5325 = vperm.xlu0 %5324, %v315
      %v5326 = vpop.permute.xlu0 %5325
      %5328 = vset.pattern.permute.xlu0 1
      %5329 = vperm.xlu0 %5328, %v316
      %v5330 = vpop.permute.xlu0 %5329
      %5332 = vset.pattern.permute.xlu0 1
      %5333 = vperm.xlu0 %5332, %v317
      %v5334 = vpop.permute.xlu0 %5333
      %5336 = vset.pattern.permute.xlu0 1
      %5337 = vperm.xlu0 %5336, %v318
      %v5338 = vpop.permute.xlu0 %5337
      %5340 = vset.pattern.permute.xlu0 1
      %5341 = vperm.xlu0 %5340, %v319
      %v5342 = vpop.permute.xlu0 %5341
      %v5344 = vadd.f32 %v5290, %v5310
      %v5345 = vadd.f32 %v5291, %v5310
      %v5346 = vadd.f32 %v5292, %v5314
      %v5347 = vadd.f32 %v5293, %v5314
      %v5348 = vadd.f32 %v5294, %v5318
      %v5349 = vadd.f32 %v5295, %v5318
      %v5350 = vadd.f32 %v5296, %v5322
      %v5351 = vadd.f32 %v5297, %v5322
      %v5352 = vadd.f32 %v5298, %v5326
      %v5353 = vadd.f32 %v5299, %v5326
      %v5354 = vadd.f32 %v5300, %v5330
      %v5355 = vadd.f32 %v5301, %v5330
      %v5356 = vadd.f32 %v5302, %v5334
      %v5357 = vadd.f32 %v5303, %v5334
      %v5358 = vadd.f32 %v5304, %v5338
      %v5359 = vadd.f32 %v5305, %v5338
      %v5360 = vadd.f32 %v5306, %v5342
      %v5361 = vadd.f32 %v5307, %v5342
      %v5362 = vxor.u32 %v5344, 2147483648
      %v5363 = vxor.u32 %v5345, 2147483648
      %v5364 = vxor.u32 %v5346, 2147483648
      %v5365 = vxor.u32 %v5347, 2147483648
      %v5366 = vxor.u32 %v5348, 2147483648
      %v5367 = vxor.u32 %v5349, 2147483648
      %v5368 = vxor.u32 %v5350, 2147483648
      %v5369 = vxor.u32 %v5351, 2147483648
      %v5370 = vxor.u32 %v5352, 2147483648
      %v5371 = vxor.u32 %v5353, 2147483648
      %v5372 = vxor.u32 %v5354, 2147483648
      %v5373 = vxor.u32 %v5355, 2147483648
      %v5374 = vxor.u32 %v5356, 2147483648
      %v5375 = vxor.u32 %v5357, 2147483648
      %v5376 = vxor.u32 %v5358, 2147483648
      %v5377 = vxor.u32 %v5359, 2147483648
      %v5378 = vxor.u32 %v5360, 2147483648
      %v5379 = vxor.u32 %v5361, 2147483648
      %v5380 = vmul.f32 %v5362, 1.442695
      %v5381 = vpow.pop %v5380
      %v5382 = vmul.f32 %v5363, 1.442695
      %v5383 = vpow.pop %v5382
      %v5384 = vmul.f32 %v5364, 1.442695
      %v5385 = vpow.pop %v5384
      %v5386 = vmul.f32 %v5365, 1.442695
      %v5387 = vpow.pop %v5386
      %v5388 = vmul.f32 %v5366, 1.442695
      %v5389 = vpow.pop %v5388
      %v5390 = vmul.f32 %v5367, 1.442695
      %v5391 = vpow.pop %v5390
      %v5392 = vmul.f32 %v5368, 1.442695
      %v5393 = vpow.pop %v5392
      %v5394 = vmul.f32 %v5369, 1.442695
      %v5395 = vpow.pop %v5394
      %v5396 = vmul.f32 %v5370, 1.442695
      %v5397 = vpow.pop %v5396
      %v5398 = vmul.f32 %v5371, 1.442695
      %v5399 = vpow.pop %v5398
      %v5400 = vmul.f32 %v5372, 1.442695
      %v5401 = vpow.pop %v5400
      %v5402 = vmul.f32 %v5373, 1.442695
      %v5403 = vpow.pop %v5402
      %v5404 = vmul.f32 %v5374, 1.442695
      %v5405 = vpow.pop %v5404
      %v5406 = vmul.f32 %v5375, 1.442695
      %v5407 = vpow.pop %v5406
      %v5408 = vmul.f32 %v5376, 1.442695
      %v5409 = vpow.pop %v5408
      %v5410 = vmul.f32 %v5377, 1.442695
      %v5411 = vpow.pop %v5410
      %v5412 = vmul.f32 %v5378, 1.442695
      %v5413 = vpow.pop %v5412
      %v5414 = vmul.f32 %v5379, 1.442695
      %v5415 = vpow.pop %v5414
      %v5416 = vadd.f32 %v5381, 1.0
      %v5417 = vadd.f32 %v5383, 1.0
      %v5418 = vadd.f32 %v5385, 1.0
      %v5419 = vadd.f32 %v5387, 1.0
      %v5420 = vadd.f32 %v5389, 1.0
      %v5421 = vadd.f32 %v5391, 1.0
      %v5422 = vadd.f32 %v5393, 1.0
      %v5423 = vadd.f32 %v5395, 1.0
      %v5424 = vadd.f32 %v5397, 1.0
      %v5425 = vadd.f32 %v5399, 1.0
      %v5426 = vadd.f32 %v5401, 1.0
      %v5427 = vadd.f32 %v5403, 1.0
      %v5428 = vadd.f32 %v5405, 1.0
      %v5429 = vadd.f32 %v5407, 1.0
      %v5430 = vadd.f32 %v5409, 1.0
      %v5431 = vadd.f32 %v5411, 1.0
      %v5432 = vadd.f32 %v5413, 1.0
      %v5433 = vadd.f32 %v5415, 1.0
      %v5434 = vrcp.pop %v5416
      %v5435 = vmul.f32 1.0, %v5434
      %v5436 = vrcp.pop %v5417
      %v5437 = vmul.f32 1.0, %v5436
      %v5438 = vrcp.pop %v5418
      %v5439 = vmul.f32 1.0, %v5438
      %v5440 = vrcp.pop %v5419
      %v5441 = vmul.f32 1.0, %v5440
      %v5442 = vrcp.pop %v5420
      %v5443 = vmul.f32 1.0, %v5442
      %v5444 = vrcp.pop %v5421
      %v5445 = vmul.f32 1.0, %v5444
      %v5446 = vrcp.pop %v5422
      %v5447 = vmul.f32 1.0, %v5446
      %v5448 = vrcp.pop %v5423
      %v5449 = vmul.f32 1.0, %v5448
      %v5450 = vrcp.pop %v5424
      %v5451 = vmul.f32 1.0, %v5450
      %v5452 = vrcp.pop %v5425
      %v5453 = vmul.f32 1.0, %v5452
      %v5454 = vrcp.pop %v5426
      %v5455 = vmul.f32 1.0, %v5454
      %v5456 = vrcp.pop %v5427
      %v5457 = vmul.f32 1.0, %v5456
      %v5458 = vrcp.pop %v5428
      %v5459 = vmul.f32 1.0, %v5458
      %v5460 = vrcp.pop %v5429
      %v5461 = vmul.f32 1.0, %v5460
      %v5462 = vrcp.pop %v5430
      %v5463 = vmul.f32 1.0, %v5462
      %v5464 = vrcp.pop %v5431
      %v5465 = vmul.f32 1.0, %v5464
      %v5466 = vrcp.pop %v5432
      %v5467 = vmul.f32 1.0, %v5466
      %v5468 = vrcp.pop %v5433
      %v5469 = vmul.f32 1.0, %v5468
      %v5470 = vmul.f32 %v3400, %v5435
      %v5471 = vmul.f32 %v3401, %v5437
      %v5472 = vmul.f32 %v3402, %v5439
      %v5473 = vmul.f32 %v3403, %v5441
      %v5474 = vmul.f32 %v3404, %v5443
      %v5475 = vmul.f32 %v3405, %v5445
      %v5476 = vmul.f32 %v3406, %v5447
      %v5477 = vmul.f32 %v3407, %v5449
      %v5478 = vmul.f32 %v3408, %v5451
      %v5479 = vmul.f32 %v3409, %v5453
      %v5480 = vmul.f32 %v3410, %v5455
      %v5481 = vmul.f32 %v3411, %v5457
      %v5482 = vmul.f32 %v3412, %v5459
      %v5483 = vmul.f32 %v3413, %v5461
      %v5484 = vmul.f32 %v3414, %v5463
      %v5485 = vmul.f32 %v3415, %v5465
      %v5486 = vmul.f32 %v3416, %v5467
      %v5487 = vmul.f32 %v3417, %v5469
      %s5488 = scalar_lea.vmem %s3, 108
      %v5489 = vld [vmem:[%s5488] sm:$0xf]
      %v5490 = vld [vmem:[%s5488 + $0x4] sm:$0xf]
      %v5491 = vld [vmem:[%s5488 + $0x8] sm:$0xf]
      %v5492 = vld [vmem:[%s5488 + $0xc] sm:$0xf]
      %v5493 = vld [vmem:[%s5488 + $0x10] sm:$0xf]
      %v5494 = vld [vmem:[%s5488 + $0x14] sm:$0xf]
      %v5495 = vld [vmem:[%s5488 + $0x18] sm:$0xf]
      %v5496 = vld [vmem:[%s5488 + $0x1c] sm:$0xf]
      %v5497 = vld [vmem:[%s5488 + $0x20] sm:$0xf]
      %v5498 = vpack.c.bf16 %v5472, %v5470
      %v5499 = vpack.c.bf16 %v5473, %v5471
      %v5500 = vpack.c.bf16 %v5476, %v5474
      %v5501 = vpack.c.bf16 %v5477, %v5475
      %v5502 = vpack.c.bf16 %v5480, %v5478
      %v5503 = vpack.c.bf16 %v5481, %v5479
      %v5504 = vpack.c.bf16 %v5484, %v5482
      %v5505 = vpack.c.bf16 %v5485, %v5483
      %v5506 = vpack.c.bf16 %v5486, %v5486
      %v5507 = vpack.c.bf16 %v5487, %v5487
      %5508 = vset.pattern.permute.xlu0 6
      %5509 = vperm.xlu0 %5508, %v311
      %v5510 = vpop.permute.xlu0 %5509
      %5512 = vset.pattern.permute.xlu0 6
      %5513 = vperm.xlu0 %5512, %v312
      %v5514 = vpop.permute.xlu0 %5513
      %5516 = vset.pattern.permute.xlu0 6
      %5517 = vperm.xlu0 %5516, %v313
      %v5518 = vpop.permute.xlu0 %5517
      %5520 = vset.pattern.permute.xlu0 6
      %5521 = vperm.xlu0 %5520, %v314
      %v5522 = vpop.permute.xlu0 %5521
      %5524 = vset.pattern.permute.xlu0 6
      %5525 = vperm.xlu0 %5524, %v315
      %v5526 = vpop.permute.xlu0 %5525
      %5528 = vset.pattern.permute.xlu0 6
      %5529 = vperm.xlu0 %5528, %v316
      %v5530 = vpop.permute.xlu0 %5529
      %5532 = vset.pattern.permute.xlu0 6
      %5533 = vperm.xlu0 %5532, %v317
      %v5534 = vpop.permute.xlu0 %5533
      %5536 = vset.pattern.permute.xlu0 6
      %5537 = vperm.xlu0 %5536, %v318
      %v5538 = vpop.permute.xlu0 %5537
      %5540 = vset.pattern.permute.xlu0 6
      %5541 = vperm.xlu0 %5540, %v319
      %v5542 = vpop.permute.xlu0 %5541
      %v5553 = vunpack.c.l.b16 %v5489
      %v5554 = vunpack.c.l.b16 %v5490
      %v5555 = vunpack.c.l.b16 %v5491
      %v5556 = vunpack.c.l.b16 %v5492
      %v5557 = vunpack.c.l.b16 %v5493
      %v5558 = vunpack.c.l.b16 %v5494
      %v5559 = vunpack.c.l.b16 %v5495
      %v5560 = vunpack.c.l.b16 %v5496
      %v5561 = vunpack.c.l.b16 %v5497
      %v5562 = vpack.c.b16 %v5554, %v5553
      %v5563 = vpack.c.b16 %v5556, %v5555
      %v5564 = vpack.c.b16 %v5558, %v5557
      %v5565 = vpack.c.b16 %v5560, %v5559
      %v5566 = vpack.c.b16 %v5561, %v5561
      %v5568 = vsel %vm388, %v5562, 0
      %v5571 = vsel %vm388, %v5563, 0
      %v5574 = vsel %vm388, %v5564, 0
      %v5577 = vsel %vm388, %v5565, 0
      %v5580 = vsel %vm388, %v5566, 0
      %v5583 = vsel %vm404, %v5506, 0
      %v5586 = vsel %vm404, %v5507, 0
      %5588 = vmatprep.subr.bf16.mxu0 %v5499
      %5589 = vmatpush1.bf16.msra.mxu0 %v5498
      %5590 = vmatprep.subr.bf16.mxu0 %v5501
      %5591 = vmatpush1.bf16.msra.mxu0 %v5500
      %5592 = vmatprep.subr.bf16.mxu0 %v5503
      %5593 = vmatpush1.bf16.msra.mxu0 %v5502
      %5594 = vmatprep.subr.bf16.mxu0 %v5505
      %5595 = vmatpush1.bf16.msra.mxu0 %v5504
      %5596 = vmatprep.subr.bf16.mxu0 %v5586
      %5597 = vmatpush1.bf16.msra.mxu0 %v5583
      %5598 = vmatprep.subr.bf16.mxu0 0
      %5599 = vmatpush1.bf16.msra.mxu0 0
      %5600 = vmatprep.subr.bf16.mxu0 0
      %5601 = vmatpush1.bf16.msra.mxu0 0
      %5602 = vmatprep.subr.bf16.mxu0 0
      %5603 = vmatpush1.bf16.msra.mxu0 0
      %5604 = vmatprep.subr.bf16.mxu0 0
      %5605 = vmatpush1.bf16.msra.mxu0 0
      %5606 = vmatprep.subr.bf16.mxu0 0
      %5607 = vmatpush1.bf16.msra.mxu0 0
      %5608 = vmatprep.subr.bf16.mxu0 0
      %5609 = vmatpush1.bf16.msra.mxu0 0
      %5610 = vmatprep.subr.bf16.mxu0 0
      %5611 = vmatpush1.bf16.msra.mxu0 0
      %5612 = vmatprep.subr.bf16.mxu0 0
      %5613 = vmatpush1.bf16.msra.mxu0 0
      %5614 = vmatprep.subr.bf16.mxu0 0
      %5615 = vmatpush1.bf16.msra.mxu0 0
      %5616 = vmatprep.subr.bf16.mxu0 0
      %5617 = vmatpush1.bf16.msra.mxu0 0
      %5618 = vmatprep.subr.bf16.mxu0 0
      %5619 = vmatpush1.bf16.msra.mxu0 0
      %5620 = vmatprep.mubr.bf16.mxu0 0
      %5621 = vmatmul.mubr.bf16.gmra.mrb[0].mxu0 %v5568
      %v5622 = vpop.f32.mrb[0].mxu0
      %v5623 = vadd.f32 %v5510, %v5622
      %v5624 = vpop.f32.mrb[0].mxu0
      %v5625 = vadd.f32 %v5510, %v5624
      %v5626 = vpop.f32.mrb[0].mxu0
      %v5627 = vadd.f32 %v5514, %v5626
      %v5628 = vpop.f32.mrb[0].mxu0
      %v5629 = vadd.f32 %v5514, %v5628
      %5630 = vmatprep.mubr.bf16.mxu0 0
      %5631 = vmatmul.mubr.bf16.gmra.mrb[0].mxu0 %v5571
      %v5632 = vpop.f32.mrb[0].mxu0
      %v5633 = vadd.f32 %v5518, %v5632
      %v5634 = vpop.f32.mrb[0].mxu0
      %v5635 = vadd.f32 %v5518, %v5634
      %v5636 = vpop.f32.mrb[0].mxu0
      %v5637 = vadd.f32 %v5522, %v5636
      %v5638 = vpop.f32.mrb[0].mxu0
      %v5639 = vadd.f32 %v5522, %v5638
      %5640 = vmatprep.mubr.bf16.mxu0 0
      %5641 = vmatmul.mubr.bf16.gmra.mrb[0].mxu0 %v5574
      %v5642 = vpop.f32.mrb[0].mxu0
      %v5643 = vadd.f32 %v5526, %v5642
      %v5644 = vpop.f32.mrb[0].mxu0
      %v5645 = vadd.f32 %v5526, %v5644
      %v5646 = vpop.f32.mrb[0].mxu0
      %v5647 = vadd.f32 %v5530, %v5646
      %v5648 = vpop.f32.mrb[0].mxu0
      %v5649 = vadd.f32 %v5530, %v5648
      %5650 = vmatprep.mubr.bf16.mxu0 0
      %5651 = vmatmul.mubr.bf16.gmra.mrb[0].mxu0 %v5577
      %v5652 = vpop.f32.mrb[0].mxu0
      %v5653 = vadd.f32 %v5534, %v5652
      %v5654 = vpop.f32.mrb[0].mxu0
      %v5655 = vadd.f32 %v5534, %v5654
      %v5656 = vpop.f32.mrb[0].mxu0
      %v5657 = vadd.f32 %v5538, %v5656
      %v5658 = vpop.f32.mrb[0].mxu0
      %v5659 = vadd.f32 %v5538, %v5658
      %5660 = vmatprep.mubr.bf16.mxu0 0
      %5661 = vmatmul.mubr.bf16.gmra.mrb[0].mxu0 %v5580
      %v5662 = vpop.f32.mrb[0].mxu0
      %v5663 = vadd.f32 %v5542, %v5662
      %v5664 = vpop.f32.mrb[0].mxu0
      %v5665 = vadd.f32 %v5542, %v5664
      %v5666 = vpop.f32.mrb[0].mxu0
      %v5667 = vpop.f32.mrb[0].mxu0
      %5668 = vdwg.mxu0
      %s5669 = scalar_lea.vmem %s3, 144
      %v5670 = vld [vmem:[%s5669] sm:$0xf]
      %v5671 = vld [vmem:[%s5669 + $0x4] sm:$0xf]
      %v5672 = vld [vmem:[%s5669 + $0x8] sm:$0xf]
      %v5673 = vld [vmem:[%s5669 + $0xc] sm:$0xf]
      %v5674 = vld [vmem:[%s5669 + $0x10] sm:$0xf]
      %v5675 = vld [vmem:[%s5669 + $0x14] sm:$0xf]
      %v5676 = vld [vmem:[%s5669 + $0x18] sm:$0xf]
      %v5677 = vld [vmem:[%s5669 + $0x1c] sm:$0xf]
      %v5678 = vld [vmem:[%s5669 + $0x20] sm:$0xf]
      %v5679 = vpack.c.bf16 %v5627, %v5623
      %v5680 = vpack.c.bf16 %v5629, %v5625
      %v5681 = vpack.c.bf16 %v5637, %v5633
      %v5682 = vpack.c.bf16 %v5639, %v5635
      %v5683 = vpack.c.bf16 %v5647, %v5643
      %v5684 = vpack.c.bf16 %v5649, %v5645
      %v5685 = vpack.c.bf16 %v5657, %v5653
      %v5686 = vpack.c.bf16 %v5659, %v5655
      %v5687 = vpack.c.bf16 %v5663, %v5663
      %v5688 = vpack.c.bf16 %v5665, %v5665
      %5689 = vset.pattern.permute.xlu0 7
      %5690 = vperm.xlu0 %5689, %v311
      %v5691 = vpop.permute.xlu0 %5690
      %5693 = vset.pattern.permute.xlu0 7
      %5694 = vperm.xlu0 %5693, %v312
      %v5695 = vpop.permute.xlu0 %5694
      %5697 = vset.pattern.permute.xlu0 7
      %5698 = vperm.xlu0 %5697, %v313
      %v5699 = vpop.permute.xlu0 %5698
      %5701 = vset.pattern.permute.xlu0 7
      %5702 = vperm.xlu0 %5701, %v314
      %v5703 = vpop.permute.xlu0 %5702
      %5705 = vset.pattern.permute.xlu0 7
      %5706 = vperm.xlu0 %5705, %v315
      %v5707 = vpop.permute.xlu0 %5706
      %5709 = vset.pattern.permute.xlu0 7
      %5710 = vperm.xlu0 %5709, %v316
      %v5711 = vpop.permute.xlu0 %5710
      %5713 = vset.pattern.permute.xlu0 7
      %5714 = vperm.xlu0 %5713, %v317
      %v5715 = vpop.permute.xlu0 %5714
      %5717 = vset.pattern.permute.xlu0 7
      %5718 = vperm.xlu0 %5717, %v318
      %v5719 = vpop.permute.xlu0 %5718
      %5721 = vset.pattern.permute.xlu0 7
      %5722 = vperm.xlu0 %5721, %v319
      %v5723 = vpop.permute.xlu0 %5722
      %v5734 = vunpack.c.l.b16 %v5670
      %v5735 = vunpack.c.l.b16 %v5671
      %v5736 = vunpack.c.l.b16 %v5672
      %v5737 = vunpack.c.l.b16 %v5673
      %v5738 = vunpack.c.l.b16 %v5674
      %v5739 = vunpack.c.l.b16 %v5675
      %v5740 = vunpack.c.l.b16 %v5676
      %v5741 = vunpack.c.l.b16 %v5677
      %v5742 = vunpack.c.l.b16 %v5678
      %v5743 = vpack.c.b16 %v5735, %v5734
      %v5744 = vpack.c.b16 %v5737, %v5736
      %v5745 = vpack.c.b16 %v5739, %v5738
      %v5746 = vpack.c.b16 %v5741, %v5740
      %v5747 = vpack.c.b16 %v5742, %v5742
      %v5749 = vsel %vm388, %v5743, 0
      %v5752 = vsel %vm388, %v5744, 0
      %v5755 = vsel %vm388, %v5745, 0
      %v5758 = vsel %vm388, %v5746, 0
      %v5761 = vsel %vm388, %v5747, 0
      %v5764 = vsel %vm404, %v5687, 0
      %v5767 = vsel %vm404, %v5688, 0
      %5769 = vmatprep.subr.bf16.mxu0 %v5680
      %5770 = vmatpush1.bf16.msra.mxu0 %v5679
      %5771 = vmatprep.subr.bf16.mxu0 %v5682
      %5772 = vmatpush1.bf16.msra.mxu0 %v5681
      %5773 = vmatprep.subr.bf16.mxu0 %v5684
      %5774 = vmatpush1.bf16.msra.mxu0 %v5683
      %5775 = vmatprep.subr.bf16.mxu0 %v5686
      %5776 = vmatpush1.bf16.msra.mxu0 %v5685
      %5777 = vmatprep.subr.bf16.mxu0 %v5767
      %5778 = vmatpush1.bf16.msra.mxu0 %v5764
      %5779 = vmatprep.subr.bf16.mxu0 0
      %5780 = vmatpush1.bf16.msra.mxu0 0
      %5781 = vmatprep.subr.bf16.mxu0 0
      %5782 = vmatpush1.bf16.msra.mxu0 0
      %5783 = vmatprep.subr.bf16.mxu0 0
      %5784 = vmatpush1.bf16.msra.mxu0 0
      %5785 = vmatprep.subr.bf16.mxu0 0
      %5786 = vmatpush1.bf16.msra.mxu0 0
      %5787 = vmatprep.subr.bf16.mxu0 0
      %5788 = vmatpush1.bf16.msra.mxu0 0
      %5789 = vmatprep.subr.bf16.mxu0 0
      %5790 = vmatpush1.bf16.msra.mxu0 0
      %5791 = vmatprep.subr.bf16.mxu0 0
      %5792 = vmatpush1.bf16.msra.mxu0 0
      %5793 = vmatprep.subr.bf16.mxu0 0
      %5794 = vmatpush1.bf16.msra.mxu0 0
      %5795 = vmatprep.subr.bf16.mxu0 0
      %5796 = vmatpush1.bf16.msra.mxu0 0
      %5797 = vmatprep.subr.bf16.mxu0 0
      %5798 = vmatpush1.bf16.msra.mxu0 0
      %5799 = vmatprep.subr.bf16.mxu0 0
      %5800 = vmatpush1.bf16.msra.mxu0 0
      %5801 = vmatprep.mubr.bf16.mxu0 0
      %5802 = vmatmul.mubr.bf16.gmra.mrb[0].mxu0 %v5749
      %v5803 = vpop.f32.mrb[0].mxu0
      %v5804 = vadd.f32 %v5691, %v5803
      %v5805 = vpop.f32.mrb[0].mxu0
      %v5806 = vadd.f32 %v5691, %v5805
      %v5807 = vpop.f32.mrb[0].mxu0
      %v5808 = vadd.f32 %v5695, %v5807
      %v5809 = vpop.f32.mrb[0].mxu0
      %v5810 = vadd.f32 %v5695, %v5809
      %5811 = vmatprep.mubr.bf16.mxu0 0
      %5812 = vmatmul.mubr.bf16.gmra.mrb[0].mxu0 %v5752
      %v5813 = vpop.f32.mrb[0].mxu0
      %v5814 = vadd.f32 %v5699, %v5813
      %v5815 = vpop.f32.mrb[0].mxu0
      %v5816 = vadd.f32 %v5699, %v5815
      %v5817 = vpop.f32.mrb[0].mxu0
      %v5818 = vadd.f32 %v5703, %v5817
      %v5819 = vpop.f32.mrb[0].mxu0
      %v5820 = vadd.f32 %v5703, %v5819
      %5821 = vmatprep.mubr.bf16.mxu0 0
      %5822 = vmatmul.mubr.bf16.gmra.mrb[0].mxu0 %v5755
      %v5823 = vpop.f32.mrb[0].mxu0
      %v5824 = vadd.f32 %v5707, %v5823
      %v5825 = vpop.f32.mrb[0].mxu0
      %v5826 = vadd.f32 %v5707, %v5825
      %v5827 = vpop.f32.mrb[0].mxu0
      %v5828 = vadd.f32 %v5711, %v5827
      %v5829 = vpop.f32.mrb[0].mxu0
      %v5830 = vadd.f32 %v5711, %v5829
      %5831 = vmatprep.mubr.bf16.mxu0 0
      %5832 = vmatmul.mubr.bf16.gmra.mrb[0].mxu0 %v5758
      %v5833 = vpop.f32.mrb[0].mxu0
      %v5834 = vadd.f32 %v5715, %v5833
      %v5835 = vpop.f32.mrb[0].mxu0
      %v5836 = vadd.f32 %v5715, %v5835
      %v5837 = vpop.f32.mrb[0].mxu0
      %v5838 = vadd.f32 %v5719, %v5837
      %v5839 = vpop.f32.mrb[0].mxu0
      %v5840 = vadd.f32 %v5719, %v5839
      %5841 = vmatprep.mubr.bf16.mxu0 0
      %5842 = vmatmul.mubr.bf16.gmra.mrb[0].mxu0 %v5761
      %v5843 = vpop.f32.mrb[0].mxu0
      %v5844 = vadd.f32 %v5723, %v5843
      %v5845 = vpop.f32.mrb[0].mxu0
      %v5846 = vadd.f32 %v5723, %v5845
      %v5847 = vpop.f32.mrb[0].mxu0
      %v5848 = vpop.f32.mrb[0].mxu0
      %5849 = vdwg.mxu0
      %v5850 = vadd.f32 %v5804, %v273
      %v5851 = vadd.f32 %v5806, %v274
      %v5852 = vadd.f32 %v5808, %v275
      %v5853 = vadd.f32 %v5810, %v276
      %v5854 = vadd.f32 %v5814, %v277
      %v5855 = vadd.f32 %v5816, %v278
      %v5856 = vadd.f32 %v5818, %v279
      %v5857 = vadd.f32 %v5820, %v280
      %v5858 = vadd.f32 %v5824, %v281
      %v5859 = vadd.f32 %v5826, %v282
      %v5860 = vadd.f32 %v5828, %v283
      %v5861 = vadd.f32 %v5830, %v284
      %v5862 = vadd.f32 %v5834, %v285
      %v5863 = vadd.f32 %v5836, %v286
      %v5864 = vadd.f32 %v5838, %v287
      %v5865 = vadd.f32 %v5840, %v288
      %v5866 = vadd.f32 %v5844, %v289
      %v5867 = vadd.f32 %v5846, %v290
      %5868 = vst [vmem:[%s271] sm:$0xff] %v5850
      %5869 = vst [vmem:[%s271 + $0x8] sm:$0xff] %v5851
      %5870 = vst [vmem:[%s271 + $0x10] sm:$0xff] %v5852
      %5871 = vst [vmem:[%s271 + $0x18] sm:$0xff] %v5853
      %5872 = vst [vmem:[%s271 + $0x20] sm:$0xff] %v5854
      %5873 = vst [vmem:[%s271 + $0x28] sm:$0xff] %v5855
      %5874 = vst [vmem:[%s271 + $0x30] sm:$0xff] %v5856
      %5875 = vst [vmem:[%s271 + $0x38] sm:$0xff] %v5857
      %5876 = vst [vmem:[%s271 + $0x40] sm:$0xff] %v5858
      %5877 = vst [vmem:[%s271 + $0x48] sm:$0xff] %v5859
      %5878 = vst [vmem:[%s271 + $0x50] sm:$0xff] %v5860
      %5879 = vst [vmem:[%s271 + $0x58] sm:$0xff] %v5861
      %5880 = vst [vmem:[%s271 + $0x60] sm:$0xff] %v5862
      %5881 = vst [vmem:[%s271 + $0x68] sm:$0xff] %v5863
      %5882 = vst [vmem:[%s271 + $0x70] sm:$0xff] %v5864
      %5883 = vst [vmem:[%s271 + $0x78] sm:$0xff] %v5865
      %5884 = vst [vmem:[%s271 + $0x80] sm:$0xff] %v5866
      %5885 = vst [vmem:[%s271 + $0x88] sm:$0xff] %v5867
      %p5886 = scmp.lt.s32.totalorder %s17, 1
      %s5887 = scalar_select %p5886, %s17, 1
      %s5888 = smul.addr %s5887, 18
      %s5889 = smul.addr %s5888, 8
      %s5890 = scalar_lea.vmem %s6, %s5889
      // Predicated region
      $region45: #{sde_module_forward.1} parent=43 // pred_check
        %p5891 = pneg %p171
      $region46: #{sde_module_forward.1} parent=43 // pred_check_branch
        %5893 = sbr.rel (%p5891) target = $region48
      $region47: #{sde_module_forward.1} parent=43 // pred_region
        _
      $region48: #{sde_module_forward.1} parent=43 // pred_fallthru
        _
    $region44: #{sde_module_forward.1} parent=5 // pred_fallthru
      _
    %p5894 = scmp.le.s32.totalorder 2, %s12
    // Predicated region
    $region49: #{sde_module_forward.1} parent=5 // pred_check
      %p5895 = pneg %p5894
    $region50: #{sde_module_forward.1} parent=5 // pred_check_branch
      %5897 = sbr.rel (%p5895) target = $region52
    $region51: #{sde_module_forward.1} parent=5 // pred_region
      %s5898 = ssub.s32 %s12, 2
      // Predicated region
      $region53: #{sde_module_forward.1} parent=51 // pred_check
        %p5899 = pneg %p177
      $region54: #{sde_module_forward.1} parent=51 // pred_check_branch
        %5901 = sbr.rel (%p5899) target = $region56
      $region55: #{sde_module_forward.1} parent=51 // pred_region
        %p5902 = scmp.lt.s32.totalorder %s18, 1
        %s5903 = scalar_select %p5902, %s18, 1
        %s5904 = smul.addr %s5903, 18
        %s5905 = smul.addr %s5904, 8
        %s5906 = scalar_lea.vmem %s6, %s5905
      $region56: #{sde_module_forward.1} parent=51 // pred_fallthru
        _
    $region52: #{sde_module_forward.1} parent=5 // pred_fallthru
      _
  $region6: #{sde_module_forward.1} parent=0 // loop_footer
    %s16 = sadd.s32 1, %s12
  $region7: #{sde_module_forward.1} parent=0 // loop_footer_branch
    %11 = sbr.rel target = $region3
  $region8: #{sde_module_forward.1} parent=0 // loop_exit
    _

</llo_original>
